<compile_context>
chip_gen: v7x
topology: tpu7x:2x2x1
jax: 0.10.0
libtpu: 0.0.40
codegen_flags: <defaults>
</compile_context>

<pallas_src>
import functools
import math

import jax
import jax.numpy as jnp
from jax.experimental import pallas as pl
from jax.experimental.pallas import tpu as pltpu

_EPS = 1e-5
_LANES = 128
_TARGET_BLOCK_BYTES = 2 << 20      # ~2 MiB activation slab per grid step
_VMEM_LIMIT_BYTES = 32 << 20       # safe headroom on v5e/v6e (128 MiB) and v7x (64 MiB)
_DOT_PRECISION = jax.lax.Precision.HIGHEST


def _plain_kernel(x_ref, w_ref, o_ref):
    """Unpacked path. x_ref: (TM, C), w_ref: (1, C), o_ref: (TM, C)."""
    x = x_ref[...].astype(jnp.float32)
    w = w_ref[...].astype(jnp.float32)

    mu = jnp.mean(x, axis=-1, keepdims=True)          # XLU reduce
    d = x - mu
    var = jnp.mean(d * d, axis=-1, keepdims=True)
    inv = jax.lax.rsqrt(var + _EPS)                   # EUP
    o_ref[...] = (x * inv * w).astype(o_ref.dtype)


def _packed_kernel(x_ref, w_ref, seg_ref, segt_ref, o_ref, *, inv_c):
    """Lane-packed path: P original rows of width C share one (P*C)-lane row.

    x_ref:   (TM, P*C)   activations (P rows concatenated along lanes)
    w_ref:   (1, P*C)    weight tiled P times
    seg_ref: (P*C, P)    block-diagonal ones -> segmented row sums (MXU)
    segt_ref:(P, P*C)    its transpose       -> segment-wise broadcast (MXU)
    """
    x = x_ref[...].astype(jnp.float32)
    w = w_ref[...].astype(jnp.float32)
    seg = seg_ref[...]
    segt = segt_ref[...]

    # Per-original-row (segmented) mean, two-pass variance, all f32-exact.
    s1 = jnp.dot(x, seg, preferred_element_type=jnp.float32,
                 precision=_DOT_PRECISION)                       # (TM, P)
    mean_full = jnp.dot(s1 * inv_c, segt,
                        preferred_element_type=jnp.float32,
                        precision=_DOT_PRECISION)                # (TM, P*C)
    d = x - mean_full
    s2 = jnp.dot(d * d, seg, preferred_element_type=jnp.float32,
                 precision=_DOT_PRECISION)                       # (TM, P)
    inv = jax.lax.rsqrt(s2 * inv_c + _EPS)                       # (TM, P), EUP
    inv_full = jnp.dot(inv, segt, preferred_element_type=jnp.float32,
                       precision=_DOT_PRECISION)                 # (TM, P*C)
    o_ref[...] = (x * inv_full * w).astype(o_ref.dtype)


def _sublane_multiple(itemsize):
    # 8 rows per vreg sublane group for 4-byte types, 16 for 2-byte, 32 for 1-byte.
    return 8 * max(1, 4 // itemsize)


def _choose_rows_tile(rows, row_bytes, sublane):
    """Bytes-targeted row tile, sublane-rounded, with >=2 grid steps when possible."""
    if rows <= sublane:
        return rows                      # full-extent block (unaligned extent allowed)
    tm = max(sublane, (_TARGET_BLOCK_BYTES // max(row_bytes, 1)) // sublane * sublane)
    # Cap so cdiv(rows, tm) >= 2: both v7x TensorCores get a share of the stream.
    half = (rows + 1) // 2
    cap = -(-half // sublane) * sublane
    return min(tm, cap, rows)


def biasfree_layernorm(x, weight):
    """Equivalent of BiasFree_LayerNorm(C).forward(x).  x: (..., C), weight: (C,)."""
    orig_shape = x.shape
    C = orig_shape[-1]
    assert weight.shape == (C,), (weight.shape, C)

    M = math.prod(orig_shape[:-1]) if len(orig_shape) > 1 else 1
    itemsize = jnp.dtype(x.dtype).itemsize
    sublane = _sublane_multiple(itemsize)

    # Lane packing factor: P original rows per 128-lane row when that is exact.
    pack = _LANES // C if (C < _LANES and _LANES % C == 0) else 1
    if pack > 1 and M % pack != 0:
        pack = 1

    if pack > 1:
        rows, width = M // pack, pack * C
        x2 = x.reshape(rows, width)                       # contiguous view, no copy
        w2 = jnp.tile(weight, pack).reshape(1, width).astype(x.dtype)
        lane_ids = jnp.arange(width, dtype=jnp.int32)[:, None] // C
        seg = (lane_ids == jnp.arange(pack, dtype=jnp.int32)[None, :]).astype(jnp.float32)
        segt = seg.T
        kernel = functools.partial(_packed_kernel, inv_c=1.0 / C)
        extra_args = (seg, segt)
        extra_specs = [
            pl.BlockSpec((width, pack), lambda i: (0, 0)),   # resident, tiny
            pl.BlockSpec((pack, width), lambda i: (0, 0)),
        ]
    else:
        rows, width = M, C
        x2 = x.reshape(rows, width)
        w2 = weight.reshape(1, width).astype(x.dtype)
        kernel = _plain_kernel
        extra_args = ()
        extra_specs = []

    tm = _choose_rows_tile(rows, width * itemsize, sublane)
    grid = (pl.cdiv(rows, tm),)

    cost = pl.CostEstimate(
        flops=8 * M * C,
        transcendentals=M,
        bytes_accessed=2 * M * C * itemsize + C * itemsize,
    )

    out = pl.pallas_call(
        kernel,
        out_shape=jax.ShapeDtypeStruct((rows, width), x.dtype),
        grid_spec=pltpu.PrefetchScalarGridSpec(
            num_scalar_prefetch=0,
            grid=grid,
            in_specs=[
                pl.BlockSpec((tm, width), lambda i: (i, 0)),   # activation rows
                pl.BlockSpec((1, width), lambda i: (0, 0)),    # weight (resident)
            ] + extra_specs,
            out_specs=pl.BlockSpec((tm, width), lambda i: (i, 0)),
        ),
        compiler_params=pltpu.CompilerParams(
            dimension_semantics=("parallel",),
            vmem_limit_bytes=_VMEM_LIMIT_BYTES,
        ),
        cost_estimate=cost,
    )(x2, w2, *extra_args)

    return out.reshape(orig_shape)


def _reference(x, weight):
    mu = jnp.mean(x, axis=-1, keepdims=True)
    var = jnp.mean((x - mu) ** 2, axis=-1, keepdims=True)
    return x / jnp.sqrt(var + _EPS) * weight


if __name__ == "__main__":
    key = jax.random.PRNGKey(0)
    k_x, k_w = jax.random.split(key)

    # MRM-style usage: (B, H*W, C) tokens, normalized over C.
    B, L, C = 2, 256, 64
    x = jax.random.normal(k_x, (B, L, C), dtype=jnp.float32)
    weight = 1.0 + 0.1 * jax.random.normal(k_w, (C,), dtype=jnp.float32)

    y = biasfree_layernorm(x, weight)
    y = jax.block_until_ready(y)
    assert y.shape == x.shape, y.shape

    ref = _reference(x, weight)
    max_err = float(jnp.max(jnp.abs(y - ref)))
    assert jnp.allclose(y, ref, atol=1e-4, rtol=1e-4), max_err

    print("KERNEL_OK")
</pallas_src>

<mosaic_0001>
module attributes {stable_mosaic.version = 11 : i64} {
  func.func @_packed_kernel(%arg0: i32, %arg1: memref<128x128xf32, #tpu.memory_space<vmem>>, %arg2: memref<1x128xf32, #tpu.memory_space<vmem>>, %arg3: memref<128x2xf32, #tpu.memory_space<vmem>>, %arg4: memref<2x128xf32, #tpu.memory_space<vmem>>, %arg5: memref<128x128xf32, #tpu.memory_space<vmem>>) attributes {dimension_semantics = [#tpu.dimension_semantics<parallel>], iteration_bounds = array<i64: 2>, scalar_prefetch = 0 : i64, scratch_operands = 0 : i64, tpu.core_type = #tpu.core_type<tc>, window_params = [{transform_indices = @transform_0, window_bounds = array<i64: 128, 128>}, {pipeline_mode = #tpu.pipeline_mode<synchronous>, transform_indices = @transform_1, window_bounds = array<i64: 1, 128>}, {pipeline_mode = #tpu.pipeline_mode<synchronous>, transform_indices = @transform_2, window_bounds = array<i64: 128, 2>}, {pipeline_mode = #tpu.pipeline_mode<synchronous>, transform_indices = @transform_3, window_bounds = array<i64: 2, 128>}, {transform_indices = @transform_4, window_bounds = array<i64: 128, 128>}]} {
    %c0 = arith.constant 0 : index
    %c0_0 = arith.constant 0 : index
    %0 = vector.load %arg1[%c0, %c0_0] : memref<128x128xf32, #tpu.memory_space<vmem>>, vector<128x128xf32>
    %c0_1 = arith.constant 0 : index
    %c0_2 = arith.constant 0 : index
    %1 = vector.load %arg2[%c0_1, %c0_2] : memref<1x128xf32, #tpu.memory_space<vmem>>, vector<1x128xf32>
    %c0_3 = arith.constant 0 : index
    %c0_4 = arith.constant 0 : index
    %2 = vector.load %arg3[%c0_3, %c0_4] : memref<128x2xf32, #tpu.memory_space<vmem>>, vector<128x2xf32>
    %c0_5 = arith.constant 0 : index
    %c0_6 = arith.constant 0 : index
    %3 = vector.load %arg4[%c0_5, %c0_6] : memref<2x128xf32, #tpu.memory_space<vmem>>, vector<2x128xf32>
    %cst = arith.constant dense<0.000000e+00> : vector<128x2xf32>
    %4 = tpu.matmul %0, %2, %cst {dimension_numbers = #tpu.dot_dimension_numbers<[1], [0], [0], [1], [0, 0, 1, 1], [], []>, precision = #tpu.contract_precision<fp32>} : vector<128x128xf32>, vector<128x2xf32>, vector<128x2xf32> -> vector<128x2xf32>
    %cst_7 = arith.constant 1.562500e-02 : f32
    %5 = vector.broadcast %cst_7 : f32 to vector<128x2xf32>
    %6 = arith.mulf %4, %5 : vector<128x2xf32>
    %cst_8 = arith.constant dense<0.000000e+00> : vector<128x128xf32>
    %7 = tpu.matmul %6, %3, %cst_8 {dimension_numbers = #tpu.dot_dimension_numbers<[1], [0], [0], [1], [0, 0, 1, 1], [], []>, precision = #tpu.contract_precision<fp32>} : vector<128x2xf32>, vector<2x128xf32>, vector<128x128xf32> -> vector<128x128xf32>
    %8 = arith.subf %0, %7 : vector<128x128xf32>
    %9 = arith.mulf %8, %8 : vector<128x128xf32>
    %cst_9 = arith.constant dense<0.000000e+00> : vector<128x2xf32>
    %10 = tpu.matmul %9, %2, %cst_9 {dimension_numbers = #tpu.dot_dimension_numbers<[1], [0], [0], [1], [0, 0, 1, 1], [], []>, precision = #tpu.contract_precision<fp32>} : vector<128x128xf32>, vector<128x2xf32>, vector<128x2xf32> -> vector<128x2xf32>
    %cst_10 = arith.constant 1.562500e-02 : f32
    %11 = vector.broadcast %cst_10 : f32 to vector<128x2xf32>
    %12 = arith.mulf %10, %11 : vector<128x2xf32>
    %cst_11 = arith.constant 9.99999974E-6 : f32
    %13 = vector.broadcast %cst_11 : f32 to vector<128x2xf32>
    %14 = arith.addf %12, %13 : vector<128x2xf32>
    %15 = math.rsqrt %14 : vector<128x2xf32>
    %cst_12 = arith.constant dense<0.000000e+00> : vector<128x128xf32>
    %16 = tpu.matmul %15, %3, %cst_12 {dimension_numbers = #tpu.dot_dimension_numbers<[1], [0], [0], [1], [0, 0, 1, 1], [], []>, precision = #tpu.contract_precision<fp32>} : vector<128x2xf32>, vector<2x128xf32>, vector<128x128xf32> -> vector<128x128xf32>
    %17 = arith.mulf %0, %16 : vector<128x128xf32>
    %18 = vector.broadcast %1 : vector<1x128xf32> to vector<128x128xf32>
    %19 = arith.mulf %17, %18 : vector<128x128xf32>
    %c0_13 = arith.constant 0 : index
    %c0_14 = arith.constant 0 : index
    %20 = vector.load %arg5[%c0_13, %c0_14] : memref<128x128xf32, #tpu.memory_space<vmem>>, vector<128x128xf32>
    tpu.vector_store %arg5[%c0_13, %c0_14], %19 {strides = array<i32>} : memref<128x128xf32, #tpu.memory_space<vmem>>, vector<128x128xf32>,
    return
  }
  func.func @transform_0(%arg0: i32) -> (i32, i32) {
    %c0_i32 = arith.constant 0 : i32
    %c0_i32_0 = arith.constant 0 : i32
    return %arg0, %c0_i32 : i32, i32
  }
  func.func @transform_1(%arg0: i32) -> (i32, i32) {
    %c0_i32 = arith.constant 0 : i32
    %c0_i32_0 = arith.constant 0 : i32
    %c0_i32_1 = arith.constant 0 : i32
    return %c0_i32, %c0_i32_0 : i32, i32
  }
  func.func @transform_2(%arg0: i32) -> (i32, i32) {
    %c0_i32 = arith.constant 0 : i32
    %c0_i32_0 = arith.constant 0 : i32
    %c0_i32_1 = arith.constant 0 : i32
    return %c0_i32, %c0_i32_0 : i32, i32
  }
  func.func @transform_3(%arg0: i32) -> (i32, i32) {
    %c0_i32 = arith.constant 0 : i32
    %c0_i32_0 = arith.constant 0 : i32
    %c0_i32_1 = arith.constant 0 : i32
    return %c0_i32, %c0_i32_0 : i32, i32
  }
  func.func @transform_4(%arg0: i32) -> (i32, i32) {
    %c0_i32 = arith.constant 0 : i32
    %c0_i32_0 = arith.constant 0 : i32
    return %arg0, %c0_i32 : i32, i32
  }
}

</mosaic_0001>

<llo_original>
// kernel: tpu_custom_call.1
$region0: #{tpu_custom_call.1}
  #allocation0 [shape = 'u32[]', space=smem, size = 0x4, offset = 0x4, fixed_abs, tag = 'smem constant byte address 0x4 - core index']
  #allocation1 [shape = 'u32[144,128]{1,0:T(1,128)}', space=vmem, size = 0x12000, scoped, tag = 'internal scratch']
  %s0 = inlined_call_operand.hbm [shape: f32[256,128], index: 0, kind: input, shape index: {}]
  %s1 = inlined_call_operand.vmem [shape: f32[1,128], index: 1, kind: input, shape index: {}]
  %s2 = inlined_call_operand.vmem [shape: f32[128,2], index: 2, kind: input, shape index: {}]
  %s3 = inlined_call_operand.vmem [shape: f32[2,128], index: 3, kind: input, shape index: {}]
  %s4 = inlined_call_operand.hbm [shape: f32[256,128], index: 4, kind: output, shape index: {}]
  %s5 = sld [smem:[#allocation0]]
  $region53: #{tpu_custom_call.1} parent=0
    _
  %s7 = ssub.s32 1, %s5
  %s8 = scalar_select 0, %s7, %s5
  $region1: #{tpu_custom_call.1} parent=0
    #allocation2 [shape = 'u8[131072]{0}', space=vmem, size = 0x20000, scoped, tag = 'input window, operand 0']
    #allocation3 [shape = 's32[2]{0}', space=sflag, size = 0x8, scoped, tag = 'scoped memory for tpu_custom_call.1']
    #allocation4 [shape = 's32[2]{0}', space=sflag, size = 0x8, scoped, tag = 'scoped memory for tpu_custom_call.1']
    #allocation5 [shape = 'u8[131072]{0}', space=vmem, size = 0x20000, scoped, tag = 'output window, operand 0']
    %9 = vsyncpa [#allocation3], 0
    %s10 = scalar_lea.sflag [#allocation3], 1
    %11 = vsyncpa %s10, 0
    %12 = vsyncpa [#allocation4], 0
    %s13 = scalar_lea.sflag [#allocation4], 1
    %14 = vsyncpa %s13, 0
    loop: start=0, step=1, limit=4
    $region2: #{tpu_custom_call.1} parent=1 // loop_pre_header
      _
    $region3: #{tpu_custom_call.1} parent=1 // loop_header
      %s16 = sphi 0, %s20
      %p17 = scmp.ge.s32.totalorder %s16, 4
      %s26 = sphi 0, %s28
      %s29 = sphi 0, %s26
      %s30 = sphi 0, %s29
      %s46 = sphi 0, %s30
      %s50 = sphi 0, %s50
      %s52 = sphi 0, %s50
      %s53 = sphi 0, %s52
      %s67 = sphi 0, %s53
      %s71 = sphi 0, %s71
      %s73 = sphi 0, %s71
      %s74 = sphi 0, %s73
      %s88 = sphi 0, %s74
      %s92 = sphi 0, %s92
      %s94 = sphi 0, %s92
      %s95 = sphi 0, %s94
      %s109 = sphi 0, %s95
      %s115 = sphi 0, %s117
      %s118 = sphi 0, %s115
      %s119 = sphi 0, %s118
      %s135 = sphi 0, %s119
    $region4: #{tpu_custom_call.1} parent=1 // loop_header_branch
      %19 = sbr.rel (%p17) target = $region8
    $region5: #{tpu_custom_call.1} parent=1 // loop_body
      %s21 = ssub.s32 %s16, 1
      %s22 = ssub.s32 %s16, 2
      %s23 = sadd.s32 %s16, 1
      %s24 = ssub.s32 %s16, %s23
      %p25 = scmp.eq.s32.totalorder %s24, 0
      %s27 = sadd.s32 %s26, 1
      %s28 = scalar_select %p25, %s26, %s27
      %p31 = pneg %p25
      %p32 = scmp.eq.s32.totalorder %s16, 1
      %p33 = por %p31, %p32
      %p34 = scmp.ne.s32.totalorder %s26, %s29
      %p35 = scmp.eq.s32.totalorder %s16, 0
      %p36 = por %p34, %p35
      %p37 = scmp.ne.s32.totalorder %s26, %s29
      %p38 = scmp.eq.s32.totalorder %s21, 1
      %p39 = por %p37, %p38
      %p40 = scmp.ne.s32.totalorder %s29, %s30
      %p41 = scmp.eq.s32.totalorder %s21, 0
      %p42 = por %p40, %p41
      %p43 = scmp.ne.s32.totalorder %s29, %s30
      %p44 = scmp.eq.s32.totalorder %s22, 1
      %p45 = por %p43, %p44
      %p47 = scmp.ne.s32.totalorder %s30, %s46
      %p48 = scmp.eq.s32.totalorder %s22, 0
      %p49 = por %p47, %p48
      %s51 = sadd.s32 %s50, 1
      %p54 = scmp.eq.s32.totalorder %s16, 1
      %p55 = scmp.ne.s32.totalorder %s50, %s52
      %p56 = scmp.eq.s32.totalorder %s16, 0
      %p57 = por %p55, %p56
      %p58 = scmp.ne.s32.totalorder %s50, %s52
      %p59 = scmp.eq.s32.totalorder %s21, 1
      %p60 = por %p58, %p59
      %p61 = scmp.ne.s32.totalorder %s52, %s53
      %p62 = scmp.eq.s32.totalorder %s21, 0
      %p63 = por %p61, %p62
      %p64 = scmp.ne.s32.totalorder %s52, %s53
      %p65 = scmp.eq.s32.totalorder %s22, 1
      %p66 = por %p64, %p65
      %p68 = scmp.ne.s32.totalorder %s53, %s67
      %p69 = scmp.eq.s32.totalorder %s22, 0
      %p70 = por %p68, %p69
      %s72 = sadd.s32 %s71, 1
      %p75 = scmp.eq.s32.totalorder %s16, 1
      %p76 = scmp.ne.s32.totalorder %s71, %s73
      %p77 = scmp.eq.s32.totalorder %s16, 0
      %p78 = por %p76, %p77
      %p79 = scmp.ne.s32.totalorder %s71, %s73
      %p80 = scmp.eq.s32.totalorder %s21, 1
      %p81 = por %p79, %p80
      %p82 = scmp.ne.s32.totalorder %s73, %s74
      %p83 = scmp.eq.s32.totalorder %s21, 0
      %p84 = por %p82, %p83
      %p85 = scmp.ne.s32.totalorder %s73, %s74
      %p86 = scmp.eq.s32.totalorder %s22, 1
      %p87 = por %p85, %p86
      %p89 = scmp.ne.s32.totalorder %s74, %s88
      %p90 = scmp.eq.s32.totalorder %s22, 0
      %p91 = por %p89, %p90
      %s93 = sadd.s32 %s92, 1
      %p96 = scmp.eq.s32.totalorder %s16, 1
      %p97 = scmp.ne.s32.totalorder %s92, %s94
      %p98 = scmp.eq.s32.totalorder %s16, 0
      %p99 = por %p97, %p98
      %p100 = scmp.ne.s32.totalorder %s92, %s94
      %p101 = scmp.eq.s32.totalorder %s21, 1
      %p102 = por %p100, %p101
      %p103 = scmp.ne.s32.totalorder %s94, %s95
      %p104 = scmp.eq.s32.totalorder %s21, 0
      %p105 = por %p103, %p104
      %p106 = scmp.ne.s32.totalorder %s94, %s95
      %p107 = scmp.eq.s32.totalorder %s22, 1
      %p108 = por %p106, %p107
      %p110 = scmp.ne.s32.totalorder %s95, %s109
      %p111 = scmp.eq.s32.totalorder %s22, 0
      %p112 = por %p110, %p111
      %s113 = ssub.s32 %s16, %s23
      %p114 = scmp.eq.s32.totalorder %s113, 0
      %s116 = sadd.s32 %s115, 1
      %s117 = scalar_select %p114, %s115, %s116
      %p120 = pneg %p114
      %p121 = scmp.eq.s32.totalorder %s16, 1
      %p122 = por %p120, %p121
      %p123 = scmp.ne.s32.totalorder %s115, %s118
      %p124 = scmp.eq.s32.totalorder %s16, 0
      %p125 = por %p123, %p124
      %p126 = scmp.ne.s32.totalorder %s115, %s118
      %p127 = scmp.eq.s32.totalorder %s21, 1
      %p128 = por %p126, %p127
      %p129 = scmp.ne.s32.totalorder %s118, %s119
      %p130 = scmp.eq.s32.totalorder %s21, 0
      %p131 = por %p129, %p130
      %p132 = scmp.ne.s32.totalorder %s118, %s119
      %p133 = scmp.eq.s32.totalorder %s22, 1
      %p134 = por %p132, %p133
      %p136 = scmp.ne.s32.totalorder %s119, %s135
      %p137 = scmp.eq.s32.totalorder %s22, 0
      %p138 = por %p136, %p137
      %p139 = scmp.le.s32.totalorder 1, %s16
      %p140 = scmp.lt.s32.totalorder %s16, 3
      %p141 = pnand %p139, %p140
      %p142 = pneg %p141
      // Predicated region
      $region9: #{tpu_custom_call.1} parent=5 // pred_check
        _
      $region10: #{tpu_custom_call.1} parent=5 // pred_check_branch
        %144 = sbr.rel (%p141) target = $region12
      $region11: #{tpu_custom_call.1} parent=5 // pred_region
        %s145 = ssub.s32 %s16, 1
        // Predicated region
        $region13: #{tpu_custom_call.1} parent=11 // pred_check
          %p146 = pneg %p63
        $region14: #{tpu_custom_call.1} parent=11 // pred_check_branch
          %148 = sbr.rel (%p146) target = $region16
        $region15: #{tpu_custom_call.1} parent=11 // pred_region
          _
        $region16: #{tpu_custom_call.1} parent=11 // pred_fallthru
          _
        // Predicated region
        $region17: #{tpu_custom_call.1} parent=11 // pred_check
          %p149 = pneg %p84
        $region18: #{tpu_custom_call.1} parent=11 // pred_check_branch
          %151 = sbr.rel (%p149) target = $region20
        $region19: #{tpu_custom_call.1} parent=11 // pred_region
          _
        $region20: #{tpu_custom_call.1} parent=11 // pred_fallthru
          _
        // Predicated region
        $region21: #{tpu_custom_call.1} parent=11 // pred_check
          %p152 = pneg %p105
        $region22: #{tpu_custom_call.1} parent=11 // pred_check_branch
          %154 = sbr.rel (%p152) target = $region24
        $region23: #{tpu_custom_call.1} parent=11 // pred_region
          _
        $region24: #{tpu_custom_call.1} parent=11 // pred_fallthru
          _
      $region12: #{tpu_custom_call.1} parent=5 // pred_fallthru
        _
      %p155 = scmp.lt.s32.totalorder %s16, 2
      // Predicated region
      $region25: #{tpu_custom_call.1} parent=5 // pred_check
        %p156 = pneg %p155
      $region26: #{tpu_custom_call.1} parent=5 // pred_check_branch
        %158 = sbr.rel (%p156) target = $region28
      $region27: #{tpu_custom_call.1} parent=5 // pred_region
        // Predicated region
        $region29: #{tpu_custom_call.1} parent=27 // pred_check
          %p159 = pneg %p36
        $region30: #{tpu_custom_call.1} parent=27 // pred_check_branch
          %161 = sbr.rel (%p159) target = $region32
        $region31: #{tpu_custom_call.1} parent=27 // pred_region
          %s162 = sand.u32 %s26, 1
          %s163 = scalar_lea.sflag [#allocation3], %s162
          %s164 = sand.u32 %s26, 1
          %s165 = smul.addr %s164, 128
          %s166 = scalar_lea.vmem [#allocation2], %s165
          %s167 = smul.u32 16, %s16
          %s169 = ssub.s32 2048, 2048
          %170 = vsyncadd %s163, %s169
          %s171 = smul.addr %s167, 128
          %s172 = scalar_lea.hbm %s0, %s171
          %s173 = sshll.u32 %s166, 4
          %s174 = int_to_ptr.vmem [resolvable:$true] %s173
          %179 = dma.hbm_to_vmem [thread:$0]  %s172, 2048, %s174, %s163, 128, 128, 8
        $region32: #{tpu_custom_call.1} parent=27 // pred_fallthru
          _
      $region28: #{tpu_custom_call.1} parent=5 // pred_fallthru
        _
      %p180 = scmp.le.s32.totalorder 1, %s16
      %p181 = scmp.lt.s32.totalorder %s16, 3
      %p182 = pnand %p180, %p181
      %p183 = pneg %p182
      // Predicated region
      $region33: #{tpu_custom_call.1} parent=5 // pred_check
        _
      $region34: #{tpu_custom_call.1} parent=5 // pred_check_branch
        %185 = sbr.rel (%p182) target = $region36
      $region35: #{tpu_custom_call.1} parent=5 // pred_region
        %s186 = ssub.s32 %s16, 1
        %s187 = sand.u32 %s29, 1
        %s188 = scalar_lea.sflag [#allocation3], %s187
        %s189 = sand.u32 %s29, 1
        %s190 = smul.addr %s189, 128
        %s191 = scalar_lea.vmem [#allocation2], %s190
        // Predicated region
        $region37: #{tpu_custom_call.1} parent=35 // pred_check
          %p192 = pneg %p42
        $region38: #{tpu_custom_call.1} parent=35 // pred_check_branch
          %194 = sbr.rel (%p192) target = $region40
        $region39: #{tpu_custom_call.1} parent=35 // pred_region
          %195 = dma.done %s188, 2048
        $region40: #{tpu_custom_call.1} parent=35 // pred_fallthru
          _
        %s196 = sand.u32 %s29, 1
        %s197 = scalar_lea.sflag [#allocation3], %s196
        %s198 = sand.u32 %s29, 1
        %s199 = smul.addr %s198, 128
        %s200 = scalar_lea.vmem [#allocation2], %s199
        %p201 = pneg %p42
        %p202 = pneg %p39
        %p203 = pneg %p63
        %p204 = pneg %p60
        %p205 = pneg %p84
        %p206 = pneg %p81
        %p207 = pneg %p105
        %p208 = pneg %p102
        %p209 = pneg %p131
        %p210 = pneg %p128
        %s211 = sand.u32 %s118, 1
        %s212 = scalar_lea.sflag [#allocation4], %s211
        %s213 = sand.u32 %s118, 1
        %s214 = smul.addr %s213, 128
        %s215 = scalar_lea.vmem [#allocation5], %s214
        %s216 = smul.u32 16, %s21
        %s217 = smul.u32 16, %s21
        %v218 = vld [vmem:[%s191] sm:$0xff]
        %v219 = vld [vmem:[%s191 + $0x8] sm:$0xff]
        %v220 = vld [vmem:[%s191 + $0x10] sm:$0xff]
        %v221 = vld [vmem:[%s191 + $0x18] sm:$0xff]
        %v222 = vld [vmem:[%s191 + $0x20] sm:$0xff]
        %v223 = vld [vmem:[%s191 + $0x28] sm:$0xff]
        %v224 = vld [vmem:[%s191 + $0x30] sm:$0xff]
        %v225 = vld [vmem:[%s191 + $0x38] sm:$0xff]
        %v226 = vld [vmem:[%s191 + $0x40] sm:$0xff]
        %v227 = vld [vmem:[%s191 + $0x48] sm:$0xff]
        %v228 = vld [vmem:[%s191 + $0x50] sm:$0xff]
        %v229 = vld [vmem:[%s191 + $0x58] sm:$0xff]
        %v230 = vld [vmem:[%s191 + $0x60] sm:$0xff]
        %v231 = vld [vmem:[%s191 + $0x68] sm:$0xff]
        %v232 = vld [vmem:[%s191 + $0x70] sm:$0xff]
        %v233 = vld [vmem:[%s191 + $0x78] sm:$0xff]
        %v234 = vld [vmem:[%s1] sm:$0x1]
        %v235 = vld [vmem:[%s2] sm:$0xff]
        %v236 = vld [vmem:[%s2 + $0x8] sm:$0xff]
        %v237 = vld [vmem:[%s2 + $0x10] sm:$0xff]
        %v238 = vld [vmem:[%s2 + $0x18] sm:$0xff]
        %v239 = vld [vmem:[%s2 + $0x20] sm:$0xff]
        %v240 = vld [vmem:[%s2 + $0x28] sm:$0xff]
        %v241 = vld [vmem:[%s2 + $0x30] sm:$0xff]
        %v242 = vld [vmem:[%s2 + $0x38] sm:$0xff]
        %v243 = vld [vmem:[%s2 + $0x40] sm:$0xff]
        %v244 = vld [vmem:[%s2 + $0x48] sm:$0xff]
        %v245 = vld [vmem:[%s2 + $0x50] sm:$0xff]
        %v246 = vld [vmem:[%s2 + $0x58] sm:$0xff]
        %v247 = vld [vmem:[%s2 + $0x60] sm:$0xff]
        %v248 = vld [vmem:[%s2 + $0x68] sm:$0xff]
        %v249 = vld [vmem:[%s2 + $0x70] sm:$0xff]
        %v250 = vld [vmem:[%s2 + $0x78] sm:$0xff]
        %v251 = vld [vmem:[%s3] sm:$0x3]
        %252 = vmatprep.subr.mxu0 0.0
        %v253 = vand.u32 %v235, 4294901760
        %254 = vmatpush1.msra.mxu0 %v253
        %255 = vmatprep.subr.mxu0 0.0
        %v256 = vand.u32 %v236, 4294901760
        %257 = vmatpush1.msra.mxu0 %v256
        %258 = vmatprep.subr.mxu0 0.0
        %v259 = vand.u32 %v237, 4294901760
        %260 = vmatpush1.msra.mxu0 %v259
        %261 = vmatprep.subr.mxu0 0.0
        %v262 = vand.u32 %v238, 4294901760
        %263 = vmatpush1.msra.mxu0 %v262
        %264 = vmatprep.subr.mxu0 0.0
        %v265 = vand.u32 %v239, 4294901760
        %266 = vmatpush1.msra.mxu0 %v265
        %267 = vmatprep.subr.mxu0 0.0
        %v268 = vand.u32 %v240, 4294901760
        %269 = vmatpush1.msra.mxu0 %v268
        %270 = vmatprep.subr.mxu0 0.0
        %v271 = vand.u32 %v241, 4294901760
        %272 = vmatpush1.msra.mxu0 %v271
        %273 = vmatprep.subr.mxu0 0.0
        %v274 = vand.u32 %v242, 4294901760
        %275 = vmatpush1.msra.mxu0 %v274
        %276 = vmatprep.subr.mxu0 0.0
        %v277 = vand.u32 %v243, 4294901760
        %278 = vmatpush1.msra.mxu0 %v277
        %279 = vmatprep.subr.mxu0 0.0
        %v280 = vand.u32 %v244, 4294901760
        %281 = vmatpush1.msra.mxu0 %v280
        %282 = vmatprep.subr.mxu0 0.0
        %v283 = vand.u32 %v245, 4294901760
        %284 = vmatpush1.msra.mxu0 %v283
        %285 = vmatprep.subr.mxu0 0.0
        %v286 = vand.u32 %v246, 4294901760
        %287 = vmatpush1.msra.mxu0 %v286
        %288 = vmatprep.subr.mxu0 0.0
        %v289 = vand.u32 %v247, 4294901760
        %290 = vmatpush1.msra.mxu0 %v289
        %291 = vmatprep.subr.mxu0 0.0
        %v292 = vand.u32 %v248, 4294901760
        %293 = vmatpush1.msra.mxu0 %v292
        %294 = vmatprep.subr.mxu0 0.0
        %v295 = vand.u32 %v249, 4294901760
        %296 = vmatpush1.msra.mxu0 %v295
        %297 = vmatprep.subr.mxu0 0.0
        %v298 = vand.u32 %v250, 4294901760
        %299 = vmatpush1.msra.mxu0 %v298
        %300 = vmatprep.subr.mxu0 0.0
        %301 = vmatpush1.msra.mxu0 0.0
        %302 = vmatprep.subr.mxu0 0.0
        %303 = vmatpush1.msra.mxu0 0.0
        %304 = vmatprep.subr.mxu0 0.0
        %305 = vmatpush1.msra.mxu0 0.0
        %306 = vmatprep.subr.mxu0 0.0
        %307 = vmatpush1.msra.mxu0 0.0
        %308 = vmatprep.subr.mxu0 0.0
        %309 = vmatpush1.msra.mxu0 0.0
        %310 = vmatprep.subr.mxu0 0.0
        %311 = vmatpush1.msra.mxu0 0.0
        %312 = vmatprep.subr.mxu0 0.0
        %313 = vmatpush1.msra.mxu0 0.0
        %314 = vmatprep.subr.mxu0 0.0
        %315 = vmatpush1.msra.mxu0 0.0
        %316 = vmatprep.subr.mxu0 0.0
        %317 = vmatpush1.msra.mxu0 0.0
        %318 = vmatprep.subr.mxu0 0.0
        %319 = vmatpush1.msra.mxu0 0.0
        %320 = vmatprep.subr.mxu0 0.0
        %321 = vmatpush1.msra.mxu0 0.0
        %322 = vmatprep.subr.mxu0 0.0
        %323 = vmatpush1.msra.mxu0 0.0
        %324 = vmatprep.subr.mxu0 0.0
        %325 = vmatpush1.msra.mxu0 0.0
        %326 = vmatprep.subr.mxu0 0.0
        %327 = vmatpush1.msra.mxu0 0.0
        %328 = vmatprep.subr.mxu0 0.0
        %329 = vmatpush1.msra.mxu0 0.0
        %330 = vmatprep.subr.mxu0 0.0
        %331 = vmatpush1.msra.mxu0 0.0
        %332 = vmatprep.mubr.f32.mxu0 0.0
        %v333 = vand.u32 %v218, 4294901760
        %v334 = vsub.f32 %v218, %v333
        %v335 = vand.u32 %v334, 4294901760
        %v336 = vsub.f32 %v334, %v335
        %v337 = vand.u32 %v336, 4294901760
        %338 = vmatmul.mubr.f32.gmra.mrb[0].mxu0 %v337
        %v339 = vpop.f32.mrb[0].mxu0
        %v340 = vadd.f32 0.0, %v339
        %v341 = vpop.f32.mrb[0].mxu0
        %342 = vmatprep.mubr.f32.mxu0 0.0
        %v343 = vand.u32 %v219, 4294901760
        %v344 = vsub.f32 %v219, %v343
        %v345 = vand.u32 %v344, 4294901760
        %v346 = vsub.f32 %v344, %v345
        %v347 = vand.u32 %v346, 4294901760
        %348 = vmatmul.mubr.f32.gmra.mrb[0].mxu0 %v347
        %v349 = vpop.f32.mrb[0].mxu0
        %v350 = vadd.f32 0.0, %v349
        %v351 = vpop.f32.mrb[0].mxu0
        %352 = vmatprep.mubr.f32.mxu0 0.0
        %v353 = vand.u32 %v220, 4294901760
        %v354 = vsub.f32 %v220, %v353
        %v355 = vand.u32 %v354, 4294901760
        %v356 = vsub.f32 %v354, %v355
        %v357 = vand.u32 %v356, 4294901760
        %358 = vmatmul.mubr.f32.gmra.mrb[0].mxu0 %v357
        %v359 = vpop.f32.mrb[0].mxu0
        %v360 = vadd.f32 0.0, %v359
        %v361 = vpop.f32.mrb[0].mxu0
        %362 = vmatprep.mubr.f32.mxu0 0.0
        %v363 = vand.u32 %v221, 4294901760
        %v364 = vsub.f32 %v221, %v363
        %v365 = vand.u32 %v364, 4294901760
        %v366 = vsub.f32 %v364, %v365
        %v367 = vand.u32 %v366, 4294901760
        %368 = vmatmul.mubr.f32.gmra.mrb[0].mxu0 %v367
        %v369 = vpop.f32.mrb[0].mxu0
        %v370 = vadd.f32 0.0, %v369
        %v371 = vpop.f32.mrb[0].mxu0
        %372 = vmatprep.mubr.f32.mxu0 0.0
        %v373 = vand.u32 %v222, 4294901760
        %v374 = vsub.f32 %v222, %v373
        %v375 = vand.u32 %v374, 4294901760
        %v376 = vsub.f32 %v374, %v375
        %v377 = vand.u32 %v376, 4294901760
        %378 = vmatmul.mubr.f32.gmra.mrb[0].mxu0 %v377
        %v379 = vpop.f32.mrb[0].mxu0
        %v380 = vadd.f32 0.0, %v379
        %v381 = vpop.f32.mrb[0].mxu0
        %382 = vmatprep.mubr.f32.mxu0 0.0
        %v383 = vand.u32 %v223, 4294901760
        %v384 = vsub.f32 %v223, %v383
        %v385 = vand.u32 %v384, 4294901760
        %v386 = vsub.f32 %v384, %v385
        %v387 = vand.u32 %v386, 4294901760
        %388 = vmatmul.mubr.f32.gmra.mrb[0].mxu0 %v387
        %v389 = vpop.f32.mrb[0].mxu0
        %v390 = vadd.f32 0.0, %v389
        %v391 = vpop.f32.mrb[0].mxu0
        %392 = vmatprep.mubr.f32.mxu0 0.0
        %v393 = vand.u32 %v224, 4294901760
        %v394 = vsub.f32 %v224, %v393
        %v395 = vand.u32 %v394, 4294901760
        %v396 = vsub.f32 %v394, %v395
        %v397 = vand.u32 %v396, 4294901760
        %398 = vmatmul.mubr.f32.gmra.mrb[0].mxu0 %v397
        %v399 = vpop.f32.mrb[0].mxu0
        %v400 = vadd.f32 0.0, %v399
        %v401 = vpop.f32.mrb[0].mxu0
        %402 = vmatprep.mubr.f32.mxu0 0.0
        %v403 = vand.u32 %v225, 4294901760
        %v404 = vsub.f32 %v225, %v403
        %v405 = vand.u32 %v404, 4294901760
        %v406 = vsub.f32 %v404, %v405
        %v407 = vand.u32 %v406, 4294901760
        %408 = vmatmul.mubr.f32.gmra.mrb[0].mxu0 %v407
        %v409 = vpop.f32.mrb[0].mxu0
        %v410 = vadd.f32 0.0, %v409
        %v411 = vpop.f32.mrb[0].mxu0
        %412 = vmatprep.mubr.f32.mxu0 0.0
        %v413 = vand.u32 %v226, 4294901760
        %v414 = vsub.f32 %v226, %v413
        %v415 = vand.u32 %v414, 4294901760
        %v416 = vsub.f32 %v414, %v415
        %v417 = vand.u32 %v416, 4294901760
        %418 = vmatmul.mubr.f32.gmra.mrb[0].mxu0 %v417
        %v419 = vpop.f32.mrb[0].mxu0
        %v420 = vadd.f32 0.0, %v419
        %v421 = vpop.f32.mrb[0].mxu0
        %422 = vmatprep.mubr.f32.mxu0 0.0
        %v423 = vand.u32 %v227, 4294901760
        %v424 = vsub.f32 %v227, %v423
        %v425 = vand.u32 %v424, 4294901760
        %v426 = vsub.f32 %v424, %v425
        %v427 = vand.u32 %v426, 4294901760
        %428 = vmatmul.mubr.f32.gmra.mrb[0].mxu0 %v427
        %v429 = vpop.f32.mrb[0].mxu0
        %v430 = vadd.f32 0.0, %v429
        %v431 = vpop.f32.mrb[0].mxu0
        %432 = vmatprep.mubr.f32.mxu0 0.0
        %v433 = vand.u32 %v228, 4294901760
        %v434 = vsub.f32 %v228, %v433
        %v435 = vand.u32 %v434, 4294901760
        %v436 = vsub.f32 %v434, %v435
        %v437 = vand.u32 %v436, 4294901760
        %438 = vmatmul.mubr.f32.gmra.mrb[0].mxu0 %v437
        %v439 = vpop.f32.mrb[0].mxu0
        %v440 = vadd.f32 0.0, %v439
        %v441 = vpop.f32.mrb[0].mxu0
        %442 = vmatprep.mubr.f32.mxu0 0.0
        %v443 = vand.u32 %v229, 4294901760
        %v444 = vsub.f32 %v229, %v443
        %v445 = vand.u32 %v444, 4294901760
        %v446 = vsub.f32 %v444, %v445
        %v447 = vand.u32 %v446, 4294901760
        %448 = vmatmul.mubr.f32.gmra.mrb[0].mxu0 %v447
        %v449 = vpop.f32.mrb[0].mxu0
        %v450 = vadd.f32 0.0, %v449
        %v451 = vpop.f32.mrb[0].mxu0
        %452 = vmatprep.mubr.f32.mxu0 0.0
        %v453 = vand.u32 %v230, 4294901760
        %v454 = vsub.f32 %v230, %v453
        %v455 = vand.u32 %v454, 4294901760
        %v456 = vsub.f32 %v454, %v455
        %v457 = vand.u32 %v456, 4294901760
        %458 = vmatmul.mubr.f32.gmra.mrb[0].mxu0 %v457
        %v459 = vpop.f32.mrb[0].mxu0
        %v460 = vadd.f32 0.0, %v459
        %v461 = vpop.f32.mrb[0].mxu0
        %462 = vmatprep.mubr.f32.mxu0 0.0
        %v463 = vand.u32 %v231, 4294901760
        %v464 = vsub.f32 %v231, %v463
        %v465 = vand.u32 %v464, 4294901760
        %v466 = vsub.f32 %v464, %v465
        %v467 = vand.u32 %v466, 4294901760
        %468 = vmatmul.mubr.f32.gmra.mrb[0].mxu0 %v467
        %v469 = vpop.f32.mrb[0].mxu0
        %v470 = vadd.f32 0.0, %v469
        %v471 = vpop.f32.mrb[0].mxu0
        %472 = vmatprep.mubr.f32.mxu0 0.0
        %v473 = vand.u32 %v232, 4294901760
        %v474 = vsub.f32 %v232, %v473
        %v475 = vand.u32 %v474, 4294901760
        %v476 = vsub.f32 %v474, %v475
        %v477 = vand.u32 %v476, 4294901760
        %478 = vmatmul.mubr.f32.gmra.mrb[0].mxu0 %v477
        %v479 = vpop.f32.mrb[0].mxu0
        %v480 = vadd.f32 0.0, %v479
        %v481 = vpop.f32.mrb[0].mxu0
        %482 = vmatprep.mubr.f32.mxu0 0.0
        %v483 = vand.u32 %v233, 4294901760
        %v484 = vsub.f32 %v233, %v483
        %v485 = vand.u32 %v484, 4294901760
        %v486 = vsub.f32 %v484, %v485
        %v487 = vand.u32 %v486, 4294901760
        %488 = vmatmul.mubr.f32.gmra.mrb[0].mxu0 %v487
        %v489 = vpop.f32.mrb[0].mxu0
        %v490 = vadd.f32 0.0, %v489
        %v491 = vpop.f32.mrb[0].mxu0
        %492 = vdwg.mxu0
        %493 = vmatprep.subr.mxu0 0.0
        %v494 = vand.u32 %v235, 4294901760
        %v495 = vsub.f32 %v235, %v494
        %v496 = vand.u32 %v495, 4294901760
        %v497 = vsub.f32 %v495, %v496
        %v498 = vand.u32 %v497, 4294901760
        %499 = vmatpush1.msra.mxu0 %v498
        %500 = vmatprep.subr.mxu0 0.0
        %v501 = vand.u32 %v236, 4294901760
        %v502 = vsub.f32 %v236, %v501
        %v503 = vand.u32 %v502, 4294901760
        %v504 = vsub.f32 %v502, %v503
        %v505 = vand.u32 %v504, 4294901760
        %506 = vmatpush1.msra.mxu0 %v505
        %507 = vmatprep.subr.mxu0 0.0
        %v508 = vand.u32 %v237, 4294901760
        %v509 = vsub.f32 %v237, %v508
        %v510 = vand.u32 %v509, 4294901760
        %v511 = vsub.f32 %v509, %v510
        %v512 = vand.u32 %v511, 4294901760
        %513 = vmatpush1.msra.mxu0 %v512
        %514 = vmatprep.subr.mxu0 0.0
        %v515 = vand.u32 %v238, 4294901760
        %v516 = vsub.f32 %v238, %v515
        %v517 = vand.u32 %v516, 4294901760
        %v518 = vsub.f32 %v516, %v517
        %v519 = vand.u32 %v518, 4294901760
        %520 = vmatpush1.msra.mxu0 %v519
        %521 = vmatprep.subr.mxu0 0.0
        %v522 = vand.u32 %v239, 4294901760
        %v523 = vsub.f32 %v239, %v522
        %v524 = vand.u32 %v523, 4294901760
        %v525 = vsub.f32 %v523, %v524
        %v526 = vand.u32 %v525, 4294901760
        %527 = vmatpush1.msra.mxu0 %v526
        %528 = vmatprep.subr.mxu0 0.0
        %v529 = vand.u32 %v240, 4294901760
        %v530 = vsub.f32 %v240, %v529
        %v531 = vand.u32 %v530, 4294901760
        %v532 = vsub.f32 %v530, %v531
        %v533 = vand.u32 %v532, 4294901760
        %534 = vmatpush1.msra.mxu0 %v533
        %535 = vmatprep.subr.mxu0 0.0
        %v536 = vand.u32 %v241, 4294901760
        %v537 = vsub.f32 %v241, %v536
        %v538 = vand.u32 %v537, 4294901760
        %v539 = vsub.f32 %v537, %v538
        %v540 = vand.u32 %v539, 4294901760
        %541 = vmatpush1.msra.mxu0 %v540
        %542 = vmatprep.subr.mxu0 0.0
        %v543 = vand.u32 %v242, 4294901760
        %v544 = vsub.f32 %v242, %v543
        %v545 = vand.u32 %v544, 4294901760
        %v546 = vsub.f32 %v544, %v545
        %v547 = vand.u32 %v546, 4294901760
        %548 = vmatpush1.msra.mxu0 %v547
        %549 = vmatprep.subr.mxu0 0.0
        %v550 = vand.u32 %v243, 4294901760
        %v551 = vsub.f32 %v243, %v550
        %v552 = vand.u32 %v551, 4294901760
        %v553 = vsub.f32 %v551, %v552
        %v554 = vand.u32 %v553, 4294901760
        %555 = vmatpush1.msra.mxu0 %v554
        %556 = vmatprep.subr.mxu0 0.0
        %v557 = vand.u32 %v244, 4294901760
        %v558 = vsub.f32 %v244, %v557
        %v559 = vand.u32 %v558, 4294901760
        %v560 = vsub.f32 %v558, %v559
        %v561 = vand.u32 %v560, 4294901760
        %562 = vmatpush1.msra.mxu0 %v561
        %563 = vmatprep.subr.mxu0 0.0
        %v564 = vand.u32 %v245, 4294901760
        %v565 = vsub.f32 %v245, %v564
        %v566 = vand.u32 %v565, 4294901760
        %v567 = vsub.f32 %v565, %v566
        %v568 = vand.u32 %v567, 4294901760
        %569 = vmatpush1.msra.mxu0 %v568
        %570 = vmatprep.subr.mxu0 0.0
        %v571 = vand.u32 %v246, 4294901760
        %v572 = vsub.f32 %v246, %v571
        %v573 = vand.u32 %v572, 4294901760
        %v574 = vsub.f32 %v572, %v573
        %v575 = vand.u32 %v574, 4294901760
        %576 = vmatpush1.msra.mxu0 %v575
        %577 = vmatprep.subr.mxu0 0.0
        %v578 = vand.u32 %v247, 4294901760
        %v579 = vsub.f32 %v247, %v578
        %v580 = vand.u32 %v579, 4294901760
        %v581 = vsub.f32 %v579, %v580
        %v582 = vand.u32 %v581, 4294901760
        %583 = vmatpush1.msra.mxu0 %v582
        %584 = vmatprep.subr.mxu0 0.0
        %v585 = vand.u32 %v248, 4294901760
        %v586 = vsub.f32 %v248, %v585
        %v587 = vand.u32 %v586, 4294901760
        %v588 = vsub.f32 %v586, %v587
        %v589 = vand.u32 %v588, 4294901760
        %590 = vmatpush1.msra.mxu0 %v589
        %591 = vmatprep.subr.mxu0 0.0
        %v592 = vand.u32 %v249, 4294901760
        %v593 = vsub.f32 %v249, %v592
        %v594 = vand.u32 %v593, 4294901760
        %v595 = vsub.f32 %v593, %v594
        %v596 = vand.u32 %v595, 4294901760
        %597 = vmatpush1.msra.mxu0 %v596
        %598 = vmatprep.subr.mxu0 0.0
        %v599 = vand.u32 %v250, 4294901760
        %v600 = vsub.f32 %v250, %v599
        %v601 = vand.u32 %v600, 4294901760
        %v602 = vsub.f32 %v600, %v601
        %v603 = vand.u32 %v602, 4294901760
        %604 = vmatpush1.msra.mxu0 %v603
        %605 = vmatprep.subr.mxu0 0.0
        %606 = vmatpush1.msra.mxu0 0.0
        %607 = vmatprep.subr.mxu0 0.0
        %608 = vmatpush1.msra.mxu0 0.0
        %609 = vmatprep.subr.mxu0 0.0
        %610 = vmatpush1.msra.mxu0 0.0
        %611 = vmatprep.subr.mxu0 0.0
        %612 = vmatpush1.msra.mxu0 0.0
        %613 = vmatprep.subr.mxu0 0.0
        %614 = vmatpush1.msra.mxu0 0.0
        %615 = vmatprep.subr.mxu0 0.0
        %616 = vmatpush1.msra.mxu0 0.0
        %617 = vmatprep.subr.mxu0 0.0
        %618 = vmatpush1.msra.mxu0 0.0
        %619 = vmatprep.subr.mxu0 0.0
        %620 = vmatpush1.msra.mxu0 0.0
        %621 = vmatprep.subr.mxu0 0.0
        %622 = vmatpush1.msra.mxu0 0.0
        %623 = vmatprep.subr.mxu0 0.0
        %624 = vmatpush1.msra.mxu0 0.0
        %625 = vmatprep.subr.mxu0 0.0
        %626 = vmatpush1.msra.mxu0 0.0
        %627 = vmatprep.subr.mxu0 0.0
        %628 = vmatpush1.msra.mxu0 0.0
        %629 = vmatprep.subr.mxu0 0.0
        %630 = vmatpush1.msra.mxu0 0.0
        %631 = vmatprep.subr.mxu0 0.0
        %632 = vmatpush1.msra.mxu0 0.0
        %633 = vmatprep.subr.mxu0 0.0
        %634 = vmatpush1.msra.mxu0 0.0
        %635 = vmatprep.subr.mxu0 0.0
        %636 = vmatpush1.msra.mxu0 0.0
        %637 = vmatprep.mubr.f32.mxu0 0.0
        %v638 = vand.u32 %v218, 4294901760
        %639 = vmatmul.mubr.f32.gmra.mrb[0].mxu0 %v638
        %v640 = vpop.f32.mrb[0].mxu0
        %v641 = vadd.f32 %v340, %v640
        %v642 = vpop.f32.mrb[0].mxu0
        %643 = vmatprep.mubr.f32.mxu0 0.0
        %v644 = vand.u32 %v219, 4294901760
        %645 = vmatmul.mubr.f32.gmra.mrb[0].mxu0 %v644
        %v646 = vpop.f32.mrb[0].mxu0
        %v647 = vadd.f32 %v350, %v646
        %v648 = vpop.f32.mrb[0].mxu0
        %649 = vmatprep.mubr.f32.mxu0 0.0
        %v650 = vand.u32 %v220, 4294901760
        %651 = vmatmul.mubr.f32.gmra.mrb[0].mxu0 %v650
        %v652 = vpop.f32.mrb[0].mxu0
        %v653 = vadd.f32 %v360, %v652
        %v654 = vpop.f32.mrb[0].mxu0
        %655 = vmatprep.mubr.f32.mxu0 0.0
        %v656 = vand.u32 %v221, 4294901760
        %657 = vmatmul.mubr.f32.gmra.mrb[0].mxu0 %v656
        %v658 = vpop.f32.mrb[0].mxu0
        %v659 = vadd.f32 %v370, %v658
        %v660 = vpop.f32.mrb[0].mxu0
        %661 = vmatprep.mubr.f32.mxu0 0.0
        %v662 = vand.u32 %v222, 4294901760
        %663 = vmatmul.mubr.f32.gmra.mrb[0].mxu0 %v662
        %v664 = vpop.f32.mrb[0].mxu0
        %v665 = vadd.f32 %v380, %v664
        %v666 = vpop.f32.mrb[0].mxu0
        %667 = vmatprep.mubr.f32.mxu0 0.0
        %v668 = vand.u32 %v223, 4294901760
        %669 = vmatmul.mubr.f32.gmra.mrb[0].mxu0 %v668
        %v670 = vpop.f32.mrb[0].mxu0
        %v671 = vadd.f32 %v390, %v670
        %v672 = vpop.f32.mrb[0].mxu0
        %673 = vmatprep.mubr.f32.mxu0 0.0
        %v674 = vand.u32 %v224, 4294901760
        %675 = vmatmul.mubr.f32.gmra.mrb[0].mxu0 %v674
        %v676 = vpop.f32.mrb[0].mxu0
        %v677 = vadd.f32 %v400, %v676
        %v678 = vpop.f32.mrb[0].mxu0
        %679 = vmatprep.mubr.f32.mxu0 0.0
        %v680 = vand.u32 %v225, 4294901760
        %681 = vmatmul.mubr.f32.gmra.mrb[0].mxu0 %v680
        %v682 = vpop.f32.mrb[0].mxu0
        %v683 = vadd.f32 %v410, %v682
        %v684 = vpop.f32.mrb[0].mxu0
        %685 = vmatprep.mubr.f32.mxu0 0.0
        %v686 = vand.u32 %v226, 4294901760
        %687 = vmatmul.mubr.f32.gmra.mrb[0].mxu0 %v686
        %v688 = vpop.f32.mrb[0].mxu0
        %v689 = vadd.f32 %v420, %v688
        %v690 = vpop.f32.mrb[0].mxu0
        %691 = vmatprep.mubr.f32.mxu0 0.0
        %v692 = vand.u32 %v227, 4294901760
        %693 = vmatmul.mubr.f32.gmra.mrb[0].mxu0 %v692
        %v694 = vpop.f32.mrb[0].mxu0
        %v695 = vadd.f32 %v430, %v694
        %v696 = vpop.f32.mrb[0].mxu0
        %697 = vmatprep.mubr.f32.mxu0 0.0
        %v698 = vand.u32 %v228, 4294901760
        %699 = vmatmul.mubr.f32.gmra.mrb[0].mxu0 %v698
        %v700 = vpop.f32.mrb[0].mxu0
        %v701 = vadd.f32 %v440, %v700
        %v702 = vpop.f32.mrb[0].mxu0
        %703 = vmatprep.mubr.f32.mxu0 0.0
        %v704 = vand.u32 %v229, 4294901760
        %705 = vmatmul.mubr.f32.gmra.mrb[0].mxu0 %v704
        %v706 = vpop.f32.mrb[0].mxu0
        %v707 = vadd.f32 %v450, %v706
        %v708 = vpop.f32.mrb[0].mxu0
        %709 = vmatprep.mubr.f32.mxu0 0.0
        %v710 = vand.u32 %v230, 4294901760
        %711 = vmatmul.mubr.f32.gmra.mrb[0].mxu0 %v710
        %v712 = vpop.f32.mrb[0].mxu0
        %v713 = vadd.f32 %v460, %v712
        %v714 = vpop.f32.mrb[0].mxu0
        %715 = vmatprep.mubr.f32.mxu0 0.0
        %v716 = vand.u32 %v231, 4294901760
        %717 = vmatmul.mubr.f32.gmra.mrb[0].mxu0 %v716
        %v718 = vpop.f32.mrb[0].mxu0
        %v719 = vadd.f32 %v470, %v718
        %v720 = vpop.f32.mrb[0].mxu0
        %721 = vmatprep.mubr.f32.mxu0 0.0
        %v722 = vand.u32 %v232, 4294901760
        %723 = vmatmul.mubr.f32.gmra.mrb[0].mxu0 %v722
        %v724 = vpop.f32.mrb[0].mxu0
        %v725 = vadd.f32 %v480, %v724
        %v726 = vpop.f32.mrb[0].mxu0
        %727 = vmatprep.mubr.f32.mxu0 0.0
        %v728 = vand.u32 %v233, 4294901760
        %729 = vmatmul.mubr.f32.gmra.mrb[0].mxu0 %v728
        %v730 = vpop.f32.mrb[0].mxu0
        %v731 = vadd.f32 %v490, %v730
        %v732 = vpop.f32.mrb[0].mxu0
        %733 = vdwg.mxu0
        %734 = vmatprep.subr.mxu0 0.0
        %v735 = vand.u32 %v235, 4294901760
        %v736 = vsub.f32 %v235, %v735
        %737 = vmatpush1.msra.mxu0 %v736
        %738 = vmatprep.subr.mxu0 0.0
        %v739 = vand.u32 %v236, 4294901760
        %v740 = vsub.f32 %v236, %v739
        %741 = vmatpush1.msra.mxu0 %v740
        %742 = vmatprep.subr.mxu0 0.0
        %v743 = vand.u32 %v237, 4294901760
        %v744 = vsub.f32 %v237, %v743
        %745 = vmatpush1.msra.mxu0 %v744
        %746 = vmatprep.subr.mxu0 0.0
        %v747 = vand.u32 %v238, 4294901760
        %v748 = vsub.f32 %v238, %v747
        %749 = vmatpush1.msra.mxu0 %v748
        %750 = vmatprep.subr.mxu0 0.0
        %v751 = vand.u32 %v239, 4294901760
        %v752 = vsub.f32 %v239, %v751
        %753 = vmatpush1.msra.mxu0 %v752
        %754 = vmatprep.subr.mxu0 0.0
        %v755 = vand.u32 %v240, 4294901760
        %v756 = vsub.f32 %v240, %v755
        %757 = vmatpush1.msra.mxu0 %v756
        %758 = vmatprep.subr.mxu0 0.0
        %v759 = vand.u32 %v241, 4294901760
        %v760 = vsub.f32 %v241, %v759
        %761 = vmatpush1.msra.mxu0 %v760
        %762 = vmatprep.subr.mxu0 0.0
        %v763 = vand.u32 %v242, 4294901760
        %v764 = vsub.f32 %v242, %v763
        %765 = vmatpush1.msra.mxu0 %v764
        %766 = vmatprep.subr.mxu0 0.0
        %v767 = vand.u32 %v243, 4294901760
        %v768 = vsub.f32 %v243, %v767
        %769 = vmatpush1.msra.mxu0 %v768
        %770 = vmatprep.subr.mxu0 0.0
        %v771 = vand.u32 %v244, 4294901760
        %v772 = vsub.f32 %v244, %v771
        %773 = vmatpush1.msra.mxu0 %v772
        %774 = vmatprep.subr.mxu0 0.0
        %v775 = vand.u32 %v245, 4294901760
        %v776 = vsub.f32 %v245, %v775
        %777 = vmatpush1.msra.mxu0 %v776
        %778 = vmatprep.subr.mxu0 0.0
        %v779 = vand.u32 %v246, 4294901760
        %v780 = vsub.f32 %v246, %v779
        %781 = vmatpush1.msra.mxu0 %v780
        %782 = vmatprep.subr.mxu0 0.0
        %v783 = vand.u32 %v247, 4294901760
        %v784 = vsub.f32 %v247, %v783
        %785 = vmatpush1.msra.mxu0 %v784
        %786 = vmatprep.subr.mxu0 0.0
        %v787 = vand.u32 %v248, 4294901760
        %v788 = vsub.f32 %v248, %v787
        %789 = vmatpush1.msra.mxu0 %v788
        %790 = vmatprep.subr.mxu0 0.0
        %v791 = vand.u32 %v249, 4294901760
        %v792 = vsub.f32 %v249, %v791
        %793 = vmatpush1.msra.mxu0 %v792
        %794 = vmatprep.subr.mxu0 0.0
        %v795 = vand.u32 %v250, 4294901760
        %v796 = vsub.f32 %v250, %v795
        %797 = vmatpush1.msra.mxu0 %v796
        %798 = vmatprep.subr.mxu0 0.0
        %799 = vmatpush1.msra.mxu0 0.0
        %800 = vmatprep.subr.mxu0 0.0
        %801 = vmatpush1.msra.mxu0 0.0
        %802 = vmatprep.subr.mxu0 0.0
        %803 = vmatpush1.msra.mxu0 0.0
        %804 = vmatprep.subr.mxu0 0.0
        %805 = vmatpush1.msra.mxu0 0.0
        %806 = vmatprep.subr.mxu0 0.0
        %807 = vmatpush1.msra.mxu0 0.0
        %808 = vmatprep.subr.mxu0 0.0
        %809 = vmatpush1.msra.mxu0 0.0
        %810 = vmatprep.subr.mxu0 0.0
        %811 = vmatpush1.msra.mxu0 0.0
        %812 = vmatprep.subr.mxu0 0.0
        %813 = vmatpush1.msra.mxu0 0.0
        %814 = vmatprep.subr.mxu0 0.0
        %815 = vmatpush1.msra.mxu0 0.0
        %816 = vmatprep.subr.mxu0 0.0
        %817 = vmatpush1.msra.mxu0 0.0
        %818 = vmatprep.subr.mxu0 0.0
        %819 = vmatpush1.msra.mxu0 0.0
        %820 = vmatprep.subr.mxu0 0.0
        %821 = vmatpush1.msra.mxu0 0.0
        %822 = vmatprep.subr.mxu0 0.0
        %823 = vmatpush1.msra.mxu0 0.0
        %824 = vmatprep.subr.mxu0 0.0
        %825 = vmatpush1.msra.mxu0 0.0
        %826 = vmatprep.subr.mxu0 0.0
        %827 = vmatpush1.msra.mxu0 0.0
        %828 = vmatprep.subr.mxu0 0.0
        %829 = vmatpush1.msra.mxu0 0.0
        %830 = vmatprep.mubr.f32.mxu0 0.0
        %v831 = vand.u32 %v218, 4294901760
        %v832 = vsub.f32 %v218, %v831
        %833 = vmatmul.mubr.f32.gmra.mrb[0].mxu0 %v832
        %v834 = vpop.f32.mrb[0].mxu0
        %v835 = vadd.f32 %v641, %v834
        %v836 = vpop.f32.mrb[0].mxu0
        %837 = vmatprep.mubr.f32.mxu0 0.0
        %v838 = vand.u32 %v219, 4294901760
        %v839 = vsub.f32 %v219, %v838
        %840 = vmatmul.mubr.f32.gmra.mrb[0].mxu0 %v839
        %v841 = vpop.f32.mrb[0].mxu0
        %v842 = vadd.f32 %v647, %v841
        %v843 = vpop.f32.mrb[0].mxu0
        %844 = vmatprep.mubr.f32.mxu0 0.0
        %v845 = vand.u32 %v220, 4294901760
        %v846 = vsub.f32 %v220, %v845
        %847 = vmatmul.mubr.f32.gmra.mrb[0].mxu0 %v846
        %v848 = vpop.f32.mrb[0].mxu0
        %v849 = vadd.f32 %v653, %v848
        %v850 = vpop.f32.mrb[0].mxu0
        %851 = vmatprep.mubr.f32.mxu0 0.0
        %v852 = vand.u32 %v221, 4294901760
        %v853 = vsub.f32 %v221, %v852
        %854 = vmatmul.mubr.f32.gmra.mrb[0].mxu0 %v853
        %v855 = vpop.f32.mrb[0].mxu0
        %v856 = vadd.f32 %v659, %v855
        %v857 = vpop.f32.mrb[0].mxu0
        %858 = vmatprep.mubr.f32.mxu0 0.0
        %v859 = vand.u32 %v222, 4294901760
        %v860 = vsub.f32 %v222, %v859
        %861 = vmatmul.mubr.f32.gmra.mrb[0].mxu0 %v860
        %v862 = vpop.f32.mrb[0].mxu0
        %v863 = vadd.f32 %v665, %v862
        %v864 = vpop.f32.mrb[0].mxu0
        %865 = vmatprep.mubr.f32.mxu0 0.0
        %v866 = vand.u32 %v223, 4294901760
        %v867 = vsub.f32 %v223, %v866
        %868 = vmatmul.mubr.f32.gmra.mrb[0].mxu0 %v867
        %v869 = vpop.f32.mrb[0].mxu0
        %v870 = vadd.f32 %v671, %v869
        %v871 = vpop.f32.mrb[0].mxu0
        %872 = vmatprep.mubr.f32.mxu0 0.0
        %v873 = vand.u32 %v224, 4294901760
        %v874 = vsub.f32 %v224, %v873
        %875 = vmatmul.mubr.f32.gmra.mrb[0].mxu0 %v874
        %v876 = vpop.f32.mrb[0].mxu0
        %v877 = vadd.f32 %v677, %v876
        %v878 = vpop.f32.mrb[0].mxu0
        %879 = vmatprep.mubr.f32.mxu0 0.0
        %v880 = vand.u32 %v225, 4294901760
        %v881 = vsub.f32 %v225, %v880
        %882 = vmatmul.mubr.f32.gmra.mrb[0].mxu0 %v881
        %v883 = vpop.f32.mrb[0].mxu0
        %v884 = vadd.f32 %v683, %v883
        %v885 = vpop.f32.mrb[0].mxu0
        %886 = vmatprep.mubr.f32.mxu0 0.0
        %v887 = vand.u32 %v226, 4294901760
        %v888 = vsub.f32 %v226, %v887
        %889 = vmatmul.mubr.f32.gmra.mrb[0].mxu0 %v888
        %v890 = vpop.f32.mrb[0].mxu0
        %v891 = vadd.f32 %v689, %v890
        %v892 = vpop.f32.mrb[0].mxu0
        %893 = vmatprep.mubr.f32.mxu0 0.0
        %v894 = vand.u32 %v227, 4294901760
        %v895 = vsub.f32 %v227, %v894
        %896 = vmatmul.mubr.f32.gmra.mrb[0].mxu0 %v895
        %v897 = vpop.f32.mrb[0].mxu0
        %v898 = vadd.f32 %v695, %v897
        %v899 = vpop.f32.mrb[0].mxu0
        %900 = vmatprep.mubr.f32.mxu0 0.0
        %v901 = vand.u32 %v228, 4294901760
        %v902 = vsub.f32 %v228, %v901
        %903 = vmatmul.mubr.f32.gmra.mrb[0].mxu0 %v902
        %v904 = vpop.f32.mrb[0].mxu0
        %v905 = vadd.f32 %v701, %v904
        %v906 = vpop.f32.mrb[0].mxu0
        %907 = vmatprep.mubr.f32.mxu0 0.0
        %v908 = vand.u32 %v229, 4294901760
        %v909 = vsub.f32 %v229, %v908
        %910 = vmatmul.mubr.f32.gmra.mrb[0].mxu0 %v909
        %v911 = vpop.f32.mrb[0].mxu0
        %v912 = vadd.f32 %v707, %v911
        %v913 = vpop.f32.mrb[0].mxu0
        %914 = vmatprep.mubr.f32.mxu0 0.0
        %v915 = vand.u32 %v230, 4294901760
        %v916 = vsub.f32 %v230, %v915
        %917 = vmatmul.mubr.f32.gmra.mrb[0].mxu0 %v916
        %v918 = vpop.f32.mrb[0].mxu0
        %v919 = vadd.f32 %v713, %v918
        %v920 = vpop.f32.mrb[0].mxu0
        %921 = vmatprep.mubr.f32.mxu0 0.0
        %v922 = vand.u32 %v231, 4294901760
        %v923 = vsub.f32 %v231, %v922
        %924 = vmatmul.mubr.f32.gmra.mrb[0].mxu0 %v923
        %v925 = vpop.f32.mrb[0].mxu0
        %v926 = vadd.f32 %v719, %v925
        %v927 = vpop.f32.mrb[0].mxu0
        %928 = vmatprep.mubr.f32.mxu0 0.0
        %v929 = vand.u32 %v232, 4294901760
        %v930 = vsub.f32 %v232, %v929
        %931 = vmatmul.mubr.f32.gmra.mrb[0].mxu0 %v930
        %v932 = vpop.f32.mrb[0].mxu0
        %v933 = vadd.f32 %v725, %v932
        %v934 = vpop.f32.mrb[0].mxu0
        %935 = vmatprep.mubr.f32.mxu0 0.0
        %v936 = vand.u32 %v233, 4294901760
        %v937 = vsub.f32 %v233, %v936
        %938 = vmatmul.mubr.f32.gmra.mrb[0].mxu0 %v937
        %v939 = vpop.f32.mrb[0].mxu0
        %v940 = vadd.f32 %v731, %v939
        %v941 = vpop.f32.mrb[0].mxu0
        %942 = vdwg.mxu0
        %943 = vmatprep.subr.mxu0 0.0
        %v944 = vand.u32 %v235, 4294901760
        %945 = vmatpush1.msra.mxu0 %v944
        %946 = vmatprep.subr.mxu0 0.0
        %v947 = vand.u32 %v236, 4294901760
        %948 = vmatpush1.msra.mxu0 %v947
        %949 = vmatprep.subr.mxu0 0.0
        %v950 = vand.u32 %v237, 4294901760
        %951 = vmatpush1.msra.mxu0 %v950
        %952 = vmatprep.subr.mxu0 0.0
        %v953 = vand.u32 %v238, 4294901760
        %954 = vmatpush1.msra.mxu0 %v953
        %955 = vmatprep.subr.mxu0 0.0
        %v956 = vand.u32 %v239, 4294901760
        %957 = vmatpush1.msra.mxu0 %v956
        %958 = vmatprep.subr.mxu0 0.0
        %v959 = vand.u32 %v240, 4294901760
        %960 = vmatpush1.msra.mxu0 %v959
        %961 = vmatprep.subr.mxu0 0.0
        %v962 = vand.u32 %v241, 4294901760
        %963 = vmatpush1.msra.mxu0 %v962
        %964 = vmatprep.subr.mxu0 0.0
        %v965 = vand.u32 %v242, 4294901760
        %966 = vmatpush1.msra.mxu0 %v965
        %967 = vmatprep.subr.mxu0 0.0
        %v968 = vand.u32 %v243, 4294901760
        %969 = vmatpush1.msra.mxu0 %v968
        %970 = vmatprep.subr.mxu0 0.0
        %v971 = vand.u32 %v244, 4294901760
        %972 = vmatpush1.msra.mxu0 %v971
        %973 = vmatprep.subr.mxu0 0.0
        %v974 = vand.u32 %v245, 4294901760
        %975 = vmatpush1.msra.mxu0 %v974
        %976 = vmatprep.subr.mxu0 0.0
        %v977 = vand.u32 %v246, 4294901760
        %978 = vmatpush1.msra.mxu0 %v977
        %979 = vmatprep.subr.mxu0 0.0
        %v980 = vand.u32 %v247, 4294901760
        %981 = vmatpush1.msra.mxu0 %v980
        %982 = vmatprep.subr.mxu0 0.0
        %v983 = vand.u32 %v248, 4294901760
        %984 = vmatpush1.msra.mxu0 %v983
        %985 = vmatprep.subr.mxu0 0.0
        %v986 = vand.u32 %v249, 4294901760
        %987 = vmatpush1.msra.mxu0 %v986
        %988 = vmatprep.subr.mxu0 0.0
        %v989 = vand.u32 %v250, 4294901760
        %990 = vmatpush1.msra.mxu0 %v989
        %991 = vmatprep.subr.mxu0 0.0
        %992 = vmatpush1.msra.mxu0 0.0
        %993 = vmatprep.subr.mxu0 0.0
        %994 = vmatpush1.msra.mxu0 0.0
        %995 = vmatprep.subr.mxu0 0.0
        %996 = vmatpush1.msra.mxu0 0.0
        %997 = vmatprep.subr.mxu0 0.0
        %998 = vmatpush1.msra.mxu0 0.0
        %999 = vmatprep.subr.mxu0 0.0
        %1000 = vmatpush1.msra.mxu0 0.0
        %1001 = vmatprep.subr.mxu0 0.0
        %1002 = vmatpush1.msra.mxu0 0.0
        %1003 = vmatprep.subr.mxu0 0.0
        %1004 = vmatpush1.msra.mxu0 0.0
        %1005 = vmatprep.subr.mxu0 0.0
        %1006 = vmatpush1.msra.mxu0 0.0
        %1007 = vmatprep.subr.mxu0 0.0
        %1008 = vmatpush1.msra.mxu0 0.0
        %1009 = vmatprep.subr.mxu0 0.0
        %1010 = vmatpush1.msra.mxu0 0.0
        %1011 = vmatprep.subr.mxu0 0.0
        %1012 = vmatpush1.msra.mxu0 0.0
        %1013 = vmatprep.subr.mxu0 0.0
        %1014 = vmatpush1.msra.mxu0 0.0
        %1015 = vmatprep.subr.mxu0 0.0
        %1016 = vmatpush1.msra.mxu0 0.0
        %1017 = vmatprep.subr.mxu0 0.0
        %1018 = vmatpush1.msra.mxu0 0.0
        %1019 = vmatprep.subr.mxu0 0.0
        %1020 = vmatpush1.msra.mxu0 0.0
        %1021 = vmatprep.subr.mxu0 0.0
        %1022 = vmatpush1.msra.mxu0 0.0
        %1023 = vmatprep.mubr.f32.mxu0 0.0
        %v1024 = vand.u32 %v218, 4294901760
        %v1025 = vsub.f32 %v218, %v1024
        %v1026 = vand.u32 %v1025, 4294901760
        %1027 = vmatmul.mubr.f32.gmra.mrb[0].mxu0 %v1026
        %v1028 = vpop.f32.mrb[0].mxu0
        %v1029 = vadd.f32 %v835, %v1028
        %v1030 = vpop.f32.mrb[0].mxu0
        %1031 = vmatprep.mubr.f32.mxu0 0.0
        %v1032 = vand.u32 %v219, 4294901760
        %v1033 = vsub.f32 %v219, %v1032
        %v1034 = vand.u32 %v1033, 4294901760
        %1035 = vmatmul.mubr.f32.gmra.mrb[0].mxu0 %v1034
        %v1036 = vpop.f32.mrb[0].mxu0
        %v1037 = vadd.f32 %v842, %v1036
        %v1038 = vpop.f32.mrb[0].mxu0
        %1039 = vmatprep.mubr.f32.mxu0 0.0
        %v1040 = vand.u32 %v220, 4294901760
        %v1041 = vsub.f32 %v220, %v1040
        %v1042 = vand.u32 %v1041, 4294901760
        %1043 = vmatmul.mubr.f32.gmra.mrb[0].mxu0 %v1042
        %v1044 = vpop.f32.mrb[0].mxu0
        %v1045 = vadd.f32 %v849, %v1044
        %v1046 = vpop.f32.mrb[0].mxu0
        %1047 = vmatprep.mubr.f32.mxu0 0.0
        %v1048 = vand.u32 %v221, 4294901760
        %v1049 = vsub.f32 %v221, %v1048
        %v1050 = vand.u32 %v1049, 4294901760
        %1051 = vmatmul.mubr.f32.gmra.mrb[0].mxu0 %v1050
        %v1052 = vpop.f32.mrb[0].mxu0
        %v1053 = vadd.f32 %v856, %v1052
        %v1054 = vpop.f32.mrb[0].mxu0
        %1055 = vmatprep.mubr.f32.mxu0 0.0
        %v1056 = vand.u32 %v222, 4294901760
        %v1057 = vsub.f32 %v222, %v1056
        %v1058 = vand.u32 %v1057, 4294901760
        %1059 = vmatmul.mubr.f32.gmra.mrb[0].mxu0 %v1058
        %v1060 = vpop.f32.mrb[0].mxu0
        %v1061 = vadd.f32 %v863, %v1060
        %v1062 = vpop.f32.mrb[0].mxu0
        %1063 = vmatprep.mubr.f32.mxu0 0.0
        %v1064 = vand.u32 %v223, 4294901760
        %v1065 = vsub.f32 %v223, %v1064
        %v1066 = vand.u32 %v1065, 4294901760
        %1067 = vmatmul.mubr.f32.gmra.mrb[0].mxu0 %v1066
        %v1068 = vpop.f32.mrb[0].mxu0
        %v1069 = vadd.f32 %v870, %v1068
        %v1070 = vpop.f32.mrb[0].mxu0
        %1071 = vmatprep.mubr.f32.mxu0 0.0
        %v1072 = vand.u32 %v224, 4294901760
        %v1073 = vsub.f32 %v224, %v1072
        %v1074 = vand.u32 %v1073, 4294901760
        %1075 = vmatmul.mubr.f32.gmra.mrb[0].mxu0 %v1074
        %v1076 = vpop.f32.mrb[0].mxu0
        %v1077 = vadd.f32 %v877, %v1076
        %v1078 = vpop.f32.mrb[0].mxu0
        %1079 = vmatprep.mubr.f32.mxu0 0.0
        %v1080 = vand.u32 %v225, 4294901760
        %v1081 = vsub.f32 %v225, %v1080
        %v1082 = vand.u32 %v1081, 4294901760
        %1083 = vmatmul.mubr.f32.gmra.mrb[0].mxu0 %v1082
        %v1084 = vpop.f32.mrb[0].mxu0
        %v1085 = vadd.f32 %v884, %v1084
        %v1086 = vpop.f32.mrb[0].mxu0
        %1087 = vmatprep.mubr.f32.mxu0 0.0
        %v1088 = vand.u32 %v226, 4294901760
        %v1089 = vsub.f32 %v226, %v1088
        %v1090 = vand.u32 %v1089, 4294901760
        %1091 = vmatmul.mubr.f32.gmra.mrb[0].mxu0 %v1090
        %v1092 = vpop.f32.mrb[0].mxu0
        %v1093 = vadd.f32 %v891, %v1092
        %v1094 = vpop.f32.mrb[0].mxu0
        %1095 = vmatprep.mubr.f32.mxu0 0.0
        %v1096 = vand.u32 %v227, 4294901760
        %v1097 = vsub.f32 %v227, %v1096
        %v1098 = vand.u32 %v1097, 4294901760
        %1099 = vmatmul.mubr.f32.gmra.mrb[0].mxu0 %v1098
        %v1100 = vpop.f32.mrb[0].mxu0
        %v1101 = vadd.f32 %v898, %v1100
        %v1102 = vpop.f32.mrb[0].mxu0
        %1103 = vmatprep.mubr.f32.mxu0 0.0
        %v1104 = vand.u32 %v228, 4294901760
        %v1105 = vsub.f32 %v228, %v1104
        %v1106 = vand.u32 %v1105, 4294901760
        %1107 = vmatmul.mubr.f32.gmra.mrb[0].mxu0 %v1106
        %v1108 = vpop.f32.mrb[0].mxu0
        %v1109 = vadd.f32 %v905, %v1108
        %v1110 = vpop.f32.mrb[0].mxu0
        %1111 = vmatprep.mubr.f32.mxu0 0.0
        %v1112 = vand.u32 %v229, 4294901760
        %v1113 = vsub.f32 %v229, %v1112
        %v1114 = vand.u32 %v1113, 4294901760
        %1115 = vmatmul.mubr.f32.gmra.mrb[0].mxu0 %v1114
        %v1116 = vpop.f32.mrb[0].mxu0
        %v1117 = vadd.f32 %v912, %v1116
        %v1118 = vpop.f32.mrb[0].mxu0
        %1119 = vmatprep.mubr.f32.mxu0 0.0
        %v1120 = vand.u32 %v230, 4294901760
        %v1121 = vsub.f32 %v230, %v1120
        %v1122 = vand.u32 %v1121, 4294901760
        %1123 = vmatmul.mubr.f32.gmra.mrb[0].mxu0 %v1122
        %v1124 = vpop.f32.mrb[0].mxu0
        %v1125 = vadd.f32 %v919, %v1124
        %v1126 = vpop.f32.mrb[0].mxu0
        %1127 = vmatprep.mubr.f32.mxu0 0.0
        %v1128 = vand.u32 %v231, 4294901760
        %v1129 = vsub.f32 %v231, %v1128
        %v1130 = vand.u32 %v1129, 4294901760
        %1131 = vmatmul.mubr.f32.gmra.mrb[0].mxu0 %v1130
        %v1132 = vpop.f32.mrb[0].mxu0
        %v1133 = vadd.f32 %v926, %v1132
        %v1134 = vpop.f32.mrb[0].mxu0
        %1135 = vmatprep.mubr.f32.mxu0 0.0
        %v1136 = vand.u32 %v232, 4294901760
        %v1137 = vsub.f32 %v232, %v1136
        %v1138 = vand.u32 %v1137, 4294901760
        %1139 = vmatmul.mubr.f32.gmra.mrb[0].mxu0 %v1138
        %v1140 = vpop.f32.mrb[0].mxu0
        %v1141 = vadd.f32 %v933, %v1140
        %v1142 = vpop.f32.mrb[0].mxu0
        %1143 = vmatprep.mubr.f32.mxu0 0.0
        %v1144 = vand.u32 %v233, 4294901760
        %v1145 = vsub.f32 %v233, %v1144
        %v1146 = vand.u32 %v1145, 4294901760
        %1147 = vmatmul.mubr.f32.gmra.mrb[0].mxu0 %v1146
        %v1148 = vpop.f32.mrb[0].mxu0
        %v1149 = vadd.f32 %v940, %v1148
        %v1150 = vpop.f32.mrb[0].mxu0
        %1151 = vdwg.mxu0
        %1152 = vmatprep.subr.mxu0 0.0
        %v1153 = vand.u32 %v235, 4294901760
        %v1154 = vsub.f32 %v235, %v1153
        %v1155 = vand.u32 %v1154, 4294901760
        %1156 = vmatpush1.msra.mxu0 %v1155
        %1157 = vmatprep.subr.mxu0 0.0
        %v1158 = vand.u32 %v236, 4294901760
        %v1159 = vsub.f32 %v236, %v1158
        %v1160 = vand.u32 %v1159, 4294901760
        %1161 = vmatpush1.msra.mxu0 %v1160
        %1162 = vmatprep.subr.mxu0 0.0
        %v1163 = vand.u32 %v237, 4294901760
        %v1164 = vsub.f32 %v237, %v1163
        %v1165 = vand.u32 %v1164, 4294901760
        %1166 = vmatpush1.msra.mxu0 %v1165
        %1167 = vmatprep.subr.mxu0 0.0
        %v1168 = vand.u32 %v238, 4294901760
        %v1169 = vsub.f32 %v238, %v1168
        %v1170 = vand.u32 %v1169, 4294901760
        %1171 = vmatpush1.msra.mxu0 %v1170
        %1172 = vmatprep.subr.mxu0 0.0
        %v1173 = vand.u32 %v239, 4294901760
        %v1174 = vsub.f32 %v239, %v1173
        %v1175 = vand.u32 %v1174, 4294901760
        %1176 = vmatpush1.msra.mxu0 %v1175
        %1177 = vmatprep.subr.mxu0 0.0
        %v1178 = vand.u32 %v240, 4294901760
        %v1179 = vsub.f32 %v240, %v1178
        %v1180 = vand.u32 %v1179, 4294901760
        %1181 = vmatpush1.msra.mxu0 %v1180
        %1182 = vmatprep.subr.mxu0 0.0
        %v1183 = vand.u32 %v241, 4294901760
        %v1184 = vsub.f32 %v241, %v1183
        %v1185 = vand.u32 %v1184, 4294901760
        %1186 = vmatpush1.msra.mxu0 %v1185
        %1187 = vmatprep.subr.mxu0 0.0
        %v1188 = vand.u32 %v242, 4294901760
        %v1189 = vsub.f32 %v242, %v1188
        %v1190 = vand.u32 %v1189, 4294901760
        %1191 = vmatpush1.msra.mxu0 %v1190
        %1192 = vmatprep.subr.mxu0 0.0
        %v1193 = vand.u32 %v243, 4294901760
        %v1194 = vsub.f32 %v243, %v1193
        %v1195 = vand.u32 %v1194, 4294901760
        %1196 = vmatpush1.msra.mxu0 %v1195
        %1197 = vmatprep.subr.mxu0 0.0
        %v1198 = vand.u32 %v244, 4294901760
        %v1199 = vsub.f32 %v244, %v1198
        %v1200 = vand.u32 %v1199, 4294901760
        %1201 = vmatpush1.msra.mxu0 %v1200
        %1202 = vmatprep.subr.mxu0 0.0
        %v1203 = vand.u32 %v245, 4294901760
        %v1204 = vsub.f32 %v245, %v1203
        %v1205 = vand.u32 %v1204, 4294901760
        %1206 = vmatpush1.msra.mxu0 %v1205
        %1207 = vmatprep.subr.mxu0 0.0
        %v1208 = vand.u32 %v246, 4294901760
        %v1209 = vsub.f32 %v246, %v1208
        %v1210 = vand.u32 %v1209, 4294901760
        %1211 = vmatpush1.msra.mxu0 %v1210
        %1212 = vmatprep.subr.mxu0 0.0
        %v1213 = vand.u32 %v247, 4294901760
        %v1214 = vsub.f32 %v247, %v1213
        %v1215 = vand.u32 %v1214, 4294901760
        %1216 = vmatpush1.msra.mxu0 %v1215
        %1217 = vmatprep.subr.mxu0 0.0
        %v1218 = vand.u32 %v248, 4294901760
        %v1219 = vsub.f32 %v248, %v1218
        %v1220 = vand.u32 %v1219, 4294901760
        %1221 = vmatpush1.msra.mxu0 %v1220
        %1222 = vmatprep.subr.mxu0 0.0
        %v1223 = vand.u32 %v249, 4294901760
        %v1224 = vsub.f32 %v249, %v1223
        %v1225 = vand.u32 %v1224, 4294901760
        %1226 = vmatpush1.msra.mxu0 %v1225
        %1227 = vmatprep.subr.mxu0 0.0
        %v1228 = vand.u32 %v250, 4294901760
        %v1229 = vsub.f32 %v250, %v1228
        %v1230 = vand.u32 %v1229, 4294901760
        %1231 = vmatpush1.msra.mxu0 %v1230
        %1232 = vmatprep.subr.mxu0 0.0
        %1233 = vmatpush1.msra.mxu0 0.0
        %1234 = vmatprep.subr.mxu0 0.0
        %1235 = vmatpush1.msra.mxu0 0.0
        %1236 = vmatprep.subr.mxu0 0.0
        %1237 = vmatpush1.msra.mxu0 0.0
        %1238 = vmatprep.subr.mxu0 0.0
        %1239 = vmatpush1.msra.mxu0 0.0
        %1240 = vmatprep.subr.mxu0 0.0
        %1241 = vmatpush1.msra.mxu0 0.0
        %1242 = vmatprep.subr.mxu0 0.0
        %1243 = vmatpush1.msra.mxu0 0.0
        %1244 = vmatprep.subr.mxu0 0.0
        %1245 = vmatpush1.msra.mxu0 0.0
        %1246 = vmatprep.subr.mxu0 0.0
        %1247 = vmatpush1.msra.mxu0 0.0
        %1248 = vmatprep.subr.mxu0 0.0
        %1249 = vmatpush1.msra.mxu0 0.0
        %1250 = vmatprep.subr.mxu0 0.0
        %1251 = vmatpush1.msra.mxu0 0.0
        %1252 = vmatprep.subr.mxu0 0.0
        %1253 = vmatpush1.msra.mxu0 0.0
        %1254 = vmatprep.subr.mxu0 0.0
        %1255 = vmatpush1.msra.mxu0 0.0
        %1256 = vmatprep.subr.mxu0 0.0
        %1257 = vmatpush1.msra.mxu0 0.0
        %1258 = vmatprep.subr.mxu0 0.0
        %1259 = vmatpush1.msra.mxu0 0.0
        %1260 = vmatprep.subr.mxu0 0.0
        %1261 = vmatpush1.msra.mxu0 0.0
        %1262 = vmatprep.subr.mxu0 0.0
        %1263 = vmatpush1.msra.mxu0 0.0
        %1264 = vmatprep.mubr.f32.mxu0 0.0
        %v1265 = vand.u32 %v218, 4294901760
        %1266 = vmatmul.mubr.f32.gmra.mrb[0].mxu0 %v1265
        %v1267 = vpop.f32.mrb[0].mxu0
        %v1268 = vadd.f32 %v1029, %v1267
        %v1269 = vpop.f32.mrb[0].mxu0
        %1270 = vmatprep.mubr.f32.mxu0 0.0
        %v1271 = vand.u32 %v219, 4294901760
        %1272 = vmatmul.mubr.f32.gmra.mrb[0].mxu0 %v1271
        %v1273 = vpop.f32.mrb[0].mxu0
        %v1274 = vadd.f32 %v1037, %v1273
        %v1275 = vpop.f32.mrb[0].mxu0
        %1276 = vmatprep.mubr.f32.mxu0 0.0
        %v1277 = vand.u32 %v220, 4294901760
        %1278 = vmatmul.mubr.f32.gmra.mrb[0].mxu0 %v1277
        %v1279 = vpop.f32.mrb[0].mxu0
        %v1280 = vadd.f32 %v1045, %v1279
        %v1281 = vpop.f32.mrb[0].mxu0
        %1282 = vmatprep.mubr.f32.mxu0 0.0
        %v1283 = vand.u32 %v221, 4294901760
        %1284 = vmatmul.mubr.f32.gmra.mrb[0].mxu0 %v1283
        %v1285 = vpop.f32.mrb[0].mxu0
        %v1286 = vadd.f32 %v1053, %v1285
        %v1287 = vpop.f32.mrb[0].mxu0
        %1288 = vmatprep.mubr.f32.mxu0 0.0
        %v1289 = vand.u32 %v222, 4294901760
        %1290 = vmatmul.mubr.f32.gmra.mrb[0].mxu0 %v1289
        %v1291 = vpop.f32.mrb[0].mxu0
        %v1292 = vadd.f32 %v1061, %v1291
        %v1293 = vpop.f32.mrb[0].mxu0
        %1294 = vmatprep.mubr.f32.mxu0 0.0
        %v1295 = vand.u32 %v223, 4294901760
        %1296 = vmatmul.mubr.f32.gmra.mrb[0].mxu0 %v1295
        %v1297 = vpop.f32.mrb[0].mxu0
        %v1298 = vadd.f32 %v1069, %v1297
        %v1299 = vpop.f32.mrb[0].mxu0
        %1300 = vmatprep.mubr.f32.mxu0 0.0
        %v1301 = vand.u32 %v224, 4294901760
        %1302 = vmatmul.mubr.f32.gmra.mrb[0].mxu0 %v1301
        %v1303 = vpop.f32.mrb[0].mxu0
        %v1304 = vadd.f32 %v1077, %v1303
        %v1305 = vpop.f32.mrb[0].mxu0
        %1306 = vmatprep.mubr.f32.mxu0 0.0
        %v1307 = vand.u32 %v225, 4294901760
        %1308 = vmatmul.mubr.f32.gmra.mrb[0].mxu0 %v1307
        %v1309 = vpop.f32.mrb[0].mxu0
        %v1310 = vadd.f32 %v1085, %v1309
        %v1311 = vpop.f32.mrb[0].mxu0
        %1312 = vmatprep.mubr.f32.mxu0 0.0
        %v1313 = vand.u32 %v226, 4294901760
        %1314 = vmatmul.mubr.f32.gmra.mrb[0].mxu0 %v1313
        %v1315 = vpop.f32.mrb[0].mxu0
        %v1316 = vadd.f32 %v1093, %v1315
        %v1317 = vpop.f32.mrb[0].mxu0
        %1318 = vmatprep.mubr.f32.mxu0 0.0
        %v1319 = vand.u32 %v227, 4294901760
        %1320 = vmatmul.mubr.f32.gmra.mrb[0].mxu0 %v1319
        %v1321 = vpop.f32.mrb[0].mxu0
        %v1322 = vadd.f32 %v1101, %v1321
        %v1323 = vpop.f32.mrb[0].mxu0
        %1324 = vmatprep.mubr.f32.mxu0 0.0
        %v1325 = vand.u32 %v228, 4294901760
        %1326 = vmatmul.mubr.f32.gmra.mrb[0].mxu0 %v1325
        %v1327 = vpop.f32.mrb[0].mxu0
        %v1328 = vadd.f32 %v1109, %v1327
        %v1329 = vpop.f32.mrb[0].mxu0
        %1330 = vmatprep.mubr.f32.mxu0 0.0
        %v1331 = vand.u32 %v229, 4294901760
        %1332 = vmatmul.mubr.f32.gmra.mrb[0].mxu0 %v1331
        %v1333 = vpop.f32.mrb[0].mxu0
        %v1334 = vadd.f32 %v1117, %v1333
        %v1335 = vpop.f32.mrb[0].mxu0
        %1336 = vmatprep.mubr.f32.mxu0 0.0
        %v1337 = vand.u32 %v230, 4294901760
        %1338 = vmatmul.mubr.f32.gmra.mrb[0].mxu0 %v1337
        %v1339 = vpop.f32.mrb[0].mxu0
        %v1340 = vadd.f32 %v1125, %v1339
        %v1341 = vpop.f32.mrb[0].mxu0
        %1342 = vmatprep.mubr.f32.mxu0 0.0
        %v1343 = vand.u32 %v231, 4294901760
        %1344 = vmatmul.mubr.f32.gmra.mrb[0].mxu0 %v1343
        %v1345 = vpop.f32.mrb[0].mxu0
        %v1346 = vadd.f32 %v1133, %v1345
        %v1347 = vpop.f32.mrb[0].mxu0
        %1348 = vmatprep.mubr.f32.mxu0 0.0
        %v1349 = vand.u32 %v232, 4294901760
        %1350 = vmatmul.mubr.f32.gmra.mrb[0].mxu0 %v1349
        %v1351 = vpop.f32.mrb[0].mxu0
        %v1352 = vadd.f32 %v1141, %v1351
        %v1353 = vpop.f32.mrb[0].mxu0
        %1354 = vmatprep.mubr.f32.mxu0 0.0
        %v1355 = vand.u32 %v233, 4294901760
        %1356 = vmatmul.mubr.f32.gmra.mrb[0].mxu0 %v1355
        %v1357 = vpop.f32.mrb[0].mxu0
        %v1358 = vadd.f32 %v1149, %v1357
        %v1359 = vpop.f32.mrb[0].mxu0
        %1360 = vdwg.mxu0
        %1361 = vmatprep.subr.mxu0 0.0
        %v1362 = vand.u32 %v235, 4294901760
        %1363 = vmatpush1.msra.mxu0 %v1362
        %1364 = vmatprep.subr.mxu0 0.0
        %v1365 = vand.u32 %v236, 4294901760
        %1366 = vmatpush1.msra.mxu0 %v1365
        %1367 = vmatprep.subr.mxu0 0.0
        %v1368 = vand.u32 %v237, 4294901760
        %1369 = vmatpush1.msra.mxu0 %v1368
        %1370 = vmatprep.subr.mxu0 0.0
        %v1371 = vand.u32 %v238, 4294901760
        %1372 = vmatpush1.msra.mxu0 %v1371
        %1373 = vmatprep.subr.mxu0 0.0
        %v1374 = vand.u32 %v239, 4294901760
        %1375 = vmatpush1.msra.mxu0 %v1374
        %1376 = vmatprep.subr.mxu0 0.0
        %v1377 = vand.u32 %v240, 4294901760
        %1378 = vmatpush1.msra.mxu0 %v1377
        %1379 = vmatprep.subr.mxu0 0.0
        %v1380 = vand.u32 %v241, 4294901760
        %1381 = vmatpush1.msra.mxu0 %v1380
        %1382 = vmatprep.subr.mxu0 0.0
        %v1383 = vand.u32 %v242, 4294901760
        %1384 = vmatpush1.msra.mxu0 %v1383
        %1385 = vmatprep.subr.mxu0 0.0
        %v1386 = vand.u32 %v243, 4294901760
        %1387 = vmatpush1.msra.mxu0 %v1386
        %1388 = vmatprep.subr.mxu0 0.0
        %v1389 = vand.u32 %v244, 4294901760
        %1390 = vmatpush1.msra.mxu0 %v1389
        %1391 = vmatprep.subr.mxu0 0.0
        %v1392 = vand.u32 %v245, 4294901760
        %1393 = vmatpush1.msra.mxu0 %v1392
        %1394 = vmatprep.subr.mxu0 0.0
        %v1395 = vand.u32 %v246, 4294901760
        %1396 = vmatpush1.msra.mxu0 %v1395
        %1397 = vmatprep.subr.mxu0 0.0
        %v1398 = vand.u32 %v247, 4294901760
        %1399 = vmatpush1.msra.mxu0 %v1398
        %1400 = vmatprep.subr.mxu0 0.0
        %v1401 = vand.u32 %v248, 4294901760
        %1402 = vmatpush1.msra.mxu0 %v1401
        %1403 = vmatprep.subr.mxu0 0.0
        %v1404 = vand.u32 %v249, 4294901760
        %1405 = vmatpush1.msra.mxu0 %v1404
        %1406 = vmatprep.subr.mxu0 0.0
        %v1407 = vand.u32 %v250, 4294901760
        %1408 = vmatpush1.msra.mxu0 %v1407
        %1409 = vmatprep.subr.mxu0 0.0
        %1410 = vmatpush1.msra.mxu0 0.0
        %1411 = vmatprep.subr.mxu0 0.0
        %1412 = vmatpush1.msra.mxu0 0.0
        %1413 = vmatprep.subr.mxu0 0.0
        %1414 = vmatpush1.msra.mxu0 0.0
        %1415 = vmatprep.subr.mxu0 0.0
        %1416 = vmatpush1.msra.mxu0 0.0
        %1417 = vmatprep.subr.mxu0 0.0
        %1418 = vmatpush1.msra.mxu0 0.0
        %1419 = vmatprep.subr.mxu0 0.0
        %1420 = vmatpush1.msra.mxu0 0.0
        %1421 = vmatprep.subr.mxu0 0.0
        %1422 = vmatpush1.msra.mxu0 0.0
        %1423 = vmatprep.subr.mxu0 0.0
        %1424 = vmatpush1.msra.mxu0 0.0
        %1425 = vmatprep.subr.mxu0 0.0
        %1426 = vmatpush1.msra.mxu0 0.0
        %1427 = vmatprep.subr.mxu0 0.0
        %1428 = vmatpush1.msra.mxu0 0.0
        %1429 = vmatprep.subr.mxu0 0.0
        %1430 = vmatpush1.msra.mxu0 0.0
        %1431 = vmatprep.subr.mxu0 0.0
        %1432 = vmatpush1.msra.mxu0 0.0
        %1433 = vmatprep.subr.mxu0 0.0
        %1434 = vmatpush1.msra.mxu0 0.0
        %1435 = vmatprep.subr.mxu0 0.0
        %1436 = vmatpush1.msra.mxu0 0.0
        %1437 = vmatprep.subr.mxu0 0.0
        %1438 = vmatpush1.msra.mxu0 0.0
        %1439 = vmatprep.subr.mxu0 0.0
        %1440 = vmatpush1.msra.mxu0 0.0
        %1441 = vmatprep.mubr.f32.mxu0 0.0
        %v1442 = vand.u32 %v218, 4294901760
        %1443 = vmatmul.mubr.f32.gmra.mrb[0].mxu0 %v1442
        %v1444 = vpop.f32.mrb[0].mxu0
        %v1445 = vadd.f32 %v1268, %v1444
        %v1446 = vpop.f32.mrb[0].mxu0
        %1447 = vmatprep.mubr.f32.mxu0 0.0
        %v1448 = vand.u32 %v219, 4294901760
        %1449 = vmatmul.mubr.f32.gmra.mrb[0].mxu0 %v1448
        %v1450 = vpop.f32.mrb[0].mxu0
        %v1451 = vadd.f32 %v1274, %v1450
        %v1452 = vpop.f32.mrb[0].mxu0
        %1453 = vmatprep.mubr.f32.mxu0 0.0
        %v1454 = vand.u32 %v220, 4294901760
        %1455 = vmatmul.mubr.f32.gmra.mrb[0].mxu0 %v1454
        %v1456 = vpop.f32.mrb[0].mxu0
        %v1457 = vadd.f32 %v1280, %v1456
        %v1458 = vpop.f32.mrb[0].mxu0
        %1459 = vmatprep.mubr.f32.mxu0 0.0
        %v1460 = vand.u32 %v221, 4294901760
        %1461 = vmatmul.mubr.f32.gmra.mrb[0].mxu0 %v1460
        %v1462 = vpop.f32.mrb[0].mxu0
        %v1463 = vadd.f32 %v1286, %v1462
        %v1464 = vpop.f32.mrb[0].mxu0
        %1465 = vmatprep.mubr.f32.mxu0 0.0
        %v1466 = vand.u32 %v222, 4294901760
        %1467 = vmatmul.mubr.f32.gmra.mrb[0].mxu0 %v1466
        %v1468 = vpop.f32.mrb[0].mxu0
        %v1469 = vadd.f32 %v1292, %v1468
        %v1470 = vpop.f32.mrb[0].mxu0
        %1471 = vmatprep.mubr.f32.mxu0 0.0
        %v1472 = vand.u32 %v223, 4294901760
        %1473 = vmatmul.mubr.f32.gmra.mrb[0].mxu0 %v1472
        %v1474 = vpop.f32.mrb[0].mxu0
        %v1475 = vadd.f32 %v1298, %v1474
        %v1476 = vpop.f32.mrb[0].mxu0
        %1477 = vmatprep.mubr.f32.mxu0 0.0
        %v1478 = vand.u32 %v224, 4294901760
        %1479 = vmatmul.mubr.f32.gmra.mrb[0].mxu0 %v1478
        %v1480 = vpop.f32.mrb[0].mxu0
        %v1481 = vadd.f32 %v1304, %v1480
        %v1482 = vpop.f32.mrb[0].mxu0
        %1483 = vmatprep.mubr.f32.mxu0 0.0
        %v1484 = vand.u32 %v225, 4294901760
        %1485 = vmatmul.mubr.f32.gmra.mrb[0].mxu0 %v1484
        %v1486 = vpop.f32.mrb[0].mxu0
        %v1487 = vadd.f32 %v1310, %v1486
        %v1488 = vpop.f32.mrb[0].mxu0
        %1489 = vmatprep.mubr.f32.mxu0 0.0
        %v1490 = vand.u32 %v226, 4294901760
        %1491 = vmatmul.mubr.f32.gmra.mrb[0].mxu0 %v1490
        %v1492 = vpop.f32.mrb[0].mxu0
        %v1493 = vadd.f32 %v1316, %v1492
        %v1494 = vpop.f32.mrb[0].mxu0
        %1495 = vmatprep.mubr.f32.mxu0 0.0
        %v1496 = vand.u32 %v227, 4294901760
        %1497 = vmatmul.mubr.f32.gmra.mrb[0].mxu0 %v1496
        %v1498 = vpop.f32.mrb[0].mxu0
        %v1499 = vadd.f32 %v1322, %v1498
        %v1500 = vpop.f32.mrb[0].mxu0
        %1501 = vmatprep.mubr.f32.mxu0 0.0
        %v1502 = vand.u32 %v228, 4294901760
        %1503 = vmatmul.mubr.f32.gmra.mrb[0].mxu0 %v1502
        %v1504 = vpop.f32.mrb[0].mxu0
        %v1505 = vadd.f32 %v1328, %v1504
        %v1506 = vpop.f32.mrb[0].mxu0
        %1507 = vmatprep.mubr.f32.mxu0 0.0
        %v1508 = vand.u32 %v229, 4294901760
        %1509 = vmatmul.mubr.f32.gmra.mrb[0].mxu0 %v1508
        %v1510 = vpop.f32.mrb[0].mxu0
        %v1511 = vadd.f32 %v1334, %v1510
        %v1512 = vpop.f32.mrb[0].mxu0
        %1513 = vmatprep.mubr.f32.mxu0 0.0
        %v1514 = vand.u32 %v230, 4294901760
        %1515 = vmatmul.mubr.f32.gmra.mrb[0].mxu0 %v1514
        %v1516 = vpop.f32.mrb[0].mxu0
        %v1517 = vadd.f32 %v1340, %v1516
        %v1518 = vpop.f32.mrb[0].mxu0
        %1519 = vmatprep.mubr.f32.mxu0 0.0
        %v1520 = vand.u32 %v231, 4294901760
        %1521 = vmatmul.mubr.f32.gmra.mrb[0].mxu0 %v1520
        %v1522 = vpop.f32.mrb[0].mxu0
        %v1523 = vadd.f32 %v1346, %v1522
        %v1524 = vpop.f32.mrb[0].mxu0
        %1525 = vmatprep.mubr.f32.mxu0 0.0
        %v1526 = vand.u32 %v232, 4294901760
        %1527 = vmatmul.mubr.f32.gmra.mrb[0].mxu0 %v1526
        %v1528 = vpop.f32.mrb[0].mxu0
        %v1529 = vadd.f32 %v1352, %v1528
        %v1530 = vpop.f32.mrb[0].mxu0
        %1531 = vmatprep.mubr.f32.mxu0 0.0
        %v1532 = vand.u32 %v233, 4294901760
        %1533 = vmatmul.mubr.f32.gmra.mrb[0].mxu0 %v1532
        %v1534 = vpop.f32.mrb[0].mxu0
        %v1535 = vadd.f32 %v1358, %v1534
        %v1536 = vpop.f32.mrb[0].mxu0
        %1537 = vdwg.mxu0
        %v1538 = vmul.f32 %v1445, 0.015625
        %v1539 = vmul.f32 %v1451, 0.015625
        %v1540 = vmul.f32 %v1457, 0.015625
        %v1541 = vmul.f32 %v1463, 0.015625
        %v1542 = vmul.f32 %v1469, 0.015625
        %v1543 = vmul.f32 %v1475, 0.015625
        %v1544 = vmul.f32 %v1481, 0.015625
        %v1545 = vmul.f32 %v1487, 0.015625
        %v1546 = vmul.f32 %v1493, 0.015625
        %v1547 = vmul.f32 %v1499, 0.015625
        %v1548 = vmul.f32 %v1505, 0.015625
        %v1549 = vmul.f32 %v1511, 0.015625
        %v1550 = vmul.f32 %v1517, 0.015625
        %v1551 = vmul.f32 %v1523, 0.015625
        %v1552 = vmul.f32 %v1529, 0.015625
        %v1553 = vmul.f32 %v1535, 0.015625
        %vm1554 = vcmask 15360
        %v1556 = vsel %vm1554, %v1538, 0
        %v1559 = vsel %vm1554, %v1539, 0
        %v1562 = vsel %vm1554, %v1540, 0
        %v1565 = vsel %vm1554, %v1541, 0
        %v1568 = vsel %vm1554, %v1542, 0
        %v1571 = vsel %vm1554, %v1543, 0
        %v1574 = vsel %vm1554, %v1544, 0
        %v1577 = vsel %vm1554, %v1545, 0
        %v1580 = vsel %vm1554, %v1546, 0
        %v1583 = vsel %vm1554, %v1547, 0
        %v1586 = vsel %vm1554, %v1548, 0
        %v1589 = vsel %vm1554, %v1549, 0
        %v1592 = vsel %vm1554, %v1550, 0
        %v1595 = vsel %vm1554, %v1551, 0
        %v1598 = vsel %vm1554, %v1552, 0
        %v1601 = vsel %vm1554, %v1553, 0
        %vm1603 = vcmask 1041408
        %v1605 = vsel %vm1603, %v251, 0
        %1607 = vmatprep.subr.mxu0 0.0
        %v1608 = vand.u32 %v1605, 4294901760
        %1609 = vmatpush1.msra.mxu0 %v1608
        %1610 = vmatprep.subr.mxu0 0.0
        %1611 = vmatpush1.msra.mxu0 0.0
        %1612 = vmatprep.subr.mxu0 0.0
        %1613 = vmatpush1.msra.mxu0 0.0
        %1614 = vmatprep.subr.mxu0 0.0
        %1615 = vmatpush1.msra.mxu0 0.0
        %1616 = vmatprep.subr.mxu0 0.0
        %1617 = vmatpush1.msra.mxu0 0.0
        %1618 = vmatprep.subr.mxu0 0.0
        %1619 = vmatpush1.msra.mxu0 0.0
        %1620 = vmatprep.subr.mxu0 0.0
        %1621 = vmatpush1.msra.mxu0 0.0
        %1622 = vmatprep.subr.mxu0 0.0
        %1623 = vmatpush1.msra.mxu0 0.0
        %1624 = vmatprep.subr.mxu0 0.0
        %1625 = vmatpush1.msra.mxu0 0.0
        %1626 = vmatprep.subr.mxu0 0.0
        %1627 = vmatpush1.msra.mxu0 0.0
        %1628 = vmatprep.subr.mxu0 0.0
        %1629 = vmatpush1.msra.mxu0 0.0
        %1630 = vmatprep.subr.mxu0 0.0
        %1631 = vmatpush1.msra.mxu0 0.0
        %1632 = vmatprep.subr.mxu0 0.0
        %1633 = vmatpush1.msra.mxu0 0.0
        %1634 = vmatprep.subr.mxu0 0.0
        %1635 = vmatpush1.msra.mxu0 0.0
        %1636 = vmatprep.subr.mxu0 0.0
        %1637 = vmatpush1.msra.mxu0 0.0
        %1638 = vmatprep.subr.mxu0 0.0
        %1639 = vmatpush1.msra.mxu0 0.0
        %1640 = vmatprep.subr.mxu0 0.0
        %1641 = vmatpush1.msra.mxu0 0.0
        %1642 = vmatprep.subr.mxu0 0.0
        %1643 = vmatpush1.msra.mxu0 0.0
        %1644 = vmatprep.subr.mxu0 0.0
        %1645 = vmatpush1.msra.mxu0 0.0
        %1646 = vmatprep.subr.mxu0 0.0
        %1647 = vmatpush1.msra.mxu0 0.0
        %1648 = vmatprep.subr.mxu0 0.0
        %1649 = vmatpush1.msra.mxu0 0.0
        %1650 = vmatprep.subr.mxu0 0.0
        %1651 = vmatpush1.msra.mxu0 0.0
        %1652 = vmatprep.subr.mxu0 0.0
        %1653 = vmatpush1.msra.mxu0 0.0
        %1654 = vmatprep.subr.mxu0 0.0
        %1655 = vmatpush1.msra.mxu0 0.0
        %1656 = vmatprep.subr.mxu0 0.0
        %1657 = vmatpush1.msra.mxu0 0.0
        %1658 = vmatprep.subr.mxu0 0.0
        %1659 = vmatpush1.msra.mxu0 0.0
        %1660 = vmatprep.subr.mxu0 0.0
        %1661 = vmatpush1.msra.mxu0 0.0
        %1662 = vmatprep.subr.mxu0 0.0
        %1663 = vmatpush1.msra.mxu0 0.0
        %1664 = vmatprep.subr.mxu0 0.0
        %1665 = vmatpush1.msra.mxu0 0.0
        %1666 = vmatprep.subr.mxu0 0.0
        %1667 = vmatpush1.msra.mxu0 0.0
        %1668 = vmatprep.subr.mxu0 0.0
        %1669 = vmatpush1.msra.mxu0 0.0
        %1670 = vmatprep.subr.mxu0 0.0
        %1671 = vmatpush1.msra.mxu0 0.0
        %1672 = vmatprep.mubr.f32.mxu0 0.0
        %v1673 = vand.u32 %v1556, 4294901760
        %v1674 = vsub.f32 %v1556, %v1673
        %v1675 = vand.u32 %v1674, 4294901760
        %v1676 = vsub.f32 %v1674, %v1675
        %v1677 = vand.u32 %v1676, 4294901760
        %1678 = vmatmul.mubr.f32.gmra.mrb[0].mxu0 %v1677
        %v1679 = vpop.f32.mrb[0].mxu0
        %v1680 = vadd.f32 0.0, %v1679
        %v1681 = vpop.f32.mrb[0].mxu0
        %1682 = vmatprep.mubr.f32.mxu0 0.0
        %v1683 = vand.u32 %v1559, 4294901760
        %v1684 = vsub.f32 %v1559, %v1683
        %v1685 = vand.u32 %v1684, 4294901760
        %v1686 = vsub.f32 %v1684, %v1685
        %v1687 = vand.u32 %v1686, 4294901760
        %1688 = vmatmul.mubr.f32.gmra.mrb[0].mxu0 %v1687
        %v1689 = vpop.f32.mrb[0].mxu0
        %v1690 = vadd.f32 0.0, %v1689
        %v1691 = vpop.f32.mrb[0].mxu0
        %1692 = vmatprep.mubr.f32.mxu0 0.0
        %v1693 = vand.u32 %v1562, 4294901760
        %v1694 = vsub.f32 %v1562, %v1693
        %v1695 = vand.u32 %v1694, 4294901760
        %v1696 = vsub.f32 %v1694, %v1695
        %v1697 = vand.u32 %v1696, 4294901760
        %1698 = vmatmul.mubr.f32.gmra.mrb[0].mxu0 %v1697
        %v1699 = vpop.f32.mrb[0].mxu0
        %v1700 = vadd.f32 0.0, %v1699
        %v1701 = vpop.f32.mrb[0].mxu0
        %1702 = vmatprep.mubr.f32.mxu0 0.0
        %v1703 = vand.u32 %v1565, 4294901760
        %v1704 = vsub.f32 %v1565, %v1703
        %v1705 = vand.u32 %v1704, 4294901760
        %v1706 = vsub.f32 %v1704, %v1705
        %v1707 = vand.u32 %v1706, 4294901760
        %1708 = vmatmul.mubr.f32.gmra.mrb[0].mxu0 %v1707
        %v1709 = vpop.f32.mrb[0].mxu0
        %v1710 = vadd.f32 0.0, %v1709
        %v1711 = vpop.f32.mrb[0].mxu0
        %1712 = vmatprep.mubr.f32.mxu0 0.0
        %v1713 = vand.u32 %v1568, 4294901760
        %v1714 = vsub.f32 %v1568, %v1713
        %v1715 = vand.u32 %v1714, 4294901760
        %v1716 = vsub.f32 %v1714, %v1715
        %v1717 = vand.u32 %v1716, 4294901760
        %1718 = vmatmul.mubr.f32.gmra.mrb[0].mxu0 %v1717
        %v1719 = vpop.f32.mrb[0].mxu0
        %v1720 = vadd.f32 0.0, %v1719
        %v1721 = vpop.f32.mrb[0].mxu0
        %1722 = vmatprep.mubr.f32.mxu0 0.0
        %v1723 = vand.u32 %v1571, 4294901760
        %v1724 = vsub.f32 %v1571, %v1723
        %v1725 = vand.u32 %v1724, 4294901760
        %v1726 = vsub.f32 %v1724, %v1725
        %v1727 = vand.u32 %v1726, 4294901760
        %1728 = vmatmul.mubr.f32.gmra.mrb[0].mxu0 %v1727
        %v1729 = vpop.f32.mrb[0].mxu0
        %v1730 = vadd.f32 0.0, %v1729
        %v1731 = vpop.f32.mrb[0].mxu0
        %1732 = vmatprep.mubr.f32.mxu0 0.0
        %v1733 = vand.u32 %v1574, 4294901760
        %v1734 = vsub.f32 %v1574, %v1733
        %v1735 = vand.u32 %v1734, 4294901760
        %v1736 = vsub.f32 %v1734, %v1735
        %v1737 = vand.u32 %v1736, 4294901760
        %1738 = vmatmul.mubr.f32.gmra.mrb[0].mxu0 %v1737
        %v1739 = vpop.f32.mrb[0].mxu0
        %v1740 = vadd.f32 0.0, %v1739
        %v1741 = vpop.f32.mrb[0].mxu0
        %1742 = vmatprep.mubr.f32.mxu0 0.0
        %v1743 = vand.u32 %v1577, 4294901760
        %v1744 = vsub.f32 %v1577, %v1743
        %v1745 = vand.u32 %v1744, 4294901760
        %v1746 = vsub.f32 %v1744, %v1745
        %v1747 = vand.u32 %v1746, 4294901760
        %1748 = vmatmul.mubr.f32.gmra.mrb[0].mxu0 %v1747
        %v1749 = vpop.f32.mrb[0].mxu0
        %v1750 = vadd.f32 0.0, %v1749
        %v1751 = vpop.f32.mrb[0].mxu0
        %1752 = vmatprep.mubr.f32.mxu0 0.0
        %v1753 = vand.u32 %v1580, 4294901760
        %v1754 = vsub.f32 %v1580, %v1753
        %v1755 = vand.u32 %v1754, 4294901760
        %v1756 = vsub.f32 %v1754, %v1755
        %v1757 = vand.u32 %v1756, 4294901760
        %1758 = vmatmul.mubr.f32.gmra.mrb[0].mxu0 %v1757
        %v1759 = vpop.f32.mrb[0].mxu0
        %v1760 = vadd.f32 0.0, %v1759
        %v1761 = vpop.f32.mrb[0].mxu0
        %1762 = vmatprep.mubr.f32.mxu0 0.0
        %v1763 = vand.u32 %v1583, 4294901760
        %v1764 = vsub.f32 %v1583, %v1763
        %v1765 = vand.u32 %v1764, 4294901760
        %v1766 = vsub.f32 %v1764, %v1765
        %v1767 = vand.u32 %v1766, 4294901760
        %1768 = vmatmul.mubr.f32.gmra.mrb[0].mxu0 %v1767
        %v1769 = vpop.f32.mrb[0].mxu0
        %v1770 = vadd.f32 0.0, %v1769
        %v1771 = vpop.f32.mrb[0].mxu0
        %1772 = vmatprep.mubr.f32.mxu0 0.0
        %v1773 = vand.u32 %v1586, 4294901760
        %v1774 = vsub.f32 %v1586, %v1773
        %v1775 = vand.u32 %v1774, 4294901760
        %v1776 = vsub.f32 %v1774, %v1775
        %v1777 = vand.u32 %v1776, 4294901760
        %1778 = vmatmul.mubr.f32.gmra.mrb[0].mxu0 %v1777
        %v1779 = vpop.f32.mrb[0].mxu0
        %v1780 = vadd.f32 0.0, %v1779
        %v1781 = vpop.f32.mrb[0].mxu0
        %1782 = vmatprep.mubr.f32.mxu0 0.0
        %v1783 = vand.u32 %v1589, 4294901760
        %v1784 = vsub.f32 %v1589, %v1783
        %v1785 = vand.u32 %v1784, 4294901760
        %v1786 = vsub.f32 %v1784, %v1785
        %v1787 = vand.u32 %v1786, 4294901760
        %1788 = vmatmul.mubr.f32.gmra.mrb[0].mxu0 %v1787
        %v1789 = vpop.f32.mrb[0].mxu0
        %v1790 = vadd.f32 0.0, %v1789
        %v1791 = vpop.f32.mrb[0].mxu0
        %1792 = vmatprep.mubr.f32.mxu0 0.0
        %v1793 = vand.u32 %v1592, 4294901760
        %v1794 = vsub.f32 %v1592, %v1793
        %v1795 = vand.u32 %v1794, 4294901760
        %v1796 = vsub.f32 %v1794, %v1795
        %v1797 = vand.u32 %v1796, 4294901760
        %1798 = vmatmul.mubr.f32.gmra.mrb[0].mxu0 %v1797
        %v1799 = vpop.f32.mrb[0].mxu0
        %v1800 = vadd.f32 0.0, %v1799
        %v1801 = vpop.f32.mrb[0].mxu0
        %1802 = vmatprep.mubr.f32.mxu0 0.0
        %v1803 = vand.u32 %v1595, 4294901760
        %v1804 = vsub.f32 %v1595, %v1803
        %v1805 = vand.u32 %v1804, 4294901760
        %v1806 = vsub.f32 %v1804, %v1805
        %v1807 = vand.u32 %v1806, 4294901760
        %1808 = vmatmul.mubr.f32.gmra.mrb[0].mxu0 %v1807
        %v1809 = vpop.f32.mrb[0].mxu0
        %v1810 = vadd.f32 0.0, %v1809
        %v1811 = vpop.f32.mrb[0].mxu0
        %1812 = vmatprep.mubr.f32.mxu0 0.0
        %v1813 = vand.u32 %v1598, 4294901760
        %v1814 = vsub.f32 %v1598, %v1813
        %v1815 = vand.u32 %v1814, 4294901760
        %v1816 = vsub.f32 %v1814, %v1815
        %v1817 = vand.u32 %v1816, 4294901760
        %1818 = vmatmul.mubr.f32.gmra.mrb[0].mxu0 %v1817
        %v1819 = vpop.f32.mrb[0].mxu0
        %v1820 = vadd.f32 0.0, %v1819
        %v1821 = vpop.f32.mrb[0].mxu0
        %1822 = vmatprep.mubr.f32.mxu0 0.0
        %v1823 = vand.u32 %v1601, 4294901760
        %v1824 = vsub.f32 %v1601, %v1823
        %v1825 = vand.u32 %v1824, 4294901760
        %v1826 = vsub.f32 %v1824, %v1825
        %v1827 = vand.u32 %v1826, 4294901760
        %1828 = vmatmul.mubr.f32.gmra.mrb[0].mxu0 %v1827
        %v1829 = vpop.f32.mrb[0].mxu0
        %v1830 = vadd.f32 0.0, %v1829
        %v1831 = vpop.f32.mrb[0].mxu0
        %1832 = vdwg.mxu0
        %1833 = vmatprep.subr.mxu0 0.0
        %v1834 = vand.u32 %v1605, 4294901760
        %v1835 = vsub.f32 %v1605, %v1834
        %v1836 = vand.u32 %v1835, 4294901760
        %v1837 = vsub.f32 %v1835, %v1836
        %v1838 = vand.u32 %v1837, 4294901760
        %1839 = vmatpush1.msra.mxu0 %v1838
        %1840 = vmatprep.subr.mxu0 0.0
        %1841 = vmatpush1.msra.mxu0 0.0
        %1842 = vmatprep.subr.mxu0 0.0
        %1843 = vmatpush1.msra.mxu0 0.0
        %1844 = vmatprep.subr.mxu0 0.0
        %1845 = vmatpush1.msra.mxu0 0.0
        %1846 = vmatprep.subr.mxu0 0.0
        %1847 = vmatpush1.msra.mxu0 0.0
        %1848 = vmatprep.subr.mxu0 0.0
        %1849 = vmatpush1.msra.mxu0 0.0
        %1850 = vmatprep.subr.mxu0 0.0
        %1851 = vmatpush1.msra.mxu0 0.0
        %1852 = vmatprep.subr.mxu0 0.0
        %1853 = vmatpush1.msra.mxu0 0.0
        %1854 = vmatprep.subr.mxu0 0.0
        %1855 = vmatpush1.msra.mxu0 0.0
        %1856 = vmatprep.subr.mxu0 0.0
        %1857 = vmatpush1.msra.mxu0 0.0
        %1858 = vmatprep.subr.mxu0 0.0
        %1859 = vmatpush1.msra.mxu0 0.0
        %1860 = vmatprep.subr.mxu0 0.0
        %1861 = vmatpush1.msra.mxu0 0.0
        %1862 = vmatprep.subr.mxu0 0.0
        %1863 = vmatpush1.msra.mxu0 0.0
        %1864 = vmatprep.subr.mxu0 0.0
        %1865 = vmatpush1.msra.mxu0 0.0
        %1866 = vmatprep.subr.mxu0 0.0
        %1867 = vmatpush1.msra.mxu0 0.0
        %1868 = vmatprep.subr.mxu0 0.0
        %1869 = vmatpush1.msra.mxu0 0.0
        %1870 = vmatprep.subr.mxu0 0.0
        %1871 = vmatpush1.msra.mxu0 0.0
        %1872 = vmatprep.subr.mxu0 0.0
        %1873 = vmatpush1.msra.mxu0 0.0
        %1874 = vmatprep.subr.mxu0 0.0
        %1875 = vmatpush1.msra.mxu0 0.0
        %1876 = vmatprep.subr.mxu0 0.0
        %1877 = vmatpush1.msra.mxu0 0.0
        %1878 = vmatprep.subr.mxu0 0.0
        %1879 = vmatpush1.msra.mxu0 0.0
        %1880 = vmatprep.subr.mxu0 0.0
        %1881 = vmatpush1.msra.mxu0 0.0
        %1882 = vmatprep.subr.mxu0 0.0
        %1883 = vmatpush1.msra.mxu0 0.0
        %1884 = vmatprep.subr.mxu0 0.0
        %1885 = vmatpush1.msra.mxu0 0.0
        %1886 = vmatprep.subr.mxu0 0.0
        %1887 = vmatpush1.msra.mxu0 0.0
        %1888 = vmatprep.subr.mxu0 0.0
        %1889 = vmatpush1.msra.mxu0 0.0
        %1890 = vmatprep.subr.mxu0 0.0
        %1891 = vmatpush1.msra.mxu0 0.0
        %1892 = vmatprep.subr.mxu0 0.0
        %1893 = vmatpush1.msra.mxu0 0.0
        %1894 = vmatprep.subr.mxu0 0.0
        %1895 = vmatpush1.msra.mxu0 0.0
        %1896 = vmatprep.subr.mxu0 0.0
        %1897 = vmatpush1.msra.mxu0 0.0
        %1898 = vmatprep.subr.mxu0 0.0
        %1899 = vmatpush1.msra.mxu0 0.0
        %1900 = vmatprep.subr.mxu0 0.0
        %1901 = vmatpush1.msra.mxu0 0.0
        %1902 = vmatprep.mubr.f32.mxu0 0.0
        %v1903 = vand.u32 %v1556, 4294901760
        %1904 = vmatmul.mubr.f32.gmra.mrb[0].mxu0 %v1903
        %v1905 = vpop.f32.mrb[0].mxu0
        %v1906 = vadd.f32 %v1680, %v1905
        %v1907 = vpop.f32.mrb[0].mxu0
        %1908 = vmatprep.mubr.f32.mxu0 0.0
        %v1909 = vand.u32 %v1559, 4294901760
        %1910 = vmatmul.mubr.f32.gmra.mrb[0].mxu0 %v1909
        %v1911 = vpop.f32.mrb[0].mxu0
        %v1912 = vadd.f32 %v1690, %v1911
        %v1913 = vpop.f32.mrb[0].mxu0
        %1914 = vmatprep.mubr.f32.mxu0 0.0
        %v1915 = vand.u32 %v1562, 4294901760
        %1916 = vmatmul.mubr.f32.gmra.mrb[0].mxu0 %v1915
        %v1917 = vpop.f32.mrb[0].mxu0
        %v1918 = vadd.f32 %v1700, %v1917
        %v1919 = vpop.f32.mrb[0].mxu0
        %1920 = vmatprep.mubr.f32.mxu0 0.0
        %v1921 = vand.u32 %v1565, 4294901760
        %1922 = vmatmul.mubr.f32.gmra.mrb[0].mxu0 %v1921
        %v1923 = vpop.f32.mrb[0].mxu0
        %v1924 = vadd.f32 %v1710, %v1923
        %v1925 = vpop.f32.mrb[0].mxu0
        %1926 = vmatprep.mubr.f32.mxu0 0.0
        %v1927 = vand.u32 %v1568, 4294901760
        %1928 = vmatmul.mubr.f32.gmra.mrb[0].mxu0 %v1927
        %v1929 = vpop.f32.mrb[0].mxu0
        %v1930 = vadd.f32 %v1720, %v1929
        %v1931 = vpop.f32.mrb[0].mxu0
        %1932 = vmatprep.mubr.f32.mxu0 0.0
        %v1933 = vand.u32 %v1571, 4294901760
        %1934 = vmatmul.mubr.f32.gmra.mrb[0].mxu0 %v1933
        %v1935 = vpop.f32.mrb[0].mxu0
        %v1936 = vadd.f32 %v1730, %v1935
        %v1937 = vpop.f32.mrb[0].mxu0
        %1938 = vmatprep.mubr.f32.mxu0 0.0
        %v1939 = vand.u32 %v1574, 4294901760
        %1940 = vmatmul.mubr.f32.gmra.mrb[0].mxu0 %v1939
        %v1941 = vpop.f32.mrb[0].mxu0
        %v1942 = vadd.f32 %v1740, %v1941
        %v1943 = vpop.f32.mrb[0].mxu0
        %1944 = vmatprep.mubr.f32.mxu0 0.0
        %v1945 = vand.u32 %v1577, 4294901760
        %1946 = vmatmul.mubr.f32.gmra.mrb[0].mxu0 %v1945
        %v1947 = vpop.f32.mrb[0].mxu0
        %v1948 = vadd.f32 %v1750, %v1947
        %v1949 = vpop.f32.mrb[0].mxu0
        %1950 = vmatprep.mubr.f32.mxu0 0.0
        %v1951 = vand.u32 %v1580, 4294901760
        %1952 = vmatmul.mubr.f32.gmra.mrb[0].mxu0 %v1951
        %v1953 = vpop.f32.mrb[0].mxu0
        %v1954 = vadd.f32 %v1760, %v1953
        %v1955 = vpop.f32.mrb[0].mxu0
        %1956 = vmatprep.mubr.f32.mxu0 0.0
        %v1957 = vand.u32 %v1583, 4294901760
        %1958 = vmatmul.mubr.f32.gmra.mrb[0].mxu0 %v1957
        %v1959 = vpop.f32.mrb[0].mxu0
        %v1960 = vadd.f32 %v1770, %v1959
        %v1961 = vpop.f32.mrb[0].mxu0
        %1962 = vmatprep.mubr.f32.mxu0 0.0
        %v1963 = vand.u32 %v1586, 4294901760
        %1964 = vmatmul.mubr.f32.gmra.mrb[0].mxu0 %v1963
        %v1965 = vpop.f32.mrb[0].mxu0
        %v1966 = vadd.f32 %v1780, %v1965
        %v1967 = vpop.f32.mrb[0].mxu0
        %1968 = vmatprep.mubr.f32.mxu0 0.0
        %v1969 = vand.u32 %v1589, 4294901760
        %1970 = vmatmul.mubr.f32.gmra.mrb[0].mxu0 %v1969
        %v1971 = vpop.f32.mrb[0].mxu0
        %v1972 = vadd.f32 %v1790, %v1971
        %v1973 = vpop.f32.mrb[0].mxu0
        %1974 = vmatprep.mubr.f32.mxu0 0.0
        %v1975 = vand.u32 %v1592, 4294901760
        %1976 = vmatmul.mubr.f32.gmra.mrb[0].mxu0 %v1975
        %v1977 = vpop.f32.mrb[0].mxu0
        %v1978 = vadd.f32 %v1800, %v1977
        %v1979 = vpop.f32.mrb[0].mxu0
        %1980 = vmatprep.mubr.f32.mxu0 0.0
        %v1981 = vand.u32 %v1595, 4294901760
        %1982 = vmatmul.mubr.f32.gmra.mrb[0].mxu0 %v1981
        %v1983 = vpop.f32.mrb[0].mxu0
        %v1984 = vadd.f32 %v1810, %v1983
        %v1985 = vpop.f32.mrb[0].mxu0
        %1986 = vmatprep.mubr.f32.mxu0 0.0
        %v1987 = vand.u32 %v1598, 4294901760
        %1988 = vmatmul.mubr.f32.gmra.mrb[0].mxu0 %v1987
        %v1989 = vpop.f32.mrb[0].mxu0
        %v1990 = vadd.f32 %v1820, %v1989
        %v1991 = vpop.f32.mrb[0].mxu0
        %1992 = vmatprep.mubr.f32.mxu0 0.0
        %v1993 = vand.u32 %v1601, 4294901760
        %1994 = vmatmul.mubr.f32.gmra.mrb[0].mxu0 %v1993
        %v1995 = vpop.f32.mrb[0].mxu0
        %v1996 = vadd.f32 %v1830, %v1995
        %v1997 = vpop.f32.mrb[0].mxu0
        %1998 = vdwg.mxu0
        %1999 = vmatprep.subr.mxu0 0.0
        %v2000 = vand.u32 %v1605, 4294901760
        %v2001 = vsub.f32 %v1605, %v2000
        %2002 = vmatpush1.msra.mxu0 %v2001
        %2003 = vmatprep.subr.mxu0 0.0
        %2004 = vmatpush1.msra.mxu0 0.0
        %2005 = vmatprep.subr.mxu0 0.0
        %2006 = vmatpush1.msra.mxu0 0.0
        %2007 = vmatprep.subr.mxu0 0.0
        %2008 = vmatpush1.msra.mxu0 0.0
        %2009 = vmatprep.subr.mxu0 0.0
        %2010 = vmatpush1.msra.mxu0 0.0
        %2011 = vmatprep.subr.mxu0 0.0
        %2012 = vmatpush1.msra.mxu0 0.0
        %2013 = vmatprep.subr.mxu0 0.0
        %2014 = vmatpush1.msra.mxu0 0.0
        %2015 = vmatprep.subr.mxu0 0.0
        %2016 = vmatpush1.msra.mxu0 0.0
        %2017 = vmatprep.subr.mxu0 0.0
        %2018 = vmatpush1.msra.mxu0 0.0
        %2019 = vmatprep.subr.mxu0 0.0
        %2020 = vmatpush1.msra.mxu0 0.0
        %2021 = vmatprep.subr.mxu0 0.0
        %2022 = vmatpush1.msra.mxu0 0.0
        %2023 = vmatprep.subr.mxu0 0.0
        %2024 = vmatpush1.msra.mxu0 0.0
        %2025 = vmatprep.subr.mxu0 0.0
        %2026 = vmatpush1.msra.mxu0 0.0
        %2027 = vmatprep.subr.mxu0 0.0
        %2028 = vmatpush1.msra.mxu0 0.0
        %2029 = vmatprep.subr.mxu0 0.0
        %2030 = vmatpush1.msra.mxu0 0.0
        %2031 = vmatprep.subr.mxu0 0.0
        %2032 = vmatpush1.msra.mxu0 0.0
        %2033 = vmatprep.subr.mxu0 0.0
        %2034 = vmatpush1.msra.mxu0 0.0
        %2035 = vmatprep.subr.mxu0 0.0
        %2036 = vmatpush1.msra.mxu0 0.0
        %2037 = vmatprep.subr.mxu0 0.0
        %2038 = vmatpush1.msra.mxu0 0.0
        %2039 = vmatprep.subr.mxu0 0.0
        %2040 = vmatpush1.msra.mxu0 0.0
        %2041 = vmatprep.subr.mxu0 0.0
        %2042 = vmatpush1.msra.mxu0 0.0
        %2043 = vmatprep.subr.mxu0 0.0
        %2044 = vmatpush1.msra.mxu0 0.0
        %2045 = vmatprep.subr.mxu0 0.0
        %2046 = vmatpush1.msra.mxu0 0.0
        %2047 = vmatprep.subr.mxu0 0.0
        %2048 = vmatpush1.msra.mxu0 0.0
        %2049 = vmatprep.subr.mxu0 0.0
        %2050 = vmatpush1.msra.mxu0 0.0
        %2051 = vmatprep.subr.mxu0 0.0
        %2052 = vmatpush1.msra.mxu0 0.0
        %2053 = vmatprep.subr.mxu0 0.0
        %2054 = vmatpush1.msra.mxu0 0.0
        %2055 = vmatprep.subr.mxu0 0.0
        %2056 = vmatpush1.msra.mxu0 0.0
        %2057 = vmatprep.subr.mxu0 0.0
        %2058 = vmatpush1.msra.mxu0 0.0
        %2059 = vmatprep.subr.mxu0 0.0
        %2060 = vmatpush1.msra.mxu0 0.0
        %2061 = vmatprep.subr.mxu0 0.0
        %2062 = vmatpush1.msra.mxu0 0.0
        %2063 = vmatprep.subr.mxu0 0.0
        %2064 = vmatpush1.msra.mxu0 0.0
        %2065 = vmatprep.mubr.f32.mxu0 0.0
        %v2066 = vand.u32 %v1556, 4294901760
        %v2067 = vsub.f32 %v1556, %v2066
        %2068 = vmatmul.mubr.f32.gmra.mrb[0].mxu0 %v2067
        %v2069 = vpop.f32.mrb[0].mxu0
        %v2070 = vadd.f32 %v1906, %v2069
        %v2071 = vpop.f32.mrb[0].mxu0
        %2072 = vmatprep.mubr.f32.mxu0 0.0
        %v2073 = vand.u32 %v1559, 4294901760
        %v2074 = vsub.f32 %v1559, %v2073
        %2075 = vmatmul.mubr.f32.gmra.mrb[0].mxu0 %v2074
        %v2076 = vpop.f32.mrb[0].mxu0
        %v2077 = vadd.f32 %v1912, %v2076
        %v2078 = vpop.f32.mrb[0].mxu0
        %2079 = vmatprep.mubr.f32.mxu0 0.0
        %v2080 = vand.u32 %v1562, 4294901760
        %v2081 = vsub.f32 %v1562, %v2080
        %2082 = vmatmul.mubr.f32.gmra.mrb[0].mxu0 %v2081
        %v2083 = vpop.f32.mrb[0].mxu0
        %v2084 = vadd.f32 %v1918, %v2083
        %v2085 = vpop.f32.mrb[0].mxu0
        %2086 = vmatprep.mubr.f32.mxu0 0.0
        %v2087 = vand.u32 %v1565, 4294901760
        %v2088 = vsub.f32 %v1565, %v2087
        %2089 = vmatmul.mubr.f32.gmra.mrb[0].mxu0 %v2088
        %v2090 = vpop.f32.mrb[0].mxu0
        %v2091 = vadd.f32 %v1924, %v2090
        %v2092 = vpop.f32.mrb[0].mxu0
        %2093 = vmatprep.mubr.f32.mxu0 0.0
        %v2094 = vand.u32 %v1568, 4294901760
        %v2095 = vsub.f32 %v1568, %v2094
        %2096 = vmatmul.mubr.f32.gmra.mrb[0].mxu0 %v2095
        %v2097 = vpop.f32.mrb[0].mxu0
        %v2098 = vadd.f32 %v1930, %v2097
        %v2099 = vpop.f32.mrb[0].mxu0
        %2100 = vmatprep.mubr.f32.mxu0 0.0
        %v2101 = vand.u32 %v1571, 4294901760
        %v2102 = vsub.f32 %v1571, %v2101
        %2103 = vmatmul.mubr.f32.gmra.mrb[0].mxu0 %v2102
        %v2104 = vpop.f32.mrb[0].mxu0
        %v2105 = vadd.f32 %v1936, %v2104
        %v2106 = vpop.f32.mrb[0].mxu0
        %2107 = vmatprep.mubr.f32.mxu0 0.0
        %v2108 = vand.u32 %v1574, 4294901760
        %v2109 = vsub.f32 %v1574, %v2108
        %2110 = vmatmul.mubr.f32.gmra.mrb[0].mxu0 %v2109
        %v2111 = vpop.f32.mrb[0].mxu0
        %v2112 = vadd.f32 %v1942, %v2111
        %v2113 = vpop.f32.mrb[0].mxu0
        %2114 = vmatprep.mubr.f32.mxu0 0.0
        %v2115 = vand.u32 %v1577, 4294901760
        %v2116 = vsub.f32 %v1577, %v2115
        %2117 = vmatmul.mubr.f32.gmra.mrb[0].mxu0 %v2116
        %v2118 = vpop.f32.mrb[0].mxu0
        %v2119 = vadd.f32 %v1948, %v2118
        %v2120 = vpop.f32.mrb[0].mxu0
        %2121 = vmatprep.mubr.f32.mxu0 0.0
        %v2122 = vand.u32 %v1580, 4294901760
        %v2123 = vsub.f32 %v1580, %v2122
        %2124 = vmatmul.mubr.f32.gmra.mrb[0].mxu0 %v2123
        %v2125 = vpop.f32.mrb[0].mxu0
        %v2126 = vadd.f32 %v1954, %v2125
        %v2127 = vpop.f32.mrb[0].mxu0
        %2128 = vmatprep.mubr.f32.mxu0 0.0
        %v2129 = vand.u32 %v1583, 4294901760
        %v2130 = vsub.f32 %v1583, %v2129
        %2131 = vmatmul.mubr.f32.gmra.mrb[0].mxu0 %v2130
        %v2132 = vpop.f32.mrb[0].mxu0
        %v2133 = vadd.f32 %v1960, %v2132
        %v2134 = vpop.f32.mrb[0].mxu0
        %2135 = vmatprep.mubr.f32.mxu0 0.0
        %v2136 = vand.u32 %v1586, 4294901760
        %v2137 = vsub.f32 %v1586, %v2136
        %2138 = vmatmul.mubr.f32.gmra.mrb[0].mxu0 %v2137
        %v2139 = vpop.f32.mrb[0].mxu0
        %v2140 = vadd.f32 %v1966, %v2139
        %v2141 = vpop.f32.mrb[0].mxu0
        %2142 = vmatprep.mubr.f32.mxu0 0.0
        %v2143 = vand.u32 %v1589, 4294901760
        %v2144 = vsub.f32 %v1589, %v2143
        %2145 = vmatmul.mubr.f32.gmra.mrb[0].mxu0 %v2144
        %v2146 = vpop.f32.mrb[0].mxu0
        %v2147 = vadd.f32 %v1972, %v2146
        %v2148 = vpop.f32.mrb[0].mxu0
        %2149 = vmatprep.mubr.f32.mxu0 0.0
        %v2150 = vand.u32 %v1592, 4294901760
        %v2151 = vsub.f32 %v1592, %v2150
        %2152 = vmatmul.mubr.f32.gmra.mrb[0].mxu0 %v2151
        %v2153 = vpop.f32.mrb[0].mxu0
        %v2154 = vadd.f32 %v1978, %v2153
        %v2155 = vpop.f32.mrb[0].mxu0
        %2156 = vmatprep.mubr.f32.mxu0 0.0
        %v2157 = vand.u32 %v1595, 4294901760
        %v2158 = vsub.f32 %v1595, %v2157
        %2159 = vmatmul.mubr.f32.gmra.mrb[0].mxu0 %v2158
        %v2160 = vpop.f32.mrb[0].mxu0
        %v2161 = vadd.f32 %v1984, %v2160
        %v2162 = vpop.f32.mrb[0].mxu0
        %2163 = vmatprep.mubr.f32.mxu0 0.0
        %v2164 = vand.u32 %v1598, 4294901760
        %v2165 = vsub.f32 %v1598, %v2164
        %2166 = vmatmul.mubr.f32.gmra.mrb[0].mxu0 %v2165
        %v2167 = vpop.f32.mrb[0].mxu0
        %v2168 = vadd.f32 %v1990, %v2167
        %v2169 = vpop.f32.mrb[0].mxu0
        %2170 = vmatprep.mubr.f32.mxu0 0.0
        %v2171 = vand.u32 %v1601, 4294901760
        %v2172 = vsub.f32 %v1601, %v2171
        %2173 = vmatmul.mubr.f32.gmra.mrb[0].mxu0 %v2172
        %v2174 = vpop.f32.mrb[0].mxu0
        %v2175 = vadd.f32 %v1996, %v2174
        %v2176 = vpop.f32.mrb[0].mxu0
        %2177 = vdwg.mxu0
        %2178 = vmatprep.subr.mxu0 0.0
        %v2179 = vand.u32 %v1605, 4294901760
        %2180 = vmatpush1.msra.mxu0 %v2179
        %2181 = vmatprep.subr.mxu0 0.0
        %2182 = vmatpush1.msra.mxu0 0.0
        %2183 = vmatprep.subr.mxu0 0.0
        %2184 = vmatpush1.msra.mxu0 0.0
        %2185 = vmatprep.subr.mxu0 0.0
        %2186 = vmatpush1.msra.mxu0 0.0
        %2187 = vmatprep.subr.mxu0 0.0
        %2188 = vmatpush1.msra.mxu0 0.0
        %2189 = vmatprep.subr.mxu0 0.0
        %2190 = vmatpush1.msra.mxu0 0.0
        %2191 = vmatprep.subr.mxu0 0.0
        %2192 = vmatpush1.msra.mxu0 0.0
        %2193 = vmatprep.subr.mxu0 0.0
        %2194 = vmatpush1.msra.mxu0 0.0
        %2195 = vmatprep.subr.mxu0 0.0
        %2196 = vmatpush1.msra.mxu0 0.0
        %2197 = vmatprep.subr.mxu0 0.0
        %2198 = vmatpush1.msra.mxu0 0.0
        %2199 = vmatprep.subr.mxu0 0.0
        %2200 = vmatpush1.msra.mxu0 0.0
        %2201 = vmatprep.subr.mxu0 0.0
        %2202 = vmatpush1.msra.mxu0 0.0
        %2203 = vmatprep.subr.mxu0 0.0
        %2204 = vmatpush1.msra.mxu0 0.0
        %2205 = vmatprep.subr.mxu0 0.0
        %2206 = vmatpush1.msra.mxu0 0.0
        %2207 = vmatprep.subr.mxu0 0.0
        %2208 = vmatpush1.msra.mxu0 0.0
        %2209 = vmatprep.subr.mxu0 0.0
        %2210 = vmatpush1.msra.mxu0 0.0
        %2211 = vmatprep.subr.mxu0 0.0
        %2212 = vmatpush1.msra.mxu0 0.0
        %2213 = vmatprep.subr.mxu0 0.0
        %2214 = vmatpush1.msra.mxu0 0.0
        %2215 = vmatprep.subr.mxu0 0.0
        %2216 = vmatpush1.msra.mxu0 0.0
        %2217 = vmatprep.subr.mxu0 0.0
        %2218 = vmatpush1.msra.mxu0 0.0
        %2219 = vmatprep.subr.mxu0 0.0
        %2220 = vmatpush1.msra.mxu0 0.0
        %2221 = vmatprep.subr.mxu0 0.0
        %2222 = vmatpush1.msra.mxu0 0.0
        %2223 = vmatprep.subr.mxu0 0.0
        %2224 = vmatpush1.msra.mxu0 0.0
        %2225 = vmatprep.subr.mxu0 0.0
        %2226 = vmatpush1.msra.mxu0 0.0
        %2227 = vmatprep.subr.mxu0 0.0
        %2228 = vmatpush1.msra.mxu0 0.0
        %2229 = vmatprep.subr.mxu0 0.0
        %2230 = vmatpush1.msra.mxu0 0.0
        %2231 = vmatprep.subr.mxu0 0.0
        %2232 = vmatpush1.msra.mxu0 0.0
        %2233 = vmatprep.subr.mxu0 0.0
        %2234 = vmatpush1.msra.mxu0 0.0
        %2235 = vmatprep.subr.mxu0 0.0
        %2236 = vmatpush1.msra.mxu0 0.0
        %2237 = vmatprep.subr.mxu0 0.0
        %2238 = vmatpush1.msra.mxu0 0.0
        %2239 = vmatprep.subr.mxu0 0.0
        %2240 = vmatpush1.msra.mxu0 0.0
        %2241 = vmatprep.subr.mxu0 0.0
        %2242 = vmatpush1.msra.mxu0 0.0
        %2243 = vmatprep.mubr.f32.mxu0 0.0
        %v2244 = vand.u32 %v1556, 4294901760
        %v2245 = vsub.f32 %v1556, %v2244
        %v2246 = vand.u32 %v2245, 4294901760
        %2247 = vmatmul.mubr.f32.gmra.mrb[0].mxu0 %v2246
        %v2248 = vpop.f32.mrb[0].mxu0
        %v2249 = vadd.f32 %v2070, %v2248
        %v2250 = vpop.f32.mrb[0].mxu0
        %2251 = vmatprep.mubr.f32.mxu0 0.0
        %v2252 = vand.u32 %v1559, 4294901760
        %v2253 = vsub.f32 %v1559, %v2252
        %v2254 = vand.u32 %v2253, 4294901760
        %2255 = vmatmul.mubr.f32.gmra.mrb[0].mxu0 %v2254
        %v2256 = vpop.f32.mrb[0].mxu0
        %v2257 = vadd.f32 %v2077, %v2256
        %v2258 = vpop.f32.mrb[0].mxu0
        %2259 = vmatprep.mubr.f32.mxu0 0.0
        %v2260 = vand.u32 %v1562, 4294901760
        %v2261 = vsub.f32 %v1562, %v2260
        %v2262 = vand.u32 %v2261, 4294901760
        %2263 = vmatmul.mubr.f32.gmra.mrb[0].mxu0 %v2262
        %v2264 = vpop.f32.mrb[0].mxu0
        %v2265 = vadd.f32 %v2084, %v2264
        %v2266 = vpop.f32.mrb[0].mxu0
        %2267 = vmatprep.mubr.f32.mxu0 0.0
        %v2268 = vand.u32 %v1565, 4294901760
        %v2269 = vsub.f32 %v1565, %v2268
        %v2270 = vand.u32 %v2269, 4294901760
        %2271 = vmatmul.mubr.f32.gmra.mrb[0].mxu0 %v2270
        %v2272 = vpop.f32.mrb[0].mxu0
        %v2273 = vadd.f32 %v2091, %v2272
        %v2274 = vpop.f32.mrb[0].mxu0
        %2275 = vmatprep.mubr.f32.mxu0 0.0
        %v2276 = vand.u32 %v1568, 4294901760
        %v2277 = vsub.f32 %v1568, %v2276
        %v2278 = vand.u32 %v2277, 4294901760
        %2279 = vmatmul.mubr.f32.gmra.mrb[0].mxu0 %v2278
        %v2280 = vpop.f32.mrb[0].mxu0
        %v2281 = vadd.f32 %v2098, %v2280
        %v2282 = vpop.f32.mrb[0].mxu0
        %2283 = vmatprep.mubr.f32.mxu0 0.0
        %v2284 = vand.u32 %v1571, 4294901760
        %v2285 = vsub.f32 %v1571, %v2284
        %v2286 = vand.u32 %v2285, 4294901760
        %2287 = vmatmul.mubr.f32.gmra.mrb[0].mxu0 %v2286
        %v2288 = vpop.f32.mrb[0].mxu0
        %v2289 = vadd.f32 %v2105, %v2288
        %v2290 = vpop.f32.mrb[0].mxu0
        %2291 = vmatprep.mubr.f32.mxu0 0.0
        %v2292 = vand.u32 %v1574, 4294901760
        %v2293 = vsub.f32 %v1574, %v2292
        %v2294 = vand.u32 %v2293, 4294901760
        %2295 = vmatmul.mubr.f32.gmra.mrb[0].mxu0 %v2294
        %v2296 = vpop.f32.mrb[0].mxu0
        %v2297 = vadd.f32 %v2112, %v2296
        %v2298 = vpop.f32.mrb[0].mxu0
        %2299 = vmatprep.mubr.f32.mxu0 0.0
        %v2300 = vand.u32 %v1577, 4294901760
        %v2301 = vsub.f32 %v1577, %v2300
        %v2302 = vand.u32 %v2301, 4294901760
        %2303 = vmatmul.mubr.f32.gmra.mrb[0].mxu0 %v2302
        %v2304 = vpop.f32.mrb[0].mxu0
        %v2305 = vadd.f32 %v2119, %v2304
        %v2306 = vpop.f32.mrb[0].mxu0
        %2307 = vmatprep.mubr.f32.mxu0 0.0
        %v2308 = vand.u32 %v1580, 4294901760
        %v2309 = vsub.f32 %v1580, %v2308
        %v2310 = vand.u32 %v2309, 4294901760
        %2311 = vmatmul.mubr.f32.gmra.mrb[0].mxu0 %v2310
        %v2312 = vpop.f32.mrb[0].mxu0
        %v2313 = vadd.f32 %v2126, %v2312
        %v2314 = vpop.f32.mrb[0].mxu0
        %2315 = vmatprep.mubr.f32.mxu0 0.0
        %v2316 = vand.u32 %v1583, 4294901760
        %v2317 = vsub.f32 %v1583, %v2316
        %v2318 = vand.u32 %v2317, 4294901760
        %2319 = vmatmul.mubr.f32.gmra.mrb[0].mxu0 %v2318
        %v2320 = vpop.f32.mrb[0].mxu0
        %v2321 = vadd.f32 %v2133, %v2320
        %v2322 = vpop.f32.mrb[0].mxu0
        %2323 = vmatprep.mubr.f32.mxu0 0.0
        %v2324 = vand.u32 %v1586, 4294901760
        %v2325 = vsub.f32 %v1586, %v2324
        %v2326 = vand.u32 %v2325, 4294901760
        %2327 = vmatmul.mubr.f32.gmra.mrb[0].mxu0 %v2326
        %v2328 = vpop.f32.mrb[0].mxu0
        %v2329 = vadd.f32 %v2140, %v2328
        %v2330 = vpop.f32.mrb[0].mxu0
        %2331 = vmatprep.mubr.f32.mxu0 0.0
        %v2332 = vand.u32 %v1589, 4294901760
        %v2333 = vsub.f32 %v1589, %v2332
        %v2334 = vand.u32 %v2333, 4294901760
        %2335 = vmatmul.mubr.f32.gmra.mrb[0].mxu0 %v2334
        %v2336 = vpop.f32.mrb[0].mxu0
        %v2337 = vadd.f32 %v2147, %v2336
        %v2338 = vpop.f32.mrb[0].mxu0
        %2339 = vmatprep.mubr.f32.mxu0 0.0
        %v2340 = vand.u32 %v1592, 4294901760
        %v2341 = vsub.f32 %v1592, %v2340
        %v2342 = vand.u32 %v2341, 4294901760
        %2343 = vmatmul.mubr.f32.gmra.mrb[0].mxu0 %v2342
        %v2344 = vpop.f32.mrb[0].mxu0
        %v2345 = vadd.f32 %v2154, %v2344
        %v2346 = vpop.f32.mrb[0].mxu0
        %2347 = vmatprep.mubr.f32.mxu0 0.0
        %v2348 = vand.u32 %v1595, 4294901760
        %v2349 = vsub.f32 %v1595, %v2348
        %v2350 = vand.u32 %v2349, 4294901760
        %2351 = vmatmul.mubr.f32.gmra.mrb[0].mxu0 %v2350
        %v2352 = vpop.f32.mrb[0].mxu0
        %v2353 = vadd.f32 %v2161, %v2352
        %v2354 = vpop.f32.mrb[0].mxu0
        %2355 = vmatprep.mubr.f32.mxu0 0.0
        %v2356 = vand.u32 %v1598, 4294901760
        %v2357 = vsub.f32 %v1598, %v2356
        %v2358 = vand.u32 %v2357, 4294901760
        %2359 = vmatmul.mubr.f32.gmra.mrb[0].mxu0 %v2358
        %v2360 = vpop.f32.mrb[0].mxu0
        %v2361 = vadd.f32 %v2168, %v2360
        %v2362 = vpop.f32.mrb[0].mxu0
        %2363 = vmatprep.mubr.f32.mxu0 0.0
        %v2364 = vand.u32 %v1601, 4294901760
        %v2365 = vsub.f32 %v1601, %v2364
        %v2366 = vand.u32 %v2365, 4294901760
        %2367 = vmatmul.mubr.f32.gmra.mrb[0].mxu0 %v2366
        %v2368 = vpop.f32.mrb[0].mxu0
        %v2369 = vadd.f32 %v2175, %v2368
        %v2370 = vpop.f32.mrb[0].mxu0
        %2371 = vdwg.mxu0
        %2372 = vmatprep.subr.mxu0 0.0
        %v2373 = vand.u32 %v1605, 4294901760
        %v2374 = vsub.f32 %v1605, %v2373
        %v2375 = vand.u32 %v2374, 4294901760
        %2376 = vmatpush1.msra.mxu0 %v2375
        %2377 = vmatprep.subr.mxu0 0.0
        %2378 = vmatpush1.msra.mxu0 0.0
        %2379 = vmatprep.subr.mxu0 0.0
        %2380 = vmatpush1.msra.mxu0 0.0
        %2381 = vmatprep.subr.mxu0 0.0
        %2382 = vmatpush1.msra.mxu0 0.0
        %2383 = vmatprep.subr.mxu0 0.0
        %2384 = vmatpush1.msra.mxu0 0.0
        %2385 = vmatprep.subr.mxu0 0.0
        %2386 = vmatpush1.msra.mxu0 0.0
        %2387 = vmatprep.subr.mxu0 0.0
        %2388 = vmatpush1.msra.mxu0 0.0
        %2389 = vmatprep.subr.mxu0 0.0
        %2390 = vmatpush1.msra.mxu0 0.0
        %2391 = vmatprep.subr.mxu0 0.0
        %2392 = vmatpush1.msra.mxu0 0.0
        %2393 = vmatprep.subr.mxu0 0.0
        %2394 = vmatpush1.msra.mxu0 0.0
        %2395 = vmatprep.subr.mxu0 0.0
        %2396 = vmatpush1.msra.mxu0 0.0
        %2397 = vmatprep.subr.mxu0 0.0
        %2398 = vmatpush1.msra.mxu0 0.0
        %2399 = vmatprep.subr.mxu0 0.0
        %2400 = vmatpush1.msra.mxu0 0.0
        %2401 = vmatprep.subr.mxu0 0.0
        %2402 = vmatpush1.msra.mxu0 0.0
        %2403 = vmatprep.subr.mxu0 0.0
        %2404 = vmatpush1.msra.mxu0 0.0
        %2405 = vmatprep.subr.mxu0 0.0
        %2406 = vmatpush1.msra.mxu0 0.0
        %2407 = vmatprep.subr.mxu0 0.0
        %2408 = vmatpush1.msra.mxu0 0.0
        %2409 = vmatprep.subr.mxu0 0.0
        %2410 = vmatpush1.msra.mxu0 0.0
        %2411 = vmatprep.subr.mxu0 0.0
        %2412 = vmatpush1.msra.mxu0 0.0
        %2413 = vmatprep.subr.mxu0 0.0
        %2414 = vmatpush1.msra.mxu0 0.0
        %2415 = vmatprep.subr.mxu0 0.0
        %2416 = vmatpush1.msra.mxu0 0.0
        %2417 = vmatprep.subr.mxu0 0.0
        %2418 = vmatpush1.msra.mxu0 0.0
        %2419 = vmatprep.subr.mxu0 0.0
        %2420 = vmatpush1.msra.mxu0 0.0
        %2421 = vmatprep.subr.mxu0 0.0
        %2422 = vmatpush1.msra.mxu0 0.0
        %2423 = vmatprep.subr.mxu0 0.0
        %2424 = vmatpush1.msra.mxu0 0.0
        %2425 = vmatprep.subr.mxu0 0.0
        %2426 = vmatpush1.msra.mxu0 0.0
        %2427 = vmatprep.subr.mxu0 0.0
        %2428 = vmatpush1.msra.mxu0 0.0
        %2429 = vmatprep.subr.mxu0 0.0
        %2430 = vmatpush1.msra.mxu0 0.0
        %2431 = vmatprep.subr.mxu0 0.0
        %2432 = vmatpush1.msra.mxu0 0.0
        %2433 = vmatprep.subr.mxu0 0.0
        %2434 = vmatpush1.msra.mxu0 0.0
        %2435 = vmatprep.subr.mxu0 0.0
        %2436 = vmatpush1.msra.mxu0 0.0
        %2437 = vmatprep.subr.mxu0 0.0
        %2438 = vmatpush1.msra.mxu0 0.0
        %2439 = vmatprep.mubr.f32.mxu0 0.0
        %v2440 = vand.u32 %v1556, 4294901760
        %2441 = vmatmul.mubr.f32.gmra.mrb[0].mxu0 %v2440
        %v2442 = vpop.f32.mrb[0].mxu0
        %v2443 = vadd.f32 %v2249, %v2442
        %v2444 = vpop.f32.mrb[0].mxu0
        %2445 = vmatprep.mubr.f32.mxu0 0.0
        %v2446 = vand.u32 %v1559, 4294901760
        %2447 = vmatmul.mubr.f32.gmra.mrb[0].mxu0 %v2446
        %v2448 = vpop.f32.mrb[0].mxu0
        %v2449 = vadd.f32 %v2257, %v2448
        %v2450 = vpop.f32.mrb[0].mxu0
        %2451 = vmatprep.mubr.f32.mxu0 0.0
        %v2452 = vand.u32 %v1562, 4294901760
        %2453 = vmatmul.mubr.f32.gmra.mrb[0].mxu0 %v2452
        %v2454 = vpop.f32.mrb[0].mxu0
        %v2455 = vadd.f32 %v2265, %v2454
        %v2456 = vpop.f32.mrb[0].mxu0
        %2457 = vmatprep.mubr.f32.mxu0 0.0
        %v2458 = vand.u32 %v1565, 4294901760
        %2459 = vmatmul.mubr.f32.gmra.mrb[0].mxu0 %v2458
        %v2460 = vpop.f32.mrb[0].mxu0
        %v2461 = vadd.f32 %v2273, %v2460
        %v2462 = vpop.f32.mrb[0].mxu0
        %2463 = vmatprep.mubr.f32.mxu0 0.0
        %v2464 = vand.u32 %v1568, 4294901760
        %2465 = vmatmul.mubr.f32.gmra.mrb[0].mxu0 %v2464
        %v2466 = vpop.f32.mrb[0].mxu0
        %v2467 = vadd.f32 %v2281, %v2466
        %v2468 = vpop.f32.mrb[0].mxu0
        %2469 = vmatprep.mubr.f32.mxu0 0.0
        %v2470 = vand.u32 %v1571, 4294901760
        %2471 = vmatmul.mubr.f32.gmra.mrb[0].mxu0 %v2470
        %v2472 = vpop.f32.mrb[0].mxu0
        %v2473 = vadd.f32 %v2289, %v2472
        %v2474 = vpop.f32.mrb[0].mxu0
        %2475 = vmatprep.mubr.f32.mxu0 0.0
        %v2476 = vand.u32 %v1574, 4294901760
        %2477 = vmatmul.mubr.f32.gmra.mrb[0].mxu0 %v2476
        %v2478 = vpop.f32.mrb[0].mxu0
        %v2479 = vadd.f32 %v2297, %v2478
        %v2480 = vpop.f32.mrb[0].mxu0
        %2481 = vmatprep.mubr.f32.mxu0 0.0
        %v2482 = vand.u32 %v1577, 4294901760
        %2483 = vmatmul.mubr.f32.gmra.mrb[0].mxu0 %v2482
        %v2484 = vpop.f32.mrb[0].mxu0
        %v2485 = vadd.f32 %v2305, %v2484
        %v2486 = vpop.f32.mrb[0].mxu0
        %2487 = vmatprep.mubr.f32.mxu0 0.0
        %v2488 = vand.u32 %v1580, 4294901760
        %2489 = vmatmul.mubr.f32.gmra.mrb[0].mxu0 %v2488
        %v2490 = vpop.f32.mrb[0].mxu0
        %v2491 = vadd.f32 %v2313, %v2490
        %v2492 = vpop.f32.mrb[0].mxu0
        %2493 = vmatprep.mubr.f32.mxu0 0.0
        %v2494 = vand.u32 %v1583, 4294901760
        %2495 = vmatmul.mubr.f32.gmra.mrb[0].mxu0 %v2494
        %v2496 = vpop.f32.mrb[0].mxu0
        %v2497 = vadd.f32 %v2321, %v2496
        %v2498 = vpop.f32.mrb[0].mxu0
        %2499 = vmatprep.mubr.f32.mxu0 0.0
        %v2500 = vand.u32 %v1586, 4294901760
        %2501 = vmatmul.mubr.f32.gmra.mrb[0].mxu0 %v2500
        %v2502 = vpop.f32.mrb[0].mxu0
        %v2503 = vadd.f32 %v2329, %v2502
        %v2504 = vpop.f32.mrb[0].mxu0
        %2505 = vmatprep.mubr.f32.mxu0 0.0
        %v2506 = vand.u32 %v1589, 4294901760
        %2507 = vmatmul.mubr.f32.gmra.mrb[0].mxu0 %v2506
        %v2508 = vpop.f32.mrb[0].mxu0
        %v2509 = vadd.f32 %v2337, %v2508
        %v2510 = vpop.f32.mrb[0].mxu0
        %2511 = vmatprep.mubr.f32.mxu0 0.0
        %v2512 = vand.u32 %v1592, 4294901760
        %2513 = vmatmul.mubr.f32.gmra.mrb[0].mxu0 %v2512
        %v2514 = vpop.f32.mrb[0].mxu0
        %v2515 = vadd.f32 %v2345, %v2514
        %v2516 = vpop.f32.mrb[0].mxu0
        %2517 = vmatprep.mubr.f32.mxu0 0.0
        %v2518 = vand.u32 %v1595, 4294901760
        %2519 = vmatmul.mubr.f32.gmra.mrb[0].mxu0 %v2518
        %v2520 = vpop.f32.mrb[0].mxu0
        %v2521 = vadd.f32 %v2353, %v2520
        %v2522 = vpop.f32.mrb[0].mxu0
        %2523 = vmatprep.mubr.f32.mxu0 0.0
        %v2524 = vand.u32 %v1598, 4294901760
        %2525 = vmatmul.mubr.f32.gmra.mrb[0].mxu0 %v2524
        %v2526 = vpop.f32.mrb[0].mxu0
        %v2527 = vadd.f32 %v2361, %v2526
        %v2528 = vpop.f32.mrb[0].mxu0
        %2529 = vmatprep.mubr.f32.mxu0 0.0
        %v2530 = vand.u32 %v1601, 4294901760
        %2531 = vmatmul.mubr.f32.gmra.mrb[0].mxu0 %v2530
        %v2532 = vpop.f32.mrb[0].mxu0
        %v2533 = vadd.f32 %v2369, %v2532
        %v2534 = vpop.f32.mrb[0].mxu0
        %2535 = vdwg.mxu0
        %2536 = vmatprep.subr.mxu0 0.0
        %v2537 = vand.u32 %v1605, 4294901760
        %2538 = vmatpush1.msra.mxu0 %v2537
        %2539 = vmatprep.subr.mxu0 0.0
        %2540 = vmatpush1.msra.mxu0 0.0
        %2541 = vmatprep.subr.mxu0 0.0
        %2542 = vmatpush1.msra.mxu0 0.0
        %2543 = vmatprep.subr.mxu0 0.0
        %2544 = vmatpush1.msra.mxu0 0.0
        %2545 = vmatprep.subr.mxu0 0.0
        %2546 = vmatpush1.msra.mxu0 0.0
        %2547 = vmatprep.subr.mxu0 0.0
        %2548 = vmatpush1.msra.mxu0 0.0
        %2549 = vmatprep.subr.mxu0 0.0
        %2550 = vmatpush1.msra.mxu0 0.0
        %2551 = vmatprep.subr.mxu0 0.0
        %2552 = vmatpush1.msra.mxu0 0.0
        %2553 = vmatprep.subr.mxu0 0.0
        %2554 = vmatpush1.msra.mxu0 0.0
        %2555 = vmatprep.subr.mxu0 0.0
        %2556 = vmatpush1.msra.mxu0 0.0
        %2557 = vmatprep.subr.mxu0 0.0
        %2558 = vmatpush1.msra.mxu0 0.0
        %2559 = vmatprep.subr.mxu0 0.0
        %2560 = vmatpush1.msra.mxu0 0.0
        %2561 = vmatprep.subr.mxu0 0.0
        %2562 = vmatpush1.msra.mxu0 0.0
        %2563 = vmatprep.subr.mxu0 0.0
        %2564 = vmatpush1.msra.mxu0 0.0
        %2565 = vmatprep.subr.mxu0 0.0
        %2566 = vmatpush1.msra.mxu0 0.0
        %2567 = vmatprep.subr.mxu0 0.0
        %2568 = vmatpush1.msra.mxu0 0.0
        %2569 = vmatprep.subr.mxu0 0.0
        %2570 = vmatpush1.msra.mxu0 0.0
        %2571 = vmatprep.subr.mxu0 0.0
        %2572 = vmatpush1.msra.mxu0 0.0
        %2573 = vmatprep.subr.mxu0 0.0
        %2574 = vmatpush1.msra.mxu0 0.0
        %2575 = vmatprep.subr.mxu0 0.0
        %2576 = vmatpush1.msra.mxu0 0.0
        %2577 = vmatprep.subr.mxu0 0.0
        %2578 = vmatpush1.msra.mxu0 0.0
        %2579 = vmatprep.subr.mxu0 0.0
        %2580 = vmatpush1.msra.mxu0 0.0
        %2581 = vmatprep.subr.mxu0 0.0
        %2582 = vmatpush1.msra.mxu0 0.0
        %2583 = vmatprep.subr.mxu0 0.0
        %2584 = vmatpush1.msra.mxu0 0.0
        %2585 = vmatprep.subr.mxu0 0.0
        %2586 = vmatpush1.msra.mxu0 0.0
        %2587 = vmatprep.subr.mxu0 0.0
        %2588 = vmatpush1.msra.mxu0 0.0
        %2589 = vmatprep.subr.mxu0 0.0
        %2590 = vmatpush1.msra.mxu0 0.0
        %2591 = vmatprep.subr.mxu0 0.0
        %2592 = vmatpush1.msra.mxu0 0.0
        %2593 = vmatprep.subr.mxu0 0.0
        %2594 = vmatpush1.msra.mxu0 0.0
        %2595 = vmatprep.subr.mxu0 0.0
        %2596 = vmatpush1.msra.mxu0 0.0
        %2597 = vmatprep.subr.mxu0 0.0
        %2598 = vmatpush1.msra.mxu0 0.0
        %2599 = vmatprep.subr.mxu0 0.0
        %2600 = vmatpush1.msra.mxu0 0.0
        %2601 = vmatprep.mubr.f32.mxu0 0.0
        %v2602 = vand.u32 %v1556, 4294901760
        %2603 = vmatmul.mubr.f32.gmra.mrb[0].mxu0 %v2602
        %v2604 = vpop.f32.mrb[0].mxu0
        %v2605 = vadd.f32 %v2443, %v2604
        %v2606 = vpop.f32.mrb[0].mxu0
        %2607 = vmatprep.mubr.f32.mxu0 0.0
        %v2608 = vand.u32 %v1559, 4294901760
        %2609 = vmatmul.mubr.f32.gmra.mrb[0].mxu0 %v2608
        %v2610 = vpop.f32.mrb[0].mxu0
        %v2611 = vadd.f32 %v2449, %v2610
        %v2612 = vpop.f32.mrb[0].mxu0
        %2613 = vmatprep.mubr.f32.mxu0 0.0
        %v2614 = vand.u32 %v1562, 4294901760
        %2615 = vmatmul.mubr.f32.gmra.mrb[0].mxu0 %v2614
        %v2616 = vpop.f32.mrb[0].mxu0
        %v2617 = vadd.f32 %v2455, %v2616
        %v2618 = vpop.f32.mrb[0].mxu0
        %2619 = vmatprep.mubr.f32.mxu0 0.0
        %v2620 = vand.u32 %v1565, 4294901760
        %2621 = vmatmul.mubr.f32.gmra.mrb[0].mxu0 %v2620
        %v2622 = vpop.f32.mrb[0].mxu0
        %v2623 = vadd.f32 %v2461, %v2622
        %v2624 = vpop.f32.mrb[0].mxu0
        %2625 = vmatprep.mubr.f32.mxu0 0.0
        %v2626 = vand.u32 %v1568, 4294901760
        %2627 = vmatmul.mubr.f32.gmra.mrb[0].mxu0 %v2626
        %v2628 = vpop.f32.mrb[0].mxu0
        %v2629 = vadd.f32 %v2467, %v2628
        %v2630 = vpop.f32.mrb[0].mxu0
        %2631 = vmatprep.mubr.f32.mxu0 0.0
        %v2632 = vand.u32 %v1571, 4294901760
        %2633 = vmatmul.mubr.f32.gmra.mrb[0].mxu0 %v2632
        %v2634 = vpop.f32.mrb[0].mxu0
        %v2635 = vadd.f32 %v2473, %v2634
        %v2636 = vpop.f32.mrb[0].mxu0
        %2637 = vmatprep.mubr.f32.mxu0 0.0
        %v2638 = vand.u32 %v1574, 4294901760
        %2639 = vmatmul.mubr.f32.gmra.mrb[0].mxu0 %v2638
        %v2640 = vpop.f32.mrb[0].mxu0
        %v2641 = vadd.f32 %v2479, %v2640
        %v2642 = vpop.f32.mrb[0].mxu0
        %2643 = vmatprep.mubr.f32.mxu0 0.0
        %v2644 = vand.u32 %v1577, 4294901760
        %2645 = vmatmul.mubr.f32.gmra.mrb[0].mxu0 %v2644
        %v2646 = vpop.f32.mrb[0].mxu0
        %v2647 = vadd.f32 %v2485, %v2646
        %v2648 = vpop.f32.mrb[0].mxu0
        %2649 = vmatprep.mubr.f32.mxu0 0.0
        %v2650 = vand.u32 %v1580, 4294901760
        %2651 = vmatmul.mubr.f32.gmra.mrb[0].mxu0 %v2650
        %v2652 = vpop.f32.mrb[0].mxu0
        %v2653 = vadd.f32 %v2491, %v2652
        %v2654 = vpop.f32.mrb[0].mxu0
        %2655 = vmatprep.mubr.f32.mxu0 0.0
        %v2656 = vand.u32 %v1583, 4294901760
        %2657 = vmatmul.mubr.f32.gmra.mrb[0].mxu0 %v2656
        %v2658 = vpop.f32.mrb[0].mxu0
        %v2659 = vadd.f32 %v2497, %v2658
        %v2660 = vpop.f32.mrb[0].mxu0
        %2661 = vmatprep.mubr.f32.mxu0 0.0
        %v2662 = vand.u32 %v1586, 4294901760
        %2663 = vmatmul.mubr.f32.gmra.mrb[0].mxu0 %v2662
        %v2664 = vpop.f32.mrb[0].mxu0
        %v2665 = vadd.f32 %v2503, %v2664
        %v2666 = vpop.f32.mrb[0].mxu0
        %2667 = vmatprep.mubr.f32.mxu0 0.0
        %v2668 = vand.u32 %v1589, 4294901760
        %2669 = vmatmul.mubr.f32.gmra.mrb[0].mxu0 %v2668
        %v2670 = vpop.f32.mrb[0].mxu0
        %v2671 = vadd.f32 %v2509, %v2670
        %v2672 = vpop.f32.mrb[0].mxu0
        %2673 = vmatprep.mubr.f32.mxu0 0.0
        %v2674 = vand.u32 %v1592, 4294901760
        %2675 = vmatmul.mubr.f32.gmra.mrb[0].mxu0 %v2674
        %v2676 = vpop.f32.mrb[0].mxu0
        %v2677 = vadd.f32 %v2515, %v2676
        %v2678 = vpop.f32.mrb[0].mxu0
        %2679 = vmatprep.mubr.f32.mxu0 0.0
        %v2680 = vand.u32 %v1595, 4294901760
        %2681 = vmatmul.mubr.f32.gmra.mrb[0].mxu0 %v2680
        %v2682 = vpop.f32.mrb[0].mxu0
        %v2683 = vadd.f32 %v2521, %v2682
        %v2684 = vpop.f32.mrb[0].mxu0
        %2685 = vmatprep.mubr.f32.mxu0 0.0
        %v2686 = vand.u32 %v1598, 4294901760
        %2687 = vmatmul.mubr.f32.gmra.mrb[0].mxu0 %v2686
        %v2688 = vpop.f32.mrb[0].mxu0
        %v2689 = vadd.f32 %v2527, %v2688
        %v2690 = vpop.f32.mrb[0].mxu0
        %2691 = vmatprep.mubr.f32.mxu0 0.0
        %v2692 = vand.u32 %v1601, 4294901760
        %2693 = vmatmul.mubr.f32.gmra.mrb[0].mxu0 %v2692
        %v2694 = vpop.f32.mrb[0].mxu0
        %v2695 = vadd.f32 %v2533, %v2694
        %v2696 = vpop.f32.mrb[0].mxu0
        %2697 = vdwg.mxu0
        %v2698 = vsub.f32 %v218, %v2605
        %v2699 = vsub.f32 %v219, %v2611
        %v2700 = vsub.f32 %v220, %v2617
        %v2701 = vsub.f32 %v221, %v2623
        %v2702 = vsub.f32 %v222, %v2629
        %v2703 = vsub.f32 %v223, %v2635
        %v2704 = vsub.f32 %v224, %v2641
        %v2705 = vsub.f32 %v225, %v2647
        %v2706 = vsub.f32 %v226, %v2653
        %v2707 = vsub.f32 %v227, %v2659
        %v2708 = vsub.f32 %v228, %v2665
        %v2709 = vsub.f32 %v229, %v2671
        %v2710 = vsub.f32 %v230, %v2677
        %v2711 = vsub.f32 %v231, %v2683
        %v2712 = vsub.f32 %v232, %v2689
        %v2713 = vsub.f32 %v233, %v2695
        %v2714 = vmul.f32 %v2698, %v2698
        %v2715 = vmul.f32 %v2699, %v2699
        %v2716 = vmul.f32 %v2700, %v2700
        %v2717 = vmul.f32 %v2701, %v2701
        %v2718 = vmul.f32 %v2702, %v2702
        %v2719 = vmul.f32 %v2703, %v2703
        %v2720 = vmul.f32 %v2704, %v2704
        %v2721 = vmul.f32 %v2705, %v2705
        %v2722 = vmul.f32 %v2706, %v2706
        %v2723 = vmul.f32 %v2707, %v2707
        %v2724 = vmul.f32 %v2708, %v2708
        %v2725 = vmul.f32 %v2709, %v2709
        %v2726 = vmul.f32 %v2710, %v2710
        %v2727 = vmul.f32 %v2711, %v2711
        %v2728 = vmul.f32 %v2712, %v2712
        %v2729 = vmul.f32 %v2713, %v2713
        %2730 = vmatprep.subr.mxu0 0.0
        %v2731 = vand.u32 %v235, 4294901760
        %2732 = vmatpush1.msra.mxu0 %v2731
        %2733 = vmatprep.subr.mxu0 0.0
        %v2734 = vand.u32 %v236, 4294901760
        %2735 = vmatpush1.msra.mxu0 %v2734
        %2736 = vmatprep.subr.mxu0 0.0
        %v2737 = vand.u32 %v237, 4294901760
        %2738 = vmatpush1.msra.mxu0 %v2737
        %2739 = vmatprep.subr.mxu0 0.0
        %v2740 = vand.u32 %v238, 4294901760
        %2741 = vmatpush1.msra.mxu0 %v2740
        %2742 = vmatprep.subr.mxu0 0.0
        %v2743 = vand.u32 %v239, 4294901760
        %2744 = vmatpush1.msra.mxu0 %v2743
        %2745 = vmatprep.subr.mxu0 0.0
        %v2746 = vand.u32 %v240, 4294901760
        %2747 = vmatpush1.msra.mxu0 %v2746
        %2748 = vmatprep.subr.mxu0 0.0
        %v2749 = vand.u32 %v241, 4294901760
        %2750 = vmatpush1.msra.mxu0 %v2749
        %2751 = vmatprep.subr.mxu0 0.0
        %v2752 = vand.u32 %v242, 4294901760
        %2753 = vmatpush1.msra.mxu0 %v2752
        %2754 = vmatprep.subr.mxu0 0.0
        %v2755 = vand.u32 %v243, 4294901760
        %2756 = vmatpush1.msra.mxu0 %v2755
        %2757 = vmatprep.subr.mxu0 0.0
        %v2758 = vand.u32 %v244, 4294901760
        %2759 = vmatpush1.msra.mxu0 %v2758
        %2760 = vmatprep.subr.mxu0 0.0
        %v2761 = vand.u32 %v245, 4294901760
        %2762 = vmatpush1.msra.mxu0 %v2761
        %2763 = vmatprep.subr.mxu0 0.0
        %v2764 = vand.u32 %v246, 4294901760
        %2765 = vmatpush1.msra.mxu0 %v2764
        %2766 = vmatprep.subr.mxu0 0.0
        %v2767 = vand.u32 %v247, 4294901760
        %2768 = vmatpush1.msra.mxu0 %v2767
        %2769 = vmatprep.subr.mxu0 0.0
        %v2770 = vand.u32 %v248, 4294901760
        %2771 = vmatpush1.msra.mxu0 %v2770
        %2772 = vmatprep.subr.mxu0 0.0
        %v2773 = vand.u32 %v249, 4294901760
        %2774 = vmatpush1.msra.mxu0 %v2773
        %2775 = vmatprep.subr.mxu0 0.0
        %v2776 = vand.u32 %v250, 4294901760
        %2777 = vmatpush1.msra.mxu0 %v2776
        %2778 = vmatprep.subr.mxu0 0.0
        %2779 = vmatpush1.msra.mxu0 0.0
        %2780 = vmatprep.subr.mxu0 0.0
        %2781 = vmatpush1.msra.mxu0 0.0
        %2782 = vmatprep.subr.mxu0 0.0
        %2783 = vmatpush1.msra.mxu0 0.0
        %2784 = vmatprep.subr.mxu0 0.0
        %2785 = vmatpush1.msra.mxu0 0.0
        %2786 = vmatprep.subr.mxu0 0.0
        %2787 = vmatpush1.msra.mxu0 0.0
        %2788 = vmatprep.subr.mxu0 0.0
        %2789 = vmatpush1.msra.mxu0 0.0
        %2790 = vmatprep.subr.mxu0 0.0
        %2791 = vmatpush1.msra.mxu0 0.0
        %2792 = vmatprep.subr.mxu0 0.0
        %2793 = vmatpush1.msra.mxu0 0.0
        %2794 = vmatprep.subr.mxu0 0.0
        %2795 = vmatpush1.msra.mxu0 0.0
        %2796 = vmatprep.subr.mxu0 0.0
        %2797 = vmatpush1.msra.mxu0 0.0
        %2798 = vmatprep.subr.mxu0 0.0
        %2799 = vmatpush1.msra.mxu0 0.0
        %2800 = vmatprep.subr.mxu0 0.0
        %2801 = vmatpush1.msra.mxu0 0.0
        %2802 = vmatprep.subr.mxu0 0.0
        %2803 = vmatpush1.msra.mxu0 0.0
        %2804 = vmatprep.subr.mxu0 0.0
        %2805 = vmatpush1.msra.mxu0 0.0
        %2806 = vmatprep.subr.mxu0 0.0
        %2807 = vmatpush1.msra.mxu0 0.0
        %2808 = vmatprep.subr.mxu0 0.0
        %2809 = vmatpush1.msra.mxu0 0.0
        %2810 = vmatprep.mubr.f32.mxu0 0.0
        %v2811 = vand.u32 %v2714, 4294901760
        %v2812 = vsub.f32 %v2714, %v2811
        %v2813 = vand.u32 %v2812, 4294901760
        %v2814 = vsub.f32 %v2812, %v2813
        %v2815 = vand.u32 %v2814, 4294901760
        %2816 = vmatmul.mubr.f32.gmra.mrb[0].mxu0 %v2815
        %v2817 = vpop.f32.mrb[0].mxu0
        %v2818 = vadd.f32 0.0, %v2817
        %v2819 = vpop.f32.mrb[0].mxu0
        %2820 = vmatprep.mubr.f32.mxu0 0.0
        %v2821 = vand.u32 %v2715, 4294901760
        %v2822 = vsub.f32 %v2715, %v2821
        %v2823 = vand.u32 %v2822, 4294901760
        %v2824 = vsub.f32 %v2822, %v2823
        %v2825 = vand.u32 %v2824, 4294901760
        %2826 = vmatmul.mubr.f32.gmra.mrb[0].mxu0 %v2825
        %v2827 = vpop.f32.mrb[0].mxu0
        %v2828 = vadd.f32 0.0, %v2827
        %v2829 = vpop.f32.mrb[0].mxu0
        %2830 = vmatprep.mubr.f32.mxu0 0.0
        %v2831 = vand.u32 %v2716, 4294901760
        %v2832 = vsub.f32 %v2716, %v2831
        %v2833 = vand.u32 %v2832, 4294901760
        %v2834 = vsub.f32 %v2832, %v2833
        %v2835 = vand.u32 %v2834, 4294901760
        %2836 = vmatmul.mubr.f32.gmra.mrb[0].mxu0 %v2835
        %v2837 = vpop.f32.mrb[0].mxu0
        %v2838 = vadd.f32 0.0, %v2837
        %v2839 = vpop.f32.mrb[0].mxu0
        %2840 = vmatprep.mubr.f32.mxu0 0.0
        %v2841 = vand.u32 %v2717, 4294901760
        %v2842 = vsub.f32 %v2717, %v2841
        %v2843 = vand.u32 %v2842, 4294901760
        %v2844 = vsub.f32 %v2842, %v2843
        %v2845 = vand.u32 %v2844, 4294901760
        %2846 = vmatmul.mubr.f32.gmra.mrb[0].mxu0 %v2845
        %v2847 = vpop.f32.mrb[0].mxu0
        %v2848 = vadd.f32 0.0, %v2847
        %v2849 = vpop.f32.mrb[0].mxu0
        %2850 = vmatprep.mubr.f32.mxu0 0.0
        %v2851 = vand.u32 %v2718, 4294901760
        %v2852 = vsub.f32 %v2718, %v2851
        %v2853 = vand.u32 %v2852, 4294901760
        %v2854 = vsub.f32 %v2852, %v2853
        %v2855 = vand.u32 %v2854, 4294901760
        %2856 = vmatmul.mubr.f32.gmra.mrb[0].mxu0 %v2855
        %v2857 = vpop.f32.mrb[0].mxu0
        %v2858 = vadd.f32 0.0, %v2857
        %v2859 = vpop.f32.mrb[0].mxu0
        %2860 = vmatprep.mubr.f32.mxu0 0.0
        %v2861 = vand.u32 %v2719, 4294901760
        %v2862 = vsub.f32 %v2719, %v2861
        %v2863 = vand.u32 %v2862, 4294901760
        %v2864 = vsub.f32 %v2862, %v2863
        %v2865 = vand.u32 %v2864, 4294901760
        %2866 = vmatmul.mubr.f32.gmra.mrb[0].mxu0 %v2865
        %v2867 = vpop.f32.mrb[0].mxu0
        %v2868 = vadd.f32 0.0, %v2867
        %v2869 = vpop.f32.mrb[0].mxu0
        %2870 = vmatprep.mubr.f32.mxu0 0.0
        %v2871 = vand.u32 %v2720, 4294901760
        %v2872 = vsub.f32 %v2720, %v2871
        %v2873 = vand.u32 %v2872, 4294901760
        %v2874 = vsub.f32 %v2872, %v2873
        %v2875 = vand.u32 %v2874, 4294901760
        %2876 = vmatmul.mubr.f32.gmra.mrb[0].mxu0 %v2875
        %v2877 = vpop.f32.mrb[0].mxu0
        %v2878 = vadd.f32 0.0, %v2877
        %v2879 = vpop.f32.mrb[0].mxu0
        %2880 = vmatprep.mubr.f32.mxu0 0.0
        %v2881 = vand.u32 %v2721, 4294901760
        %v2882 = vsub.f32 %v2721, %v2881
        %v2883 = vand.u32 %v2882, 4294901760
        %v2884 = vsub.f32 %v2882, %v2883
        %v2885 = vand.u32 %v2884, 4294901760
        %2886 = vmatmul.mubr.f32.gmra.mrb[0].mxu0 %v2885
        %v2887 = vpop.f32.mrb[0].mxu0
        %v2888 = vadd.f32 0.0, %v2887
        %v2889 = vpop.f32.mrb[0].mxu0
        %2890 = vmatprep.mubr.f32.mxu0 0.0
        %v2891 = vand.u32 %v2722, 4294901760
        %v2892 = vsub.f32 %v2722, %v2891
        %v2893 = vand.u32 %v2892, 4294901760
        %v2894 = vsub.f32 %v2892, %v2893
        %v2895 = vand.u32 %v2894, 4294901760
        %2896 = vmatmul.mubr.f32.gmra.mrb[0].mxu0 %v2895
        %v2897 = vpop.f32.mrb[0].mxu0
        %v2898 = vadd.f32 0.0, %v2897
        %v2899 = vpop.f32.mrb[0].mxu0
        %2900 = vmatprep.mubr.f32.mxu0 0.0
        %v2901 = vand.u32 %v2723, 4294901760
        %v2902 = vsub.f32 %v2723, %v2901
        %v2903 = vand.u32 %v2902, 4294901760
        %v2904 = vsub.f32 %v2902, %v2903
        %v2905 = vand.u32 %v2904, 4294901760
        %2906 = vmatmul.mubr.f32.gmra.mrb[0].mxu0 %v2905
        %v2907 = vpop.f32.mrb[0].mxu0
        %v2908 = vadd.f32 0.0, %v2907
        %v2909 = vpop.f32.mrb[0].mxu0
        %2910 = vmatprep.mubr.f32.mxu0 0.0
        %v2911 = vand.u32 %v2724, 4294901760
        %v2912 = vsub.f32 %v2724, %v2911
        %v2913 = vand.u32 %v2912, 4294901760
        %v2914 = vsub.f32 %v2912, %v2913
        %v2915 = vand.u32 %v2914, 4294901760
        %2916 = vmatmul.mubr.f32.gmra.mrb[0].mxu0 %v2915
        %v2917 = vpop.f32.mrb[0].mxu0
        %v2918 = vadd.f32 0.0, %v2917
        %v2919 = vpop.f32.mrb[0].mxu0
        %2920 = vmatprep.mubr.f32.mxu0 0.0
        %v2921 = vand.u32 %v2725, 4294901760
        %v2922 = vsub.f32 %v2725, %v2921
        %v2923 = vand.u32 %v2922, 4294901760
        %v2924 = vsub.f32 %v2922, %v2923
        %v2925 = vand.u32 %v2924, 4294901760
        %2926 = vmatmul.mubr.f32.gmra.mrb[0].mxu0 %v2925
        %v2927 = vpop.f32.mrb[0].mxu0
        %v2928 = vadd.f32 0.0, %v2927
        %v2929 = vpop.f32.mrb[0].mxu0
        %2930 = vmatprep.mubr.f32.mxu0 0.0
        %v2931 = vand.u32 %v2726, 4294901760
        %v2932 = vsub.f32 %v2726, %v2931
        %v2933 = vand.u32 %v2932, 4294901760
        %v2934 = vsub.f32 %v2932, %v2933
        %v2935 = vand.u32 %v2934, 4294901760
        %2936 = vmatmul.mubr.f32.gmra.mrb[0].mxu0 %v2935
        %v2937 = vpop.f32.mrb[0].mxu0
        %v2938 = vadd.f32 0.0, %v2937
        %v2939 = vpop.f32.mrb[0].mxu0
        %2940 = vmatprep.mubr.f32.mxu0 0.0
        %v2941 = vand.u32 %v2727, 4294901760
        %v2942 = vsub.f32 %v2727, %v2941
        %v2943 = vand.u32 %v2942, 4294901760
        %v2944 = vsub.f32 %v2942, %v2943
        %v2945 = vand.u32 %v2944, 4294901760
        %2946 = vmatmul.mubr.f32.gmra.mrb[0].mxu0 %v2945
        %v2947 = vpop.f32.mrb[0].mxu0
        %v2948 = vadd.f32 0.0, %v2947
        %v2949 = vpop.f32.mrb[0].mxu0
        %2950 = vmatprep.mubr.f32.mxu0 0.0
        %v2951 = vand.u32 %v2728, 4294901760
        %v2952 = vsub.f32 %v2728, %v2951
        %v2953 = vand.u32 %v2952, 4294901760
        %v2954 = vsub.f32 %v2952, %v2953
        %v2955 = vand.u32 %v2954, 4294901760
        %2956 = vmatmul.mubr.f32.gmra.mrb[0].mxu0 %v2955
        %v2957 = vpop.f32.mrb[0].mxu0
        %v2958 = vadd.f32 0.0, %v2957
        %v2959 = vpop.f32.mrb[0].mxu0
        %2960 = vmatprep.mubr.f32.mxu0 0.0
        %v2961 = vand.u32 %v2729, 4294901760
        %v2962 = vsub.f32 %v2729, %v2961
        %v2963 = vand.u32 %v2962, 4294901760
        %v2964 = vsub.f32 %v2962, %v2963
        %v2965 = vand.u32 %v2964, 4294901760
        %2966 = vmatmul.mubr.f32.gmra.mrb[0].mxu0 %v2965
        %v2967 = vpop.f32.mrb[0].mxu0
        %v2968 = vadd.f32 0.0, %v2967
        %v2969 = vpop.f32.mrb[0].mxu0
        %2970 = vdwg.mxu0
        %2971 = vmatprep.subr.mxu0 0.0
        %v2972 = vand.u32 %v235, 4294901760
        %v2973 = vsub.f32 %v235, %v2972
        %v2974 = vand.u32 %v2973, 4294901760
        %v2975 = vsub.f32 %v2973, %v2974
        %v2976 = vand.u32 %v2975, 4294901760
        %2977 = vmatpush1.msra.mxu0 %v2976
        %2978 = vmatprep.subr.mxu0 0.0
        %v2979 = vand.u32 %v236, 4294901760
        %v2980 = vsub.f32 %v236, %v2979
        %v2981 = vand.u32 %v2980, 4294901760
        %v2982 = vsub.f32 %v2980, %v2981
        %v2983 = vand.u32 %v2982, 4294901760
        %2984 = vmatpush1.msra.mxu0 %v2983
        %2985 = vmatprep.subr.mxu0 0.0
        %v2986 = vand.u32 %v237, 4294901760
        %v2987 = vsub.f32 %v237, %v2986
        %v2988 = vand.u32 %v2987, 4294901760
        %v2989 = vsub.f32 %v2987, %v2988
        %v2990 = vand.u32 %v2989, 4294901760
        %2991 = vmatpush1.msra.mxu0 %v2990
        %2992 = vmatprep.subr.mxu0 0.0
        %v2993 = vand.u32 %v238, 4294901760
        %v2994 = vsub.f32 %v238, %v2993
        %v2995 = vand.u32 %v2994, 4294901760
        %v2996 = vsub.f32 %v2994, %v2995
        %v2997 = vand.u32 %v2996, 4294901760
        %2998 = vmatpush1.msra.mxu0 %v2997
        %2999 = vmatprep.subr.mxu0 0.0
        %v3000 = vand.u32 %v239, 4294901760
        %v3001 = vsub.f32 %v239, %v3000
        %v3002 = vand.u32 %v3001, 4294901760
        %v3003 = vsub.f32 %v3001, %v3002
        %v3004 = vand.u32 %v3003, 4294901760
        %3005 = vmatpush1.msra.mxu0 %v3004
        %3006 = vmatprep.subr.mxu0 0.0
        %v3007 = vand.u32 %v240, 4294901760
        %v3008 = vsub.f32 %v240, %v3007
        %v3009 = vand.u32 %v3008, 4294901760
        %v3010 = vsub.f32 %v3008, %v3009
        %v3011 = vand.u32 %v3010, 4294901760
        %3012 = vmatpush1.msra.mxu0 %v3011
        %3013 = vmatprep.subr.mxu0 0.0
        %v3014 = vand.u32 %v241, 4294901760
        %v3015 = vsub.f32 %v241, %v3014
        %v3016 = vand.u32 %v3015, 4294901760
        %v3017 = vsub.f32 %v3015, %v3016
        %v3018 = vand.u32 %v3017, 4294901760
        %3019 = vmatpush1.msra.mxu0 %v3018
        %3020 = vmatprep.subr.mxu0 0.0
        %v3021 = vand.u32 %v242, 4294901760
        %v3022 = vsub.f32 %v242, %v3021
        %v3023 = vand.u32 %v3022, 4294901760
        %v3024 = vsub.f32 %v3022, %v3023
        %v3025 = vand.u32 %v3024, 4294901760
        %3026 = vmatpush1.msra.mxu0 %v3025
        %3027 = vmatprep.subr.mxu0 0.0
        %v3028 = vand.u32 %v243, 4294901760
        %v3029 = vsub.f32 %v243, %v3028
        %v3030 = vand.u32 %v3029, 4294901760
        %v3031 = vsub.f32 %v3029, %v3030
        %v3032 = vand.u32 %v3031, 4294901760
        %3033 = vmatpush1.msra.mxu0 %v3032
        %3034 = vmatprep.subr.mxu0 0.0
        %v3035 = vand.u32 %v244, 4294901760
        %v3036 = vsub.f32 %v244, %v3035
        %v3037 = vand.u32 %v3036, 4294901760
        %v3038 = vsub.f32 %v3036, %v3037
        %v3039 = vand.u32 %v3038, 4294901760
        %3040 = vmatpush1.msra.mxu0 %v3039
        %3041 = vmatprep.subr.mxu0 0.0
        %v3042 = vand.u32 %v245, 4294901760
        %v3043 = vsub.f32 %v245, %v3042
        %v3044 = vand.u32 %v3043, 4294901760
        %v3045 = vsub.f32 %v3043, %v3044
        %v3046 = vand.u32 %v3045, 4294901760
        %3047 = vmatpush1.msra.mxu0 %v3046
        %3048 = vmatprep.subr.mxu0 0.0
        %v3049 = vand.u32 %v246, 4294901760
        %v3050 = vsub.f32 %v246, %v3049
        %v3051 = vand.u32 %v3050, 4294901760
        %v3052 = vsub.f32 %v3050, %v3051
        %v3053 = vand.u32 %v3052, 4294901760
        %3054 = vmatpush1.msra.mxu0 %v3053
        %3055 = vmatprep.subr.mxu0 0.0
        %v3056 = vand.u32 %v247, 4294901760
        %v3057 = vsub.f32 %v247, %v3056
        %v3058 = vand.u32 %v3057, 4294901760
        %v3059 = vsub.f32 %v3057, %v3058
        %v3060 = vand.u32 %v3059, 4294901760
        %3061 = vmatpush1.msra.mxu0 %v3060
        %3062 = vmatprep.subr.mxu0 0.0
        %v3063 = vand.u32 %v248, 4294901760
        %v3064 = vsub.f32 %v248, %v3063
        %v3065 = vand.u32 %v3064, 4294901760
        %v3066 = vsub.f32 %v3064, %v3065
        %v3067 = vand.u32 %v3066, 4294901760
        %3068 = vmatpush1.msra.mxu0 %v3067
        %3069 = vmatprep.subr.mxu0 0.0
        %v3070 = vand.u32 %v249, 4294901760
        %v3071 = vsub.f32 %v249, %v3070
        %v3072 = vand.u32 %v3071, 4294901760
        %v3073 = vsub.f32 %v3071, %v3072
        %v3074 = vand.u32 %v3073, 4294901760
        %3075 = vmatpush1.msra.mxu0 %v3074
        %3076 = vmatprep.subr.mxu0 0.0
        %v3077 = vand.u32 %v250, 4294901760
        %v3078 = vsub.f32 %v250, %v3077
        %v3079 = vand.u32 %v3078, 4294901760
        %v3080 = vsub.f32 %v3078, %v3079
        %v3081 = vand.u32 %v3080, 4294901760
        %3082 = vmatpush1.msra.mxu0 %v3081
        %3083 = vmatprep.subr.mxu0 0.0
        %3084 = vmatpush1.msra.mxu0 0.0
        %3085 = vmatprep.subr.mxu0 0.0
        %3086 = vmatpush1.msra.mxu0 0.0
        %3087 = vmatprep.subr.mxu0 0.0
        %3088 = vmatpush1.msra.mxu0 0.0
        %3089 = vmatprep.subr.mxu0 0.0
        %3090 = vmatpush1.msra.mxu0 0.0
        %3091 = vmatprep.subr.mxu0 0.0
        %3092 = vmatpush1.msra.mxu0 0.0
        %3093 = vmatprep.subr.mxu0 0.0
        %3094 = vmatpush1.msra.mxu0 0.0
        %3095 = vmatprep.subr.mxu0 0.0
        %3096 = vmatpush1.msra.mxu0 0.0
        %3097 = vmatprep.subr.mxu0 0.0
        %3098 = vmatpush1.msra.mxu0 0.0
        %3099 = vmatprep.subr.mxu0 0.0
        %3100 = vmatpush1.msra.mxu0 0.0
        %3101 = vmatprep.subr.mxu0 0.0
        %3102 = vmatpush1.msra.mxu0 0.0
        %3103 = vmatprep.subr.mxu0 0.0
        %3104 = vmatpush1.msra.mxu0 0.0
        %3105 = vmatprep.subr.mxu0 0.0
        %3106 = vmatpush1.msra.mxu0 0.0
        %3107 = vmatprep.subr.mxu0 0.0
        %3108 = vmatpush1.msra.mxu0 0.0
        %3109 = vmatprep.subr.mxu0 0.0
        %3110 = vmatpush1.msra.mxu0 0.0
        %3111 = vmatprep.subr.mxu0 0.0
        %3112 = vmatpush1.msra.mxu0 0.0
        %3113 = vmatprep.subr.mxu0 0.0
        %3114 = vmatpush1.msra.mxu0 0.0
        %3115 = vmatprep.mubr.f32.mxu0 0.0
        %v3116 = vand.u32 %v2714, 4294901760
        %3117 = vmatmul.mubr.f32.gmra.mrb[0].mxu0 %v3116
        %v3118 = vpop.f32.mrb[0].mxu0
        %v3119 = vadd.f32 %v2818, %v3118
        %v3120 = vpop.f32.mrb[0].mxu0
        %3121 = vmatprep.mubr.f32.mxu0 0.0
        %v3122 = vand.u32 %v2715, 4294901760
        %3123 = vmatmul.mubr.f32.gmra.mrb[0].mxu0 %v3122
        %v3124 = vpop.f32.mrb[0].mxu0
        %v3125 = vadd.f32 %v2828, %v3124
        %v3126 = vpop.f32.mrb[0].mxu0
        %3127 = vmatprep.mubr.f32.mxu0 0.0
        %v3128 = vand.u32 %v2716, 4294901760
        %3129 = vmatmul.mubr.f32.gmra.mrb[0].mxu0 %v3128
        %v3130 = vpop.f32.mrb[0].mxu0
        %v3131 = vadd.f32 %v2838, %v3130
        %v3132 = vpop.f32.mrb[0].mxu0
        %3133 = vmatprep.mubr.f32.mxu0 0.0
        %v3134 = vand.u32 %v2717, 4294901760
        %3135 = vmatmul.mubr.f32.gmra.mrb[0].mxu0 %v3134
        %v3136 = vpop.f32.mrb[0].mxu0
        %v3137 = vadd.f32 %v2848, %v3136
        %v3138 = vpop.f32.mrb[0].mxu0
        %3139 = vmatprep.mubr.f32.mxu0 0.0
        %v3140 = vand.u32 %v2718, 4294901760
        %3141 = vmatmul.mubr.f32.gmra.mrb[0].mxu0 %v3140
        %v3142 = vpop.f32.mrb[0].mxu0
        %v3143 = vadd.f32 %v2858, %v3142
        %v3144 = vpop.f32.mrb[0].mxu0
        %3145 = vmatprep.mubr.f32.mxu0 0.0
        %v3146 = vand.u32 %v2719, 4294901760
        %3147 = vmatmul.mubr.f32.gmra.mrb[0].mxu0 %v3146
        %v3148 = vpop.f32.mrb[0].mxu0
        %v3149 = vadd.f32 %v2868, %v3148
        %v3150 = vpop.f32.mrb[0].mxu0
        %3151 = vmatprep.mubr.f32.mxu0 0.0
        %v3152 = vand.u32 %v2720, 4294901760
        %3153 = vmatmul.mubr.f32.gmra.mrb[0].mxu0 %v3152
        %v3154 = vpop.f32.mrb[0].mxu0
        %v3155 = vadd.f32 %v2878, %v3154
        %v3156 = vpop.f32.mrb[0].mxu0
        %3157 = vmatprep.mubr.f32.mxu0 0.0
        %v3158 = vand.u32 %v2721, 4294901760
        %3159 = vmatmul.mubr.f32.gmra.mrb[0].mxu0 %v3158
        %v3160 = vpop.f32.mrb[0].mxu0
        %v3161 = vadd.f32 %v2888, %v3160
        %v3162 = vpop.f32.mrb[0].mxu0
        %3163 = vmatprep.mubr.f32.mxu0 0.0
        %v3164 = vand.u32 %v2722, 4294901760
        %3165 = vmatmul.mubr.f32.gmra.mrb[0].mxu0 %v3164
        %v3166 = vpop.f32.mrb[0].mxu0
        %v3167 = vadd.f32 %v2898, %v3166
        %v3168 = vpop.f32.mrb[0].mxu0
        %3169 = vmatprep.mubr.f32.mxu0 0.0
        %v3170 = vand.u32 %v2723, 4294901760
        %3171 = vmatmul.mubr.f32.gmra.mrb[0].mxu0 %v3170
        %v3172 = vpop.f32.mrb[0].mxu0
        %v3173 = vadd.f32 %v2908, %v3172
        %v3174 = vpop.f32.mrb[0].mxu0
        %3175 = vmatprep.mubr.f32.mxu0 0.0
        %v3176 = vand.u32 %v2724, 4294901760
        %3177 = vmatmul.mubr.f32.gmra.mrb[0].mxu0 %v3176
        %v3178 = vpop.f32.mrb[0].mxu0
        %v3179 = vadd.f32 %v2918, %v3178
        %v3180 = vpop.f32.mrb[0].mxu0
        %3181 = vmatprep.mubr.f32.mxu0 0.0
        %v3182 = vand.u32 %v2725, 4294901760
        %3183 = vmatmul.mubr.f32.gmra.mrb[0].mxu0 %v3182
        %v3184 = vpop.f32.mrb[0].mxu0
        %v3185 = vadd.f32 %v2928, %v3184
        %v3186 = vpop.f32.mrb[0].mxu0
        %3187 = vmatprep.mubr.f32.mxu0 0.0
        %v3188 = vand.u32 %v2726, 4294901760
        %3189 = vmatmul.mubr.f32.gmra.mrb[0].mxu0 %v3188
        %v3190 = vpop.f32.mrb[0].mxu0
        %v3191 = vadd.f32 %v2938, %v3190
        %v3192 = vpop.f32.mrb[0].mxu0
        %3193 = vmatprep.mubr.f32.mxu0 0.0
        %v3194 = vand.u32 %v2727, 4294901760
        %3195 = vmatmul.mubr.f32.gmra.mrb[0].mxu0 %v3194
        %v3196 = vpop.f32.mrb[0].mxu0
        %v3197 = vadd.f32 %v2948, %v3196
        %v3198 = vpop.f32.mrb[0].mxu0
        %3199 = vmatprep.mubr.f32.mxu0 0.0
        %v3200 = vand.u32 %v2728, 4294901760
        %3201 = vmatmul.mubr.f32.gmra.mrb[0].mxu0 %v3200
        %v3202 = vpop.f32.mrb[0].mxu0
        %v3203 = vadd.f32 %v2958, %v3202
        %v3204 = vpop.f32.mrb[0].mxu0
        %3205 = vmatprep.mubr.f32.mxu0 0.0
        %v3206 = vand.u32 %v2729, 4294901760
        %3207 = vmatmul.mubr.f32.gmra.mrb[0].mxu0 %v3206
        %v3208 = vpop.f32.mrb[0].mxu0
        %v3209 = vadd.f32 %v2968, %v3208
        %v3210 = vpop.f32.mrb[0].mxu0
        %3211 = vdwg.mxu0
        %3212 = vmatprep.subr.mxu0 0.0
        %v3213 = vand.u32 %v235, 4294901760
        %v3214 = vsub.f32 %v235, %v3213
        %3215 = vmatpush1.msra.mxu0 %v3214
        %3216 = vmatprep.subr.mxu0 0.0
        %v3217 = vand.u32 %v236, 4294901760
        %v3218 = vsub.f32 %v236, %v3217
        %3219 = vmatpush1.msra.mxu0 %v3218
        %3220 = vmatprep.subr.mxu0 0.0
        %v3221 = vand.u32 %v237, 4294901760
        %v3222 = vsub.f32 %v237, %v3221
        %3223 = vmatpush1.msra.mxu0 %v3222
        %3224 = vmatprep.subr.mxu0 0.0
        %v3225 = vand.u32 %v238, 4294901760
        %v3226 = vsub.f32 %v238, %v3225
        %3227 = vmatpush1.msra.mxu0 %v3226
        %3228 = vmatprep.subr.mxu0 0.0
        %v3229 = vand.u32 %v239, 4294901760
        %v3230 = vsub.f32 %v239, %v3229
        %3231 = vmatpush1.msra.mxu0 %v3230
        %3232 = vmatprep.subr.mxu0 0.0
        %v3233 = vand.u32 %v240, 4294901760
        %v3234 = vsub.f32 %v240, %v3233
        %3235 = vmatpush1.msra.mxu0 %v3234
        %3236 = vmatprep.subr.mxu0 0.0
        %v3237 = vand.u32 %v241, 4294901760
        %v3238 = vsub.f32 %v241, %v3237
        %3239 = vmatpush1.msra.mxu0 %v3238
        %3240 = vmatprep.subr.mxu0 0.0
        %v3241 = vand.u32 %v242, 4294901760
        %v3242 = vsub.f32 %v242, %v3241
        %3243 = vmatpush1.msra.mxu0 %v3242
        %3244 = vmatprep.subr.mxu0 0.0
        %v3245 = vand.u32 %v243, 4294901760
        %v3246 = vsub.f32 %v243, %v3245
        %3247 = vmatpush1.msra.mxu0 %v3246
        %3248 = vmatprep.subr.mxu0 0.0
        %v3249 = vand.u32 %v244, 4294901760
        %v3250 = vsub.f32 %v244, %v3249
        %3251 = vmatpush1.msra.mxu0 %v3250
        %3252 = vmatprep.subr.mxu0 0.0
        %v3253 = vand.u32 %v245, 4294901760
        %v3254 = vsub.f32 %v245, %v3253
        %3255 = vmatpush1.msra.mxu0 %v3254
        %3256 = vmatprep.subr.mxu0 0.0
        %v3257 = vand.u32 %v246, 4294901760
        %v3258 = vsub.f32 %v246, %v3257
        %3259 = vmatpush1.msra.mxu0 %v3258
        %3260 = vmatprep.subr.mxu0 0.0
        %v3261 = vand.u32 %v247, 4294901760
        %v3262 = vsub.f32 %v247, %v3261
        %3263 = vmatpush1.msra.mxu0 %v3262
        %3264 = vmatprep.subr.mxu0 0.0
        %v3265 = vand.u32 %v248, 4294901760
        %v3266 = vsub.f32 %v248, %v3265
        %3267 = vmatpush1.msra.mxu0 %v3266
        %3268 = vmatprep.subr.mxu0 0.0
        %v3269 = vand.u32 %v249, 4294901760
        %v3270 = vsub.f32 %v249, %v3269
        %3271 = vmatpush1.msra.mxu0 %v3270
        %3272 = vmatprep.subr.mxu0 0.0
        %v3273 = vand.u32 %v250, 4294901760
        %v3274 = vsub.f32 %v250, %v3273
        %3275 = vmatpush1.msra.mxu0 %v3274
        %3276 = vmatprep.subr.mxu0 0.0
        %3277 = vmatpush1.msra.mxu0 0.0
        %3278 = vmatprep.subr.mxu0 0.0
        %3279 = vmatpush1.msra.mxu0 0.0
        %3280 = vmatprep.subr.mxu0 0.0
        %3281 = vmatpush1.msra.mxu0 0.0
        %3282 = vmatprep.subr.mxu0 0.0
        %3283 = vmatpush1.msra.mxu0 0.0
        %3284 = vmatprep.subr.mxu0 0.0
        %3285 = vmatpush1.msra.mxu0 0.0
        %3286 = vmatprep.subr.mxu0 0.0
        %3287 = vmatpush1.msra.mxu0 0.0
        %3288 = vmatprep.subr.mxu0 0.0
        %3289 = vmatpush1.msra.mxu0 0.0
        %3290 = vmatprep.subr.mxu0 0.0
        %3291 = vmatpush1.msra.mxu0 0.0
        %3292 = vmatprep.subr.mxu0 0.0
        %3293 = vmatpush1.msra.mxu0 0.0
        %3294 = vmatprep.subr.mxu0 0.0
        %3295 = vmatpush1.msra.mxu0 0.0
        %3296 = vmatprep.subr.mxu0 0.0
        %3297 = vmatpush1.msra.mxu0 0.0
        %3298 = vmatprep.subr.mxu0 0.0
        %3299 = vmatpush1.msra.mxu0 0.0
        %3300 = vmatprep.subr.mxu0 0.0
        %3301 = vmatpush1.msra.mxu0 0.0
        %3302 = vmatprep.subr.mxu0 0.0
        %3303 = vmatpush1.msra.mxu0 0.0
        %3304 = vmatprep.subr.mxu0 0.0
        %3305 = vmatpush1.msra.mxu0 0.0
        %3306 = vmatprep.subr.mxu0 0.0
        %3307 = vmatpush1.msra.mxu0 0.0
        %3308 = vmatprep.mubr.f32.mxu0 0.0
        %v3309 = vand.u32 %v2714, 4294901760
        %v3310 = vsub.f32 %v2714, %v3309
        %3311 = vmatmul.mubr.f32.gmra.mrb[0].mxu0 %v3310
        %v3312 = vpop.f32.mrb[0].mxu0
        %v3313 = vadd.f32 %v3119, %v3312
        %v3314 = vpop.f32.mrb[0].mxu0
        %3315 = vmatprep.mubr.f32.mxu0 0.0
        %v3316 = vand.u32 %v2715, 4294901760
        %v3317 = vsub.f32 %v2715, %v3316
        %3318 = vmatmul.mubr.f32.gmra.mrb[0].mxu0 %v3317
        %v3319 = vpop.f32.mrb[0].mxu0
        %v3320 = vadd.f32 %v3125, %v3319
        %v3321 = vpop.f32.mrb[0].mxu0
        %3322 = vmatprep.mubr.f32.mxu0 0.0
        %v3323 = vand.u32 %v2716, 4294901760
        %v3324 = vsub.f32 %v2716, %v3323
        %3325 = vmatmul.mubr.f32.gmra.mrb[0].mxu0 %v3324
        %v3326 = vpop.f32.mrb[0].mxu0
        %v3327 = vadd.f32 %v3131, %v3326
        %v3328 = vpop.f32.mrb[0].mxu0
        %3329 = vmatprep.mubr.f32.mxu0 0.0
        %v3330 = vand.u32 %v2717, 4294901760
        %v3331 = vsub.f32 %v2717, %v3330
        %3332 = vmatmul.mubr.f32.gmra.mrb[0].mxu0 %v3331
        %v3333 = vpop.f32.mrb[0].mxu0
        %v3334 = vadd.f32 %v3137, %v3333
        %v3335 = vpop.f32.mrb[0].mxu0
        %3336 = vmatprep.mubr.f32.mxu0 0.0
        %v3337 = vand.u32 %v2718, 4294901760
        %v3338 = vsub.f32 %v2718, %v3337
        %3339 = vmatmul.mubr.f32.gmra.mrb[0].mxu0 %v3338
        %v3340 = vpop.f32.mrb[0].mxu0
        %v3341 = vadd.f32 %v3143, %v3340
        %v3342 = vpop.f32.mrb[0].mxu0
        %3343 = vmatprep.mubr.f32.mxu0 0.0
        %v3344 = vand.u32 %v2719, 4294901760
        %v3345 = vsub.f32 %v2719, %v3344
        %3346 = vmatmul.mubr.f32.gmra.mrb[0].mxu0 %v3345
        %v3347 = vpop.f32.mrb[0].mxu0
        %v3348 = vadd.f32 %v3149, %v3347
        %v3349 = vpop.f32.mrb[0].mxu0
        %3350 = vmatprep.mubr.f32.mxu0 0.0
        %v3351 = vand.u32 %v2720, 4294901760
        %v3352 = vsub.f32 %v2720, %v3351
        %3353 = vmatmul.mubr.f32.gmra.mrb[0].mxu0 %v3352
        %v3354 = vpop.f32.mrb[0].mxu0
        %v3355 = vadd.f32 %v3155, %v3354
        %v3356 = vpop.f32.mrb[0].mxu0
        %3357 = vmatprep.mubr.f32.mxu0 0.0
        %v3358 = vand.u32 %v2721, 4294901760
        %v3359 = vsub.f32 %v2721, %v3358
        %3360 = vmatmul.mubr.f32.gmra.mrb[0].mxu0 %v3359
        %v3361 = vpop.f32.mrb[0].mxu0
        %v3362 = vadd.f32 %v3161, %v3361
        %v3363 = vpop.f32.mrb[0].mxu0
        %3364 = vmatprep.mubr.f32.mxu0 0.0
        %v3365 = vand.u32 %v2722, 4294901760
        %v3366 = vsub.f32 %v2722, %v3365
        %3367 = vmatmul.mubr.f32.gmra.mrb[0].mxu0 %v3366
        %v3368 = vpop.f32.mrb[0].mxu0
        %v3369 = vadd.f32 %v3167, %v3368
        %v3370 = vpop.f32.mrb[0].mxu0
        %3371 = vmatprep.mubr.f32.mxu0 0.0
        %v3372 = vand.u32 %v2723, 4294901760
        %v3373 = vsub.f32 %v2723, %v3372
        %3374 = vmatmul.mubr.f32.gmra.mrb[0].mxu0 %v3373
        %v3375 = vpop.f32.mrb[0].mxu0
        %v3376 = vadd.f32 %v3173, %v3375
        %v3377 = vpop.f32.mrb[0].mxu0
        %3378 = vmatprep.mubr.f32.mxu0 0.0
        %v3379 = vand.u32 %v2724, 4294901760
        %v3380 = vsub.f32 %v2724, %v3379
        %3381 = vmatmul.mubr.f32.gmra.mrb[0].mxu0 %v3380
        %v3382 = vpop.f32.mrb[0].mxu0
        %v3383 = vadd.f32 %v3179, %v3382
        %v3384 = vpop.f32.mrb[0].mxu0
        %3385 = vmatprep.mubr.f32.mxu0 0.0
        %v3386 = vand.u32 %v2725, 4294901760
        %v3387 = vsub.f32 %v2725, %v3386
        %3388 = vmatmul.mubr.f32.gmra.mrb[0].mxu0 %v3387
        %v3389 = vpop.f32.mrb[0].mxu0
        %v3390 = vadd.f32 %v3185, %v3389
        %v3391 = vpop.f32.mrb[0].mxu0
        %3392 = vmatprep.mubr.f32.mxu0 0.0
        %v3393 = vand.u32 %v2726, 4294901760
        %v3394 = vsub.f32 %v2726, %v3393
        %3395 = vmatmul.mubr.f32.gmra.mrb[0].mxu0 %v3394
        %v3396 = vpop.f32.mrb[0].mxu0
        %v3397 = vadd.f32 %v3191, %v3396
        %v3398 = vpop.f32.mrb[0].mxu0
        %3399 = vmatprep.mubr.f32.mxu0 0.0
        %v3400 = vand.u32 %v2727, 4294901760
        %v3401 = vsub.f32 %v2727, %v3400
        %3402 = vmatmul.mubr.f32.gmra.mrb[0].mxu0 %v3401
        %v3403 = vpop.f32.mrb[0].mxu0
        %v3404 = vadd.f32 %v3197, %v3403
        %v3405 = vpop.f32.mrb[0].mxu0
        %3406 = vmatprep.mubr.f32.mxu0 0.0
        %v3407 = vand.u32 %v2728, 4294901760
        %v3408 = vsub.f32 %v2728, %v3407
        %3409 = vmatmul.mubr.f32.gmra.mrb[0].mxu0 %v3408
        %v3410 = vpop.f32.mrb[0].mxu0
        %v3411 = vadd.f32 %v3203, %v3410
        %v3412 = vpop.f32.mrb[0].mxu0
        %3413 = vmatprep.mubr.f32.mxu0 0.0
        %v3414 = vand.u32 %v2729, 4294901760
        %v3415 = vsub.f32 %v2729, %v3414
        %3416 = vmatmul.mubr.f32.gmra.mrb[0].mxu0 %v3415
        %v3417 = vpop.f32.mrb[0].mxu0
        %v3418 = vadd.f32 %v3209, %v3417
        %v3419 = vpop.f32.mrb[0].mxu0
        %3420 = vdwg.mxu0
        %3421 = vmatprep.subr.mxu0 0.0
        %v3422 = vand.u32 %v235, 4294901760
        %3423 = vmatpush1.msra.mxu0 %v3422
        %3424 = vmatprep.subr.mxu0 0.0
        %v3425 = vand.u32 %v236, 4294901760
        %3426 = vmatpush1.msra.mxu0 %v3425
        %3427 = vmatprep.subr.mxu0 0.0
        %v3428 = vand.u32 %v237, 4294901760
        %3429 = vmatpush1.msra.mxu0 %v3428
        %3430 = vmatprep.subr.mxu0 0.0
        %v3431 = vand.u32 %v238, 4294901760
        %3432 = vmatpush1.msra.mxu0 %v3431
        %3433 = vmatprep.subr.mxu0 0.0
        %v3434 = vand.u32 %v239, 4294901760
        %3435 = vmatpush1.msra.mxu0 %v3434
        %3436 = vmatprep.subr.mxu0 0.0
        %v3437 = vand.u32 %v240, 4294901760
        %3438 = vmatpush1.msra.mxu0 %v3437
        %3439 = vmatprep.subr.mxu0 0.0
        %v3440 = vand.u32 %v241, 4294901760
        %3441 = vmatpush1.msra.mxu0 %v3440
        %3442 = vmatprep.subr.mxu0 0.0
        %v3443 = vand.u32 %v242, 4294901760
        %3444 = vmatpush1.msra.mxu0 %v3443
        %3445 = vmatprep.subr.mxu0 0.0
        %v3446 = vand.u32 %v243, 4294901760
        %3447 = vmatpush1.msra.mxu0 %v3446
        %3448 = vmatprep.subr.mxu0 0.0
        %v3449 = vand.u32 %v244, 4294901760
        %3450 = vmatpush1.msra.mxu0 %v3449
        %3451 = vmatprep.subr.mxu0 0.0
        %v3452 = vand.u32 %v245, 4294901760
        %3453 = vmatpush1.msra.mxu0 %v3452
        %3454 = vmatprep.subr.mxu0 0.0
        %v3455 = vand.u32 %v246, 4294901760
        %3456 = vmatpush1.msra.mxu0 %v3455
        %3457 = vmatprep.subr.mxu0 0.0
        %v3458 = vand.u32 %v247, 4294901760
        %3459 = vmatpush1.msra.mxu0 %v3458
        %3460 = vmatprep.subr.mxu0 0.0
        %v3461 = vand.u32 %v248, 4294901760
        %3462 = vmatpush1.msra.mxu0 %v3461
        %3463 = vmatprep.subr.mxu0 0.0
        %v3464 = vand.u32 %v249, 4294901760
        %3465 = vmatpush1.msra.mxu0 %v3464
        %3466 = vmatprep.subr.mxu0 0.0
        %v3467 = vand.u32 %v250, 4294901760
        %3468 = vmatpush1.msra.mxu0 %v3467
        %3469 = vmatprep.subr.mxu0 0.0
        %3470 = vmatpush1.msra.mxu0 0.0
        %3471 = vmatprep.subr.mxu0 0.0
        %3472 = vmatpush1.msra.mxu0 0.0
        %3473 = vmatprep.subr.mxu0 0.0
        %3474 = vmatpush1.msra.mxu0 0.0
        %3475 = vmatprep.subr.mxu0 0.0
        %3476 = vmatpush1.msra.mxu0 0.0
        %3477 = vmatprep.subr.mxu0 0.0
        %3478 = vmatpush1.msra.mxu0 0.0
        %3479 = vmatprep.subr.mxu0 0.0
        %3480 = vmatpush1.msra.mxu0 0.0
        %3481 = vmatprep.subr.mxu0 0.0
        %3482 = vmatpush1.msra.mxu0 0.0
        %3483 = vmatprep.subr.mxu0 0.0
        %3484 = vmatpush1.msra.mxu0 0.0
        %3485 = vmatprep.subr.mxu0 0.0
        %3486 = vmatpush1.msra.mxu0 0.0
        %3487 = vmatprep.subr.mxu0 0.0
        %3488 = vmatpush1.msra.mxu0 0.0
        %3489 = vmatprep.subr.mxu0 0.0
        %3490 = vmatpush1.msra.mxu0 0.0
        %3491 = vmatprep.subr.mxu0 0.0
        %3492 = vmatpush1.msra.mxu0 0.0
        %3493 = vmatprep.subr.mxu0 0.0
        %3494 = vmatpush1.msra.mxu0 0.0
        %3495 = vmatprep.subr.mxu0 0.0
        %3496 = vmatpush1.msra.mxu0 0.0
        %3497 = vmatprep.subr.mxu0 0.0
        %3498 = vmatpush1.msra.mxu0 0.0
        %3499 = vmatprep.subr.mxu0 0.0
        %3500 = vmatpush1.msra.mxu0 0.0
        %3501 = vmatprep.mubr.f32.mxu0 0.0
        %v3502 = vand.u32 %v2714, 4294901760
        %v3503 = vsub.f32 %v2714, %v3502
        %v3504 = vand.u32 %v3503, 4294901760
        %3505 = vmatmul.mubr.f32.gmra.mrb[0].mxu0 %v3504
        %v3506 = vpop.f32.mrb[0].mxu0
        %v3507 = vadd.f32 %v3313, %v3506
        %v3508 = vpop.f32.mrb[0].mxu0
        %3509 = vmatprep.mubr.f32.mxu0 0.0
        %v3510 = vand.u32 %v2715, 4294901760
        %v3511 = vsub.f32 %v2715, %v3510
        %v3512 = vand.u32 %v3511, 4294901760
        %3513 = vmatmul.mubr.f32.gmra.mrb[0].mxu0 %v3512
        %v3514 = vpop.f32.mrb[0].mxu0
        %v3515 = vadd.f32 %v3320, %v3514
        %v3516 = vpop.f32.mrb[0].mxu0
        %3517 = vmatprep.mubr.f32.mxu0 0.0
        %v3518 = vand.u32 %v2716, 4294901760
        %v3519 = vsub.f32 %v2716, %v3518
        %v3520 = vand.u32 %v3519, 4294901760
        %3521 = vmatmul.mubr.f32.gmra.mrb[0].mxu0 %v3520
        %v3522 = vpop.f32.mrb[0].mxu0
        %v3523 = vadd.f32 %v3327, %v3522
        %v3524 = vpop.f32.mrb[0].mxu0
        %3525 = vmatprep.mubr.f32.mxu0 0.0
        %v3526 = vand.u32 %v2717, 4294901760
        %v3527 = vsub.f32 %v2717, %v3526
        %v3528 = vand.u32 %v3527, 4294901760
        %3529 = vmatmul.mubr.f32.gmra.mrb[0].mxu0 %v3528
        %v3530 = vpop.f32.mrb[0].mxu0
        %v3531 = vadd.f32 %v3334, %v3530
        %v3532 = vpop.f32.mrb[0].mxu0
        %3533 = vmatprep.mubr.f32.mxu0 0.0
        %v3534 = vand.u32 %v2718, 4294901760
        %v3535 = vsub.f32 %v2718, %v3534
        %v3536 = vand.u32 %v3535, 4294901760
        %3537 = vmatmul.mubr.f32.gmra.mrb[0].mxu0 %v3536
        %v3538 = vpop.f32.mrb[0].mxu0
        %v3539 = vadd.f32 %v3341, %v3538
        %v3540 = vpop.f32.mrb[0].mxu0
        %3541 = vmatprep.mubr.f32.mxu0 0.0
        %v3542 = vand.u32 %v2719, 4294901760
        %v3543 = vsub.f32 %v2719, %v3542
        %v3544 = vand.u32 %v3543, 4294901760
        %3545 = vmatmul.mubr.f32.gmra.mrb[0].mxu0 %v3544
        %v3546 = vpop.f32.mrb[0].mxu0
        %v3547 = vadd.f32 %v3348, %v3546
        %v3548 = vpop.f32.mrb[0].mxu0
        %3549 = vmatprep.mubr.f32.mxu0 0.0
        %v3550 = vand.u32 %v2720, 4294901760
        %v3551 = vsub.f32 %v2720, %v3550
        %v3552 = vand.u32 %v3551, 4294901760
        %3553 = vmatmul.mubr.f32.gmra.mrb[0].mxu0 %v3552
        %v3554 = vpop.f32.mrb[0].mxu0
        %v3555 = vadd.f32 %v3355, %v3554
        %v3556 = vpop.f32.mrb[0].mxu0
        %3557 = vmatprep.mubr.f32.mxu0 0.0
        %v3558 = vand.u32 %v2721, 4294901760
        %v3559 = vsub.f32 %v2721, %v3558
        %v3560 = vand.u32 %v3559, 4294901760
        %3561 = vmatmul.mubr.f32.gmra.mrb[0].mxu0 %v3560
        %v3562 = vpop.f32.mrb[0].mxu0
        %v3563 = vadd.f32 %v3362, %v3562
        %v3564 = vpop.f32.mrb[0].mxu0
        %3565 = vmatprep.mubr.f32.mxu0 0.0
        %v3566 = vand.u32 %v2722, 4294901760
        %v3567 = vsub.f32 %v2722, %v3566
        %v3568 = vand.u32 %v3567, 4294901760
        %3569 = vmatmul.mubr.f32.gmra.mrb[0].mxu0 %v3568
        %v3570 = vpop.f32.mrb[0].mxu0
        %v3571 = vadd.f32 %v3369, %v3570
        %v3572 = vpop.f32.mrb[0].mxu0
        %3573 = vmatprep.mubr.f32.mxu0 0.0
        %v3574 = vand.u32 %v2723, 4294901760
        %v3575 = vsub.f32 %v2723, %v3574
        %v3576 = vand.u32 %v3575, 4294901760
        %3577 = vmatmul.mubr.f32.gmra.mrb[0].mxu0 %v3576
        %v3578 = vpop.f32.mrb[0].mxu0
        %v3579 = vadd.f32 %v3376, %v3578
        %v3580 = vpop.f32.mrb[0].mxu0
        %3581 = vmatprep.mubr.f32.mxu0 0.0
        %v3582 = vand.u32 %v2724, 4294901760
        %v3583 = vsub.f32 %v2724, %v3582
        %v3584 = vand.u32 %v3583, 4294901760
        %3585 = vmatmul.mubr.f32.gmra.mrb[0].mxu0 %v3584
        %v3586 = vpop.f32.mrb[0].mxu0
        %v3587 = vadd.f32 %v3383, %v3586
        %v3588 = vpop.f32.mrb[0].mxu0
        %3589 = vmatprep.mubr.f32.mxu0 0.0
        %v3590 = vand.u32 %v2725, 4294901760
        %v3591 = vsub.f32 %v2725, %v3590
        %v3592 = vand.u32 %v3591, 4294901760
        %3593 = vmatmul.mubr.f32.gmra.mrb[0].mxu0 %v3592
        %v3594 = vpop.f32.mrb[0].mxu0
        %v3595 = vadd.f32 %v3390, %v3594
        %v3596 = vpop.f32.mrb[0].mxu0
        %3597 = vmatprep.mubr.f32.mxu0 0.0
        %v3598 = vand.u32 %v2726, 4294901760
        %v3599 = vsub.f32 %v2726, %v3598
        %v3600 = vand.u32 %v3599, 4294901760
        %3601 = vmatmul.mubr.f32.gmra.mrb[0].mxu0 %v3600
        %v3602 = vpop.f32.mrb[0].mxu0
        %v3603 = vadd.f32 %v3397, %v3602
        %v3604 = vpop.f32.mrb[0].mxu0
        %3605 = vmatprep.mubr.f32.mxu0 0.0
        %v3606 = vand.u32 %v2727, 4294901760
        %v3607 = vsub.f32 %v2727, %v3606
        %v3608 = vand.u32 %v3607, 4294901760
        %3609 = vmatmul.mubr.f32.gmra.mrb[0].mxu0 %v3608
        %v3610 = vpop.f32.mrb[0].mxu0
        %v3611 = vadd.f32 %v3404, %v3610
        %v3612 = vpop.f32.mrb[0].mxu0
        %3613 = vmatprep.mubr.f32.mxu0 0.0
        %v3614 = vand.u32 %v2728, 4294901760
        %v3615 = vsub.f32 %v2728, %v3614
        %v3616 = vand.u32 %v3615, 4294901760
        %3617 = vmatmul.mubr.f32.gmra.mrb[0].mxu0 %v3616
        %v3618 = vpop.f32.mrb[0].mxu0
        %v3619 = vadd.f32 %v3411, %v3618
        %v3620 = vpop.f32.mrb[0].mxu0
        %3621 = vmatprep.mubr.f32.mxu0 0.0
        %v3622 = vand.u32 %v2729, 4294901760
        %v3623 = vsub.f32 %v2729, %v3622
        %v3624 = vand.u32 %v3623, 4294901760
        %3625 = vmatmul.mubr.f32.gmra.mrb[0].mxu0 %v3624
        %v3626 = vpop.f32.mrb[0].mxu0
        %v3627 = vadd.f32 %v3418, %v3626
        %v3628 = vpop.f32.mrb[0].mxu0
        %3629 = vdwg.mxu0
        %3630 = vmatprep.subr.mxu0 0.0
        %v3631 = vand.u32 %v235, 4294901760
        %v3632 = vsub.f32 %v235, %v3631
        %v3633 = vand.u32 %v3632, 4294901760
        %3634 = vmatpush1.msra.mxu0 %v3633
        %3635 = vmatprep.subr.mxu0 0.0
        %v3636 = vand.u32 %v236, 4294901760
        %v3637 = vsub.f32 %v236, %v3636
        %v3638 = vand.u32 %v3637, 4294901760
        %3639 = vmatpush1.msra.mxu0 %v3638
        %3640 = vmatprep.subr.mxu0 0.0
        %v3641 = vand.u32 %v237, 4294901760
        %v3642 = vsub.f32 %v237, %v3641
        %v3643 = vand.u32 %v3642, 4294901760
        %3644 = vmatpush1.msra.mxu0 %v3643
        %3645 = vmatprep.subr.mxu0 0.0
        %v3646 = vand.u32 %v238, 4294901760
        %v3647 = vsub.f32 %v238, %v3646
        %v3648 = vand.u32 %v3647, 4294901760
        %3649 = vmatpush1.msra.mxu0 %v3648
        %3650 = vmatprep.subr.mxu0 0.0
        %v3651 = vand.u32 %v239, 4294901760
        %v3652 = vsub.f32 %v239, %v3651
        %v3653 = vand.u32 %v3652, 4294901760
        %3654 = vmatpush1.msra.mxu0 %v3653
        %3655 = vmatprep.subr.mxu0 0.0
        %v3656 = vand.u32 %v240, 4294901760
        %v3657 = vsub.f32 %v240, %v3656
        %v3658 = vand.u32 %v3657, 4294901760
        %3659 = vmatpush1.msra.mxu0 %v3658
        %3660 = vmatprep.subr.mxu0 0.0
        %v3661 = vand.u32 %v241, 4294901760
        %v3662 = vsub.f32 %v241, %v3661
        %v3663 = vand.u32 %v3662, 4294901760
        %3664 = vmatpush1.msra.mxu0 %v3663
        %3665 = vmatprep.subr.mxu0 0.0
        %v3666 = vand.u32 %v242, 4294901760
        %v3667 = vsub.f32 %v242, %v3666
        %v3668 = vand.u32 %v3667, 4294901760
        %3669 = vmatpush1.msra.mxu0 %v3668
        %3670 = vmatprep.subr.mxu0 0.0
        %v3671 = vand.u32 %v243, 4294901760
        %v3672 = vsub.f32 %v243, %v3671
        %v3673 = vand.u32 %v3672, 4294901760
        %3674 = vmatpush1.msra.mxu0 %v3673
        %3675 = vmatprep.subr.mxu0 0.0
        %v3676 = vand.u32 %v244, 4294901760
        %v3677 = vsub.f32 %v244, %v3676
        %v3678 = vand.u32 %v3677, 4294901760
        %3679 = vmatpush1.msra.mxu0 %v3678
        %3680 = vmatprep.subr.mxu0 0.0
        %v3681 = vand.u32 %v245, 4294901760
        %v3682 = vsub.f32 %v245, %v3681
        %v3683 = vand.u32 %v3682, 4294901760
        %3684 = vmatpush1.msra.mxu0 %v3683
        %3685 = vmatprep.subr.mxu0 0.0
        %v3686 = vand.u32 %v246, 4294901760
        %v3687 = vsub.f32 %v246, %v3686
        %v3688 = vand.u32 %v3687, 4294901760
        %3689 = vmatpush1.msra.mxu0 %v3688
        %3690 = vmatprep.subr.mxu0 0.0
        %v3691 = vand.u32 %v247, 4294901760
        %v3692 = vsub.f32 %v247, %v3691
        %v3693 = vand.u32 %v3692, 4294901760
        %3694 = vmatpush1.msra.mxu0 %v3693
        %3695 = vmatprep.subr.mxu0 0.0
        %v3696 = vand.u32 %v248, 4294901760
        %v3697 = vsub.f32 %v248, %v3696
        %v3698 = vand.u32 %v3697, 4294901760
        %3699 = vmatpush1.msra.mxu0 %v3698
        %3700 = vmatprep.subr.mxu0 0.0
        %v3701 = vand.u32 %v249, 4294901760
        %v3702 = vsub.f32 %v249, %v3701
        %v3703 = vand.u32 %v3702, 4294901760
        %3704 = vmatpush1.msra.mxu0 %v3703
        %3705 = vmatprep.subr.mxu0 0.0
        %v3706 = vand.u32 %v250, 4294901760
        %v3707 = vsub.f32 %v250, %v3706
        %v3708 = vand.u32 %v3707, 4294901760
        %3709 = vmatpush1.msra.mxu0 %v3708
        %3710 = vmatprep.subr.mxu0 0.0
        %3711 = vmatpush1.msra.mxu0 0.0
        %3712 = vmatprep.subr.mxu0 0.0
        %3713 = vmatpush1.msra.mxu0 0.0
        %3714 = vmatprep.subr.mxu0 0.0
        %3715 = vmatpush1.msra.mxu0 0.0
        %3716 = vmatprep.subr.mxu0 0.0
        %3717 = vmatpush1.msra.mxu0 0.0
        %3718 = vmatprep.subr.mxu0 0.0
        %3719 = vmatpush1.msra.mxu0 0.0
        %3720 = vmatprep.subr.mxu0 0.0
        %3721 = vmatpush1.msra.mxu0 0.0
        %3722 = vmatprep.subr.mxu0 0.0
        %3723 = vmatpush1.msra.mxu0 0.0
        %3724 = vmatprep.subr.mxu0 0.0
        %3725 = vmatpush1.msra.mxu0 0.0
        %3726 = vmatprep.subr.mxu0 0.0
        %3727 = vmatpush1.msra.mxu0 0.0
        %3728 = vmatprep.subr.mxu0 0.0
        %3729 = vmatpush1.msra.mxu0 0.0
        %3730 = vmatprep.subr.mxu0 0.0
        %3731 = vmatpush1.msra.mxu0 0.0
        %3732 = vmatprep.subr.mxu0 0.0
        %3733 = vmatpush1.msra.mxu0 0.0
        %3734 = vmatprep.subr.mxu0 0.0
        %3735 = vmatpush1.msra.mxu0 0.0
        %3736 = vmatprep.subr.mxu0 0.0
        %3737 = vmatpush1.msra.mxu0 0.0
        %3738 = vmatprep.subr.mxu0 0.0
        %3739 = vmatpush1.msra.mxu0 0.0
        %3740 = vmatprep.subr.mxu0 0.0
        %3741 = vmatpush1.msra.mxu0 0.0
        %3742 = vmatprep.mubr.f32.mxu0 0.0
        %v3743 = vand.u32 %v2714, 4294901760
        %3744 = vmatmul.mubr.f32.gmra.mrb[0].mxu0 %v3743
        %v3745 = vpop.f32.mrb[0].mxu0
        %v3746 = vadd.f32 %v3507, %v3745
        %v3747 = vpop.f32.mrb[0].mxu0
        %3748 = vmatprep.mubr.f32.mxu0 0.0
        %v3749 = vand.u32 %v2715, 4294901760
        %3750 = vmatmul.mubr.f32.gmra.mrb[0].mxu0 %v3749
        %v3751 = vpop.f32.mrb[0].mxu0
        %v3752 = vadd.f32 %v3515, %v3751
        %v3753 = vpop.f32.mrb[0].mxu0
        %3754 = vmatprep.mubr.f32.mxu0 0.0
        %v3755 = vand.u32 %v2716, 4294901760
        %3756 = vmatmul.mubr.f32.gmra.mrb[0].mxu0 %v3755
        %v3757 = vpop.f32.mrb[0].mxu0
        %v3758 = vadd.f32 %v3523, %v3757
        %v3759 = vpop.f32.mrb[0].mxu0
        %3760 = vmatprep.mubr.f32.mxu0 0.0
        %v3761 = vand.u32 %v2717, 4294901760
        %3762 = vmatmul.mubr.f32.gmra.mrb[0].mxu0 %v3761
        %v3763 = vpop.f32.mrb[0].mxu0
        %v3764 = vadd.f32 %v3531, %v3763
        %v3765 = vpop.f32.mrb[0].mxu0
        %3766 = vmatprep.mubr.f32.mxu0 0.0
        %v3767 = vand.u32 %v2718, 4294901760
        %3768 = vmatmul.mubr.f32.gmra.mrb[0].mxu0 %v3767
        %v3769 = vpop.f32.mrb[0].mxu0
        %v3770 = vadd.f32 %v3539, %v3769
        %v3771 = vpop.f32.mrb[0].mxu0
        %3772 = vmatprep.mubr.f32.mxu0 0.0
        %v3773 = vand.u32 %v2719, 4294901760
        %3774 = vmatmul.mubr.f32.gmra.mrb[0].mxu0 %v3773
        %v3775 = vpop.f32.mrb[0].mxu0
        %v3776 = vadd.f32 %v3547, %v3775
        %v3777 = vpop.f32.mrb[0].mxu0
        %3778 = vmatprep.mubr.f32.mxu0 0.0
        %v3779 = vand.u32 %v2720, 4294901760
        %3780 = vmatmul.mubr.f32.gmra.mrb[0].mxu0 %v3779
        %v3781 = vpop.f32.mrb[0].mxu0
        %v3782 = vadd.f32 %v3555, %v3781
        %v3783 = vpop.f32.mrb[0].mxu0
        %3784 = vmatprep.mubr.f32.mxu0 0.0
        %v3785 = vand.u32 %v2721, 4294901760
        %3786 = vmatmul.mubr.f32.gmra.mrb[0].mxu0 %v3785
        %v3787 = vpop.f32.mrb[0].mxu0
        %v3788 = vadd.f32 %v3563, %v3787
        %v3789 = vpop.f32.mrb[0].mxu0
        %3790 = vmatprep.mubr.f32.mxu0 0.0
        %v3791 = vand.u32 %v2722, 4294901760
        %3792 = vmatmul.mubr.f32.gmra.mrb[0].mxu0 %v3791
        %v3793 = vpop.f32.mrb[0].mxu0
        %v3794 = vadd.f32 %v3571, %v3793
        %v3795 = vpop.f32.mrb[0].mxu0
        %3796 = vmatprep.mubr.f32.mxu0 0.0
        %v3797 = vand.u32 %v2723, 4294901760
        %3798 = vmatmul.mubr.f32.gmra.mrb[0].mxu0 %v3797
        %v3799 = vpop.f32.mrb[0].mxu0
        %v3800 = vadd.f32 %v3579, %v3799
        %v3801 = vpop.f32.mrb[0].mxu0
        %3802 = vmatprep.mubr.f32.mxu0 0.0
        %v3803 = vand.u32 %v2724, 4294901760
        %3804 = vmatmul.mubr.f32.gmra.mrb[0].mxu0 %v3803
        %v3805 = vpop.f32.mrb[0].mxu0
        %v3806 = vadd.f32 %v3587, %v3805
        %v3807 = vpop.f32.mrb[0].mxu0
        %3808 = vmatprep.mubr.f32.mxu0 0.0
        %v3809 = vand.u32 %v2725, 4294901760
        %3810 = vmatmul.mubr.f32.gmra.mrb[0].mxu0 %v3809
        %v3811 = vpop.f32.mrb[0].mxu0
        %v3812 = vadd.f32 %v3595, %v3811
        %v3813 = vpop.f32.mrb[0].mxu0
        %3814 = vmatprep.mubr.f32.mxu0 0.0
        %v3815 = vand.u32 %v2726, 4294901760
        %3816 = vmatmul.mubr.f32.gmra.mrb[0].mxu0 %v3815
        %v3817 = vpop.f32.mrb[0].mxu0
        %v3818 = vadd.f32 %v3603, %v3817
        %v3819 = vpop.f32.mrb[0].mxu0
        %3820 = vmatprep.mubr.f32.mxu0 0.0
        %v3821 = vand.u32 %v2727, 4294901760
        %3822 = vmatmul.mubr.f32.gmra.mrb[0].mxu0 %v3821
        %v3823 = vpop.f32.mrb[0].mxu0
        %v3824 = vadd.f32 %v3611, %v3823
        %v3825 = vpop.f32.mrb[0].mxu0
        %3826 = vmatprep.mubr.f32.mxu0 0.0
        %v3827 = vand.u32 %v2728, 4294901760
        %3828 = vmatmul.mubr.f32.gmra.mrb[0].mxu0 %v3827
        %v3829 = vpop.f32.mrb[0].mxu0
        %v3830 = vadd.f32 %v3619, %v3829
        %v3831 = vpop.f32.mrb[0].mxu0
        %3832 = vmatprep.mubr.f32.mxu0 0.0
        %v3833 = vand.u32 %v2729, 4294901760
        %3834 = vmatmul.mubr.f32.gmra.mrb[0].mxu0 %v3833
        %v3835 = vpop.f32.mrb[0].mxu0
        %v3836 = vadd.f32 %v3627, %v3835
        %v3837 = vpop.f32.mrb[0].mxu0
        %3838 = vdwg.mxu0
        %3839 = vmatprep.subr.mxu0 0.0
        %v3840 = vand.u32 %v235, 4294901760
        %3841 = vmatpush1.msra.mxu0 %v3840
        %3842 = vmatprep.subr.mxu0 0.0
        %v3843 = vand.u32 %v236, 4294901760
        %3844 = vmatpush1.msra.mxu0 %v3843
        %3845 = vmatprep.subr.mxu0 0.0
        %v3846 = vand.u32 %v237, 4294901760
        %3847 = vmatpush1.msra.mxu0 %v3846
        %3848 = vmatprep.subr.mxu0 0.0
        %v3849 = vand.u32 %v238, 4294901760
        %3850 = vmatpush1.msra.mxu0 %v3849
        %3851 = vmatprep.subr.mxu0 0.0
        %v3852 = vand.u32 %v239, 4294901760
        %3853 = vmatpush1.msra.mxu0 %v3852
        %3854 = vmatprep.subr.mxu0 0.0
        %v3855 = vand.u32 %v240, 4294901760
        %3856 = vmatpush1.msra.mxu0 %v3855
        %3857 = vmatprep.subr.mxu0 0.0
        %v3858 = vand.u32 %v241, 4294901760
        %3859 = vmatpush1.msra.mxu0 %v3858
        %3860 = vmatprep.subr.mxu0 0.0
        %v3861 = vand.u32 %v242, 4294901760
        %3862 = vmatpush1.msra.mxu0 %v3861
        %3863 = vmatprep.subr.mxu0 0.0
        %v3864 = vand.u32 %v243, 4294901760
        %3865 = vmatpush1.msra.mxu0 %v3864
        %3866 = vmatprep.subr.mxu0 0.0
        %v3867 = vand.u32 %v244, 4294901760
        %3868 = vmatpush1.msra.mxu0 %v3867
        %3869 = vmatprep.subr.mxu0 0.0
        %v3870 = vand.u32 %v245, 4294901760
        %3871 = vmatpush1.msra.mxu0 %v3870
        %3872 = vmatprep.subr.mxu0 0.0
        %v3873 = vand.u32 %v246, 4294901760
        %3874 = vmatpush1.msra.mxu0 %v3873
        %3875 = vmatprep.subr.mxu0 0.0
        %v3876 = vand.u32 %v247, 4294901760
        %3877 = vmatpush1.msra.mxu0 %v3876
        %3878 = vmatprep.subr.mxu0 0.0
        %v3879 = vand.u32 %v248, 4294901760
        %3880 = vmatpush1.msra.mxu0 %v3879
        %3881 = vmatprep.subr.mxu0 0.0
        %v3882 = vand.u32 %v249, 4294901760
        %3883 = vmatpush1.msra.mxu0 %v3882
        %3884 = vmatprep.subr.mxu0 0.0
        %v3885 = vand.u32 %v250, 4294901760
        %3886 = vmatpush1.msra.mxu0 %v3885
        %3887 = vmatprep.subr.mxu0 0.0
        %3888 = vmatpush1.msra.mxu0 0.0
        %3889 = vmatprep.subr.mxu0 0.0
        %3890 = vmatpush1.msra.mxu0 0.0
        %3891 = vmatprep.subr.mxu0 0.0
        %3892 = vmatpush1.msra.mxu0 0.0
        %3893 = vmatprep.subr.mxu0 0.0
        %3894 = vmatpush1.msra.mxu0 0.0
        %3895 = vmatprep.subr.mxu0 0.0
        %3896 = vmatpush1.msra.mxu0 0.0
        %3897 = vmatprep.subr.mxu0 0.0
        %3898 = vmatpush1.msra.mxu0 0.0
        %3899 = vmatprep.subr.mxu0 0.0
        %3900 = vmatpush1.msra.mxu0 0.0
        %3901 = vmatprep.subr.mxu0 0.0
        %3902 = vmatpush1.msra.mxu0 0.0
        %3903 = vmatprep.subr.mxu0 0.0
        %3904 = vmatpush1.msra.mxu0 0.0
        %3905 = vmatprep.subr.mxu0 0.0
        %3906 = vmatpush1.msra.mxu0 0.0
        %3907 = vmatprep.subr.mxu0 0.0
        %3908 = vmatpush1.msra.mxu0 0.0
        %3909 = vmatprep.subr.mxu0 0.0
        %3910 = vmatpush1.msra.mxu0 0.0
        %3911 = vmatprep.subr.mxu0 0.0
        %3912 = vmatpush1.msra.mxu0 0.0
        %3913 = vmatprep.subr.mxu0 0.0
        %3914 = vmatpush1.msra.mxu0 0.0
        %3915 = vmatprep.subr.mxu0 0.0
        %3916 = vmatpush1.msra.mxu0 0.0
        %3917 = vmatprep.subr.mxu0 0.0
        %3918 = vmatpush1.msra.mxu0 0.0
        %3919 = vmatprep.mubr.f32.mxu0 0.0
        %v3920 = vand.u32 %v2714, 4294901760
        %3921 = vmatmul.mubr.f32.gmra.mrb[0].mxu0 %v3920
        %v3922 = vpop.f32.mrb[0].mxu0
        %v3923 = vadd.f32 %v3746, %v3922
        %v3924 = vpop.f32.mrb[0].mxu0
        %3925 = vmatprep.mubr.f32.mxu0 0.0
        %v3926 = vand.u32 %v2715, 4294901760
        %3927 = vmatmul.mubr.f32.gmra.mrb[0].mxu0 %v3926
        %v3928 = vpop.f32.mrb[0].mxu0
        %v3929 = vadd.f32 %v3752, %v3928
        %v3930 = vpop.f32.mrb[0].mxu0
        %3931 = vmatprep.mubr.f32.mxu0 0.0
        %v3932 = vand.u32 %v2716, 4294901760
        %3933 = vmatmul.mubr.f32.gmra.mrb[0].mxu0 %v3932
        %v3934 = vpop.f32.mrb[0].mxu0
        %v3935 = vadd.f32 %v3758, %v3934
        %v3936 = vpop.f32.mrb[0].mxu0
        %3937 = vmatprep.mubr.f32.mxu0 0.0
        %v3938 = vand.u32 %v2717, 4294901760
        %3939 = vmatmul.mubr.f32.gmra.mrb[0].mxu0 %v3938
        %v3940 = vpop.f32.mrb[0].mxu0
        %v3941 = vadd.f32 %v3764, %v3940
        %v3942 = vpop.f32.mrb[0].mxu0
        %3943 = vmatprep.mubr.f32.mxu0 0.0
        %v3944 = vand.u32 %v2718, 4294901760
        %3945 = vmatmul.mubr.f32.gmra.mrb[0].mxu0 %v3944
        %v3946 = vpop.f32.mrb[0].mxu0
        %v3947 = vadd.f32 %v3770, %v3946
        %v3948 = vpop.f32.mrb[0].mxu0
        %3949 = vmatprep.mubr.f32.mxu0 0.0
        %v3950 = vand.u32 %v2719, 4294901760
        %3951 = vmatmul.mubr.f32.gmra.mrb[0].mxu0 %v3950
        %v3952 = vpop.f32.mrb[0].mxu0
        %v3953 = vadd.f32 %v3776, %v3952
        %v3954 = vpop.f32.mrb[0].mxu0
        %3955 = vmatprep.mubr.f32.mxu0 0.0
        %v3956 = vand.u32 %v2720, 4294901760
        %3957 = vmatmul.mubr.f32.gmra.mrb[0].mxu0 %v3956
        %v3958 = vpop.f32.mrb[0].mxu0
        %v3959 = vadd.f32 %v3782, %v3958
        %v3960 = vpop.f32.mrb[0].mxu0
        %3961 = vmatprep.mubr.f32.mxu0 0.0
        %v3962 = vand.u32 %v2721, 4294901760
        %3963 = vmatmul.mubr.f32.gmra.mrb[0].mxu0 %v3962
        %v3964 = vpop.f32.mrb[0].mxu0
        %v3965 = vadd.f32 %v3788, %v3964
        %v3966 = vpop.f32.mrb[0].mxu0
        %3967 = vmatprep.mubr.f32.mxu0 0.0
        %v3968 = vand.u32 %v2722, 4294901760
        %3969 = vmatmul.mubr.f32.gmra.mrb[0].mxu0 %v3968
        %v3970 = vpop.f32.mrb[0].mxu0
        %v3971 = vadd.f32 %v3794, %v3970
        %v3972 = vpop.f32.mrb[0].mxu0
        %3973 = vmatprep.mubr.f32.mxu0 0.0
        %v3974 = vand.u32 %v2723, 4294901760
        %3975 = vmatmul.mubr.f32.gmra.mrb[0].mxu0 %v3974
        %v3976 = vpop.f32.mrb[0].mxu0
        %v3977 = vadd.f32 %v3800, %v3976
        %v3978 = vpop.f32.mrb[0].mxu0
        %3979 = vmatprep.mubr.f32.mxu0 0.0
        %v3980 = vand.u32 %v2724, 4294901760
        %3981 = vmatmul.mubr.f32.gmra.mrb[0].mxu0 %v3980
        %v3982 = vpop.f32.mrb[0].mxu0
        %v3983 = vadd.f32 %v3806, %v3982
        %v3984 = vpop.f32.mrb[0].mxu0
        %3985 = vmatprep.mubr.f32.mxu0 0.0
        %v3986 = vand.u32 %v2725, 4294901760
        %3987 = vmatmul.mubr.f32.gmra.mrb[0].mxu0 %v3986
        %v3988 = vpop.f32.mrb[0].mxu0
        %v3989 = vadd.f32 %v3812, %v3988
        %v3990 = vpop.f32.mrb[0].mxu0
        %3991 = vmatprep.mubr.f32.mxu0 0.0
        %v3992 = vand.u32 %v2726, 4294901760
        %3993 = vmatmul.mubr.f32.gmra.mrb[0].mxu0 %v3992
        %v3994 = vpop.f32.mrb[0].mxu0
        %v3995 = vadd.f32 %v3818, %v3994
        %v3996 = vpop.f32.mrb[0].mxu0
        %3997 = vmatprep.mubr.f32.mxu0 0.0
        %v3998 = vand.u32 %v2727, 4294901760
        %3999 = vmatmul.mubr.f32.gmra.mrb[0].mxu0 %v3998
        %v4000 = vpop.f32.mrb[0].mxu0
        %v4001 = vadd.f32 %v3824, %v4000
        %v4002 = vpop.f32.mrb[0].mxu0
        %4003 = vmatprep.mubr.f32.mxu0 0.0
        %v4004 = vand.u32 %v2728, 4294901760
        %4005 = vmatmul.mubr.f32.gmra.mrb[0].mxu0 %v4004
        %v4006 = vpop.f32.mrb[0].mxu0
        %v4007 = vadd.f32 %v3830, %v4006
        %v4008 = vpop.f32.mrb[0].mxu0
        %4009 = vmatprep.mubr.f32.mxu0 0.0
        %v4010 = vand.u32 %v2729, 4294901760
        %4011 = vmatmul.mubr.f32.gmra.mrb[0].mxu0 %v4010
        %v4012 = vpop.f32.mrb[0].mxu0
        %v4013 = vadd.f32 %v3836, %v4012
        %v4014 = vpop.f32.mrb[0].mxu0
        %4015 = vdwg.mxu0
        %v4016 = vmul.f32 %v3923, 0.015625
        %v4017 = vmul.f32 %v3929, 0.015625
        %v4018 = vmul.f32 %v3935, 0.015625
        %v4019 = vmul.f32 %v3941, 0.015625
        %v4020 = vmul.f32 %v3947, 0.015625
        %v4021 = vmul.f32 %v3953, 0.015625
        %v4022 = vmul.f32 %v3959, 0.015625
        %v4023 = vmul.f32 %v3965, 0.015625
        %v4024 = vmul.f32 %v3971, 0.015625
        %v4025 = vmul.f32 %v3977, 0.015625
        %v4026 = vmul.f32 %v3983, 0.015625
        %v4027 = vmul.f32 %v3989, 0.015625
        %v4028 = vmul.f32 %v3995, 0.015625
        %v4029 = vmul.f32 %v4001, 0.015625
        %v4030 = vmul.f32 %v4007, 0.015625
        %v4031 = vmul.f32 %v4013, 0.015625
        %v4032 = vadd.f32 %v4016, 1e-05
        %v4033 = vadd.f32 %v4017, 1e-05
        %v4034 = vadd.f32 %v4018, 1e-05
        %v4035 = vadd.f32 %v4019, 1e-05
        %v4036 = vadd.f32 %v4020, 1e-05
        %v4037 = vadd.f32 %v4021, 1e-05
        %v4038 = vadd.f32 %v4022, 1e-05
        %v4039 = vadd.f32 %v4023, 1e-05
        %v4040 = vadd.f32 %v4024, 1e-05
        %v4041 = vadd.f32 %v4025, 1e-05
        %v4042 = vadd.f32 %v4026, 1e-05
        %v4043 = vadd.f32 %v4027, 1e-05
        %v4044 = vadd.f32 %v4028, 1e-05
        %v4045 = vadd.f32 %v4029, 1e-05
        %v4046 = vadd.f32 %v4030, 1e-05
        %v4047 = vadd.f32 %v4031, 1e-05
        %v4048 = vrsqrt.pop %v4032
        %v4049 = vrsqrt.pop %v4033
        %v4050 = vrsqrt.pop %v4034
        %v4051 = vrsqrt.pop %v4035
        %v4052 = vrsqrt.pop %v4036
        %v4053 = vrsqrt.pop %v4037
        %v4054 = vrsqrt.pop %v4038
        %v4055 = vrsqrt.pop %v4039
        %v4056 = vrsqrt.pop %v4040
        %v4057 = vrsqrt.pop %v4041
        %v4058 = vrsqrt.pop %v4042
        %v4059 = vrsqrt.pop %v4043
        %v4060 = vrsqrt.pop %v4044
        %v4061 = vrsqrt.pop %v4045
        %v4062 = vrsqrt.pop %v4046
        %v4063 = vrsqrt.pop %v4047
        %v4065 = vsel %vm1554, %v4048, 0
        %v4068 = vsel %vm1554, %v4049, 0
        %v4071 = vsel %vm1554, %v4050, 0
        %v4074 = vsel %vm1554, %v4051, 0
        %v4077 = vsel %vm1554, %v4052, 0
        %v4080 = vsel %vm1554, %v4053, 0
        %v4083 = vsel %vm1554, %v4054, 0
        %v4086 = vsel %vm1554, %v4055, 0
        %v4089 = vsel %vm1554, %v4056, 0
        %v4092 = vsel %vm1554, %v4057, 0
        %v4095 = vsel %vm1554, %v4058, 0
        %v4098 = vsel %vm1554, %v4059, 0
        %v4101 = vsel %vm1554, %v4060, 0
        %v4104 = vsel %vm1554, %v4061, 0
        %v4107 = vsel %vm1554, %v4062, 0
        %v4110 = vsel %vm1554, %v4063, 0
        %4112 = vmatprep.subr.mxu0 0.0
        %v4113 = vand.u32 %v1605, 4294901760
        %4114 = vmatpush1.msra.mxu0 %v4113
        %4115 = vmatprep.subr.mxu0 0.0
        %4116 = vmatpush1.msra.mxu0 0.0
        %4117 = vmatprep.subr.mxu0 0.0
        %4118 = vmatpush1.msra.mxu0 0.0
        %4119 = vmatprep.subr.mxu0 0.0
        %4120 = vmatpush1.msra.mxu0 0.0
        %4121 = vmatprep.subr.mxu0 0.0
        %4122 = vmatpush1.msra.mxu0 0.0
        %4123 = vmatprep.subr.mxu0 0.0
        %4124 = vmatpush1.msra.mxu0 0.0
        %4125 = vmatprep.subr.mxu0 0.0
        %4126 = vmatpush1.msra.mxu0 0.0
        %4127 = vmatprep.subr.mxu0 0.0
        %4128 = vmatpush1.msra.mxu0 0.0
        %4129 = vmatprep.subr.mxu0 0.0
        %4130 = vmatpush1.msra.mxu0 0.0
        %4131 = vmatprep.subr.mxu0 0.0
        %4132 = vmatpush1.msra.mxu0 0.0
        %4133 = vmatprep.subr.mxu0 0.0
        %4134 = vmatpush1.msra.mxu0 0.0
        %4135 = vmatprep.subr.mxu0 0.0
        %4136 = vmatpush1.msra.mxu0 0.0
        %4137 = vmatprep.subr.mxu0 0.0
        %4138 = vmatpush1.msra.mxu0 0.0
        %4139 = vmatprep.subr.mxu0 0.0
        %4140 = vmatpush1.msra.mxu0 0.0
        %4141 = vmatprep.subr.mxu0 0.0
        %4142 = vmatpush1.msra.mxu0 0.0
        %4143 = vmatprep.subr.mxu0 0.0
        %4144 = vmatpush1.msra.mxu0 0.0
        %4145 = vmatprep.subr.mxu0 0.0
        %4146 = vmatpush1.msra.mxu0 0.0
        %4147 = vmatprep.subr.mxu0 0.0
        %4148 = vmatpush1.msra.mxu0 0.0
        %4149 = vmatprep.subr.mxu0 0.0
        %4150 = vmatpush1.msra.mxu0 0.0
        %4151 = vmatprep.subr.mxu0 0.0
        %4152 = vmatpush1.msra.mxu0 0.0
        %4153 = vmatprep.subr.mxu0 0.0
        %4154 = vmatpush1.msra.mxu0 0.0
        %4155 = vmatprep.subr.mxu0 0.0
        %4156 = vmatpush1.msra.mxu0 0.0
        %4157 = vmatprep.subr.mxu0 0.0
        %4158 = vmatpush1.msra.mxu0 0.0
        %4159 = vmatprep.subr.mxu0 0.0
        %4160 = vmatpush1.msra.mxu0 0.0
        %4161 = vmatprep.subr.mxu0 0.0
        %4162 = vmatpush1.msra.mxu0 0.0
        %4163 = vmatprep.subr.mxu0 0.0
        %4164 = vmatpush1.msra.mxu0 0.0
        %4165 = vmatprep.subr.mxu0 0.0
        %4166 = vmatpush1.msra.mxu0 0.0
        %4167 = vmatprep.subr.mxu0 0.0
        %4168 = vmatpush1.msra.mxu0 0.0
        %4169 = vmatprep.subr.mxu0 0.0
        %4170 = vmatpush1.msra.mxu0 0.0
        %4171 = vmatprep.subr.mxu0 0.0
        %4172 = vmatpush1.msra.mxu0 0.0
        %4173 = vmatprep.subr.mxu0 0.0
        %4174 = vmatpush1.msra.mxu0 0.0
        %4175 = vmatprep.subr.mxu0 0.0
        %4176 = vmatpush1.msra.mxu0 0.0
        %4177 = vmatprep.mubr.f32.mxu0 0.0
        %v4178 = vand.u32 %v4065, 4294901760
        %v4179 = vsub.f32 %v4065, %v4178
        %v4180 = vand.u32 %v4179, 4294901760
        %v4181 = vsub.f32 %v4179, %v4180
        %v4182 = vand.u32 %v4181, 4294901760
        %4183 = vmatmul.mubr.f32.gmra.mrb[0].mxu0 %v4182
        %v4184 = vpop.f32.mrb[0].mxu0
        %v4185 = vadd.f32 0.0, %v4184
        %v4186 = vpop.f32.mrb[0].mxu0
        %4187 = vmatprep.mubr.f32.mxu0 0.0
        %v4188 = vand.u32 %v4068, 4294901760
        %v4189 = vsub.f32 %v4068, %v4188
        %v4190 = vand.u32 %v4189, 4294901760
        %v4191 = vsub.f32 %v4189, %v4190
        %v4192 = vand.u32 %v4191, 4294901760
        %4193 = vmatmul.mubr.f32.gmra.mrb[0].mxu0 %v4192
        %v4194 = vpop.f32.mrb[0].mxu0
        %v4195 = vadd.f32 0.0, %v4194
        %v4196 = vpop.f32.mrb[0].mxu0
        %4197 = vmatprep.mubr.f32.mxu0 0.0
        %v4198 = vand.u32 %v4071, 4294901760
        %v4199 = vsub.f32 %v4071, %v4198
        %v4200 = vand.u32 %v4199, 4294901760
        %v4201 = vsub.f32 %v4199, %v4200
        %v4202 = vand.u32 %v4201, 4294901760
        %4203 = vmatmul.mubr.f32.gmra.mrb[0].mxu0 %v4202
        %v4204 = vpop.f32.mrb[0].mxu0
        %v4205 = vadd.f32 0.0, %v4204
        %v4206 = vpop.f32.mrb[0].mxu0
        %4207 = vmatprep.mubr.f32.mxu0 0.0
        %v4208 = vand.u32 %v4074, 4294901760
        %v4209 = vsub.f32 %v4074, %v4208
        %v4210 = vand.u32 %v4209, 4294901760
        %v4211 = vsub.f32 %v4209, %v4210
        %v4212 = vand.u32 %v4211, 4294901760
        %4213 = vmatmul.mubr.f32.gmra.mrb[0].mxu0 %v4212
        %v4214 = vpop.f32.mrb[0].mxu0
        %v4215 = vadd.f32 0.0, %v4214
        %v4216 = vpop.f32.mrb[0].mxu0
        %4217 = vmatprep.mubr.f32.mxu0 0.0
        %v4218 = vand.u32 %v4077, 4294901760
        %v4219 = vsub.f32 %v4077, %v4218
        %v4220 = vand.u32 %v4219, 4294901760
        %v4221 = vsub.f32 %v4219, %v4220
        %v4222 = vand.u32 %v4221, 4294901760
        %4223 = vmatmul.mubr.f32.gmra.mrb[0].mxu0 %v4222
        %v4224 = vpop.f32.mrb[0].mxu0
        %v4225 = vadd.f32 0.0, %v4224
        %v4226 = vpop.f32.mrb[0].mxu0
        %4227 = vmatprep.mubr.f32.mxu0 0.0
        %v4228 = vand.u32 %v4080, 4294901760
        %v4229 = vsub.f32 %v4080, %v4228
        %v4230 = vand.u32 %v4229, 4294901760
        %v4231 = vsub.f32 %v4229, %v4230
        %v4232 = vand.u32 %v4231, 4294901760
        %4233 = vmatmul.mubr.f32.gmra.mrb[0].mxu0 %v4232
        %v4234 = vpop.f32.mrb[0].mxu0
        %v4235 = vadd.f32 0.0, %v4234
        %v4236 = vpop.f32.mrb[0].mxu0
        %4237 = vmatprep.mubr.f32.mxu0 0.0
        %v4238 = vand.u32 %v4083, 4294901760
        %v4239 = vsub.f32 %v4083, %v4238
        %v4240 = vand.u32 %v4239, 4294901760
        %v4241 = vsub.f32 %v4239, %v4240
        %v4242 = vand.u32 %v4241, 4294901760
        %4243 = vmatmul.mubr.f32.gmra.mrb[0].mxu0 %v4242
        %v4244 = vpop.f32.mrb[0].mxu0
        %v4245 = vadd.f32 0.0, %v4244
        %v4246 = vpop.f32.mrb[0].mxu0
        %4247 = vmatprep.mubr.f32.mxu0 0.0
        %v4248 = vand.u32 %v4086, 4294901760
        %v4249 = vsub.f32 %v4086, %v4248
        %v4250 = vand.u32 %v4249, 4294901760
        %v4251 = vsub.f32 %v4249, %v4250
        %v4252 = vand.u32 %v4251, 4294901760
        %4253 = vmatmul.mubr.f32.gmra.mrb[0].mxu0 %v4252
        %v4254 = vpop.f32.mrb[0].mxu0
        %v4255 = vadd.f32 0.0, %v4254
        %v4256 = vpop.f32.mrb[0].mxu0
        %4257 = vmatprep.mubr.f32.mxu0 0.0
        %v4258 = vand.u32 %v4089, 4294901760
        %v4259 = vsub.f32 %v4089, %v4258
        %v4260 = vand.u32 %v4259, 4294901760
        %v4261 = vsub.f32 %v4259, %v4260
        %v4262 = vand.u32 %v4261, 4294901760
        %4263 = vmatmul.mubr.f32.gmra.mrb[0].mxu0 %v4262
        %v4264 = vpop.f32.mrb[0].mxu0
        %v4265 = vadd.f32 0.0, %v4264
        %v4266 = vpop.f32.mrb[0].mxu0
        %4267 = vmatprep.mubr.f32.mxu0 0.0
        %v4268 = vand.u32 %v4092, 4294901760
        %v4269 = vsub.f32 %v4092, %v4268
        %v4270 = vand.u32 %v4269, 4294901760
        %v4271 = vsub.f32 %v4269, %v4270
        %v4272 = vand.u32 %v4271, 4294901760
        %4273 = vmatmul.mubr.f32.gmra.mrb[0].mxu0 %v4272
        %v4274 = vpop.f32.mrb[0].mxu0
        %v4275 = vadd.f32 0.0, %v4274
        %v4276 = vpop.f32.mrb[0].mxu0
        %4277 = vmatprep.mubr.f32.mxu0 0.0
        %v4278 = vand.u32 %v4095, 4294901760
        %v4279 = vsub.f32 %v4095, %v4278
        %v4280 = vand.u32 %v4279, 4294901760
        %v4281 = vsub.f32 %v4279, %v4280
        %v4282 = vand.u32 %v4281, 4294901760
        %4283 = vmatmul.mubr.f32.gmra.mrb[0].mxu0 %v4282
        %v4284 = vpop.f32.mrb[0].mxu0
        %v4285 = vadd.f32 0.0, %v4284
        %v4286 = vpop.f32.mrb[0].mxu0
        %4287 = vmatprep.mubr.f32.mxu0 0.0
        %v4288 = vand.u32 %v4098, 4294901760
        %v4289 = vsub.f32 %v4098, %v4288
        %v4290 = vand.u32 %v4289, 4294901760
        %v4291 = vsub.f32 %v4289, %v4290
        %v4292 = vand.u32 %v4291, 4294901760
        %4293 = vmatmul.mubr.f32.gmra.mrb[0].mxu0 %v4292
        %v4294 = vpop.f32.mrb[0].mxu0
        %v4295 = vadd.f32 0.0, %v4294
        %v4296 = vpop.f32.mrb[0].mxu0
        %4297 = vmatprep.mubr.f32.mxu0 0.0
        %v4298 = vand.u32 %v4101, 4294901760
        %v4299 = vsub.f32 %v4101, %v4298
        %v4300 = vand.u32 %v4299, 4294901760
        %v4301 = vsub.f32 %v4299, %v4300
        %v4302 = vand.u32 %v4301, 4294901760
        %4303 = vmatmul.mubr.f32.gmra.mrb[0].mxu0 %v4302
        %v4304 = vpop.f32.mrb[0].mxu0
        %v4305 = vadd.f32 0.0, %v4304
        %v4306 = vpop.f32.mrb[0].mxu0
        %4307 = vmatprep.mubr.f32.mxu0 0.0
        %v4308 = vand.u32 %v4104, 4294901760
        %v4309 = vsub.f32 %v4104, %v4308
        %v4310 = vand.u32 %v4309, 4294901760
        %v4311 = vsub.f32 %v4309, %v4310
        %v4312 = vand.u32 %v4311, 4294901760
        %4313 = vmatmul.mubr.f32.gmra.mrb[0].mxu0 %v4312
        %v4314 = vpop.f32.mrb[0].mxu0
        %v4315 = vadd.f32 0.0, %v4314
        %v4316 = vpop.f32.mrb[0].mxu0
        %4317 = vmatprep.mubr.f32.mxu0 0.0
        %v4318 = vand.u32 %v4107, 4294901760
        %v4319 = vsub.f32 %v4107, %v4318
        %v4320 = vand.u32 %v4319, 4294901760
        %v4321 = vsub.f32 %v4319, %v4320
        %v4322 = vand.u32 %v4321, 4294901760
        %4323 = vmatmul.mubr.f32.gmra.mrb[0].mxu0 %v4322
        %v4324 = vpop.f32.mrb[0].mxu0
        %v4325 = vadd.f32 0.0, %v4324
        %v4326 = vpop.f32.mrb[0].mxu0
        %4327 = vmatprep.mubr.f32.mxu0 0.0
        %v4328 = vand.u32 %v4110, 4294901760
        %v4329 = vsub.f32 %v4110, %v4328
        %v4330 = vand.u32 %v4329, 4294901760
        %v4331 = vsub.f32 %v4329, %v4330
        %v4332 = vand.u32 %v4331, 4294901760
        %4333 = vmatmul.mubr.f32.gmra.mrb[0].mxu0 %v4332
        %v4334 = vpop.f32.mrb[0].mxu0
        %v4335 = vadd.f32 0.0, %v4334
        %v4336 = vpop.f32.mrb[0].mxu0
        %4337 = vdwg.mxu0
        %4338 = vmatprep.subr.mxu0 0.0
        %v4339 = vand.u32 %v1605, 4294901760
        %v4340 = vsub.f32 %v1605, %v4339
        %v4341 = vand.u32 %v4340, 4294901760
        %v4342 = vsub.f32 %v4340, %v4341
        %v4343 = vand.u32 %v4342, 4294901760
        %4344 = vmatpush1.msra.mxu0 %v4343
        %4345 = vmatprep.subr.mxu0 0.0
        %4346 = vmatpush1.msra.mxu0 0.0
        %4347 = vmatprep.subr.mxu0 0.0
        %4348 = vmatpush1.msra.mxu0 0.0
        %4349 = vmatprep.subr.mxu0 0.0
        %4350 = vmatpush1.msra.mxu0 0.0
        %4351 = vmatprep.subr.mxu0 0.0
        %4352 = vmatpush1.msra.mxu0 0.0
        %4353 = vmatprep.subr.mxu0 0.0
        %4354 = vmatpush1.msra.mxu0 0.0
        %4355 = vmatprep.subr.mxu0 0.0
        %4356 = vmatpush1.msra.mxu0 0.0
        %4357 = vmatprep.subr.mxu0 0.0
        %4358 = vmatpush1.msra.mxu0 0.0
        %4359 = vmatprep.subr.mxu0 0.0
        %4360 = vmatpush1.msra.mxu0 0.0
        %4361 = vmatprep.subr.mxu0 0.0
        %4362 = vmatpush1.msra.mxu0 0.0
        %4363 = vmatprep.subr.mxu0 0.0
        %4364 = vmatpush1.msra.mxu0 0.0
        %4365 = vmatprep.subr.mxu0 0.0
        %4366 = vmatpush1.msra.mxu0 0.0
        %4367 = vmatprep.subr.mxu0 0.0
        %4368 = vmatpush1.msra.mxu0 0.0
        %4369 = vmatprep.subr.mxu0 0.0
        %4370 = vmatpush1.msra.mxu0 0.0
        %4371 = vmatprep.subr.mxu0 0.0
        %4372 = vmatpush1.msra.mxu0 0.0
        %4373 = vmatprep.subr.mxu0 0.0
        %4374 = vmatpush1.msra.mxu0 0.0
        %4375 = vmatprep.subr.mxu0 0.0
        %4376 = vmatpush1.msra.mxu0 0.0
        %4377 = vmatprep.subr.mxu0 0.0
        %4378 = vmatpush1.msra.mxu0 0.0
        %4379 = vmatprep.subr.mxu0 0.0
        %4380 = vmatpush1.msra.mxu0 0.0
        %4381 = vmatprep.subr.mxu0 0.0
        %4382 = vmatpush1.msra.mxu0 0.0
        %4383 = vmatprep.subr.mxu0 0.0
        %4384 = vmatpush1.msra.mxu0 0.0
        %4385 = vmatprep.subr.mxu0 0.0
        %4386 = vmatpush1.msra.mxu0 0.0
        %4387 = vmatprep.subr.mxu0 0.0
        %4388 = vmatpush1.msra.mxu0 0.0
        %4389 = vmatprep.subr.mxu0 0.0
        %4390 = vmatpush1.msra.mxu0 0.0
        %4391 = vmatprep.subr.mxu0 0.0
        %4392 = vmatpush1.msra.mxu0 0.0
        %4393 = vmatprep.subr.mxu0 0.0
        %4394 = vmatpush1.msra.mxu0 0.0
        %4395 = vmatprep.subr.mxu0 0.0
        %4396 = vmatpush1.msra.mxu0 0.0
        %4397 = vmatprep.subr.mxu0 0.0
        %4398 = vmatpush1.msra.mxu0 0.0
        %4399 = vmatprep.subr.mxu0 0.0
        %4400 = vmatpush1.msra.mxu0 0.0
        %4401 = vmatprep.subr.mxu0 0.0
        %4402 = vmatpush1.msra.mxu0 0.0
        %4403 = vmatprep.subr.mxu0 0.0
        %4404 = vmatpush1.msra.mxu0 0.0
        %4405 = vmatprep.subr.mxu0 0.0
        %4406 = vmatpush1.msra.mxu0 0.0
        %4407 = vmatprep.mubr.f32.mxu0 0.0
        %v4408 = vand.u32 %v4065, 4294901760
        %4409 = vmatmul.mubr.f32.gmra.mrb[0].mxu0 %v4408
        %v4410 = vpop.f32.mrb[0].mxu0
        %v4411 = vadd.f32 %v4185, %v4410
        %v4412 = vpop.f32.mrb[0].mxu0
        %4413 = vmatprep.mubr.f32.mxu0 0.0
        %v4414 = vand.u32 %v4068, 4294901760
        %4415 = vmatmul.mubr.f32.gmra.mrb[0].mxu0 %v4414
        %v4416 = vpop.f32.mrb[0].mxu0
        %v4417 = vadd.f32 %v4195, %v4416
        %v4418 = vpop.f32.mrb[0].mxu0
        %4419 = vmatprep.mubr.f32.mxu0 0.0
        %v4420 = vand.u32 %v4071, 4294901760
        %4421 = vmatmul.mubr.f32.gmra.mrb[0].mxu0 %v4420
        %v4422 = vpop.f32.mrb[0].mxu0
        %v4423 = vadd.f32 %v4205, %v4422
        %v4424 = vpop.f32.mrb[0].mxu0
        %4425 = vmatprep.mubr.f32.mxu0 0.0
        %v4426 = vand.u32 %v4074, 4294901760
        %4427 = vmatmul.mubr.f32.gmra.mrb[0].mxu0 %v4426
        %v4428 = vpop.f32.mrb[0].mxu0
        %v4429 = vadd.f32 %v4215, %v4428
        %v4430 = vpop.f32.mrb[0].mxu0
        %4431 = vmatprep.mubr.f32.mxu0 0.0
        %v4432 = vand.u32 %v4077, 4294901760
        %4433 = vmatmul.mubr.f32.gmra.mrb[0].mxu0 %v4432
        %v4434 = vpop.f32.mrb[0].mxu0
        %v4435 = vadd.f32 %v4225, %v4434
        %v4436 = vpop.f32.mrb[0].mxu0
        %4437 = vmatprep.mubr.f32.mxu0 0.0
        %v4438 = vand.u32 %v4080, 4294901760
        %4439 = vmatmul.mubr.f32.gmra.mrb[0].mxu0 %v4438
        %v4440 = vpop.f32.mrb[0].mxu0
        %v4441 = vadd.f32 %v4235, %v4440
        %v4442 = vpop.f32.mrb[0].mxu0
        %4443 = vmatprep.mubr.f32.mxu0 0.0
        %v4444 = vand.u32 %v4083, 4294901760
        %4445 = vmatmul.mubr.f32.gmra.mrb[0].mxu0 %v4444
        %v4446 = vpop.f32.mrb[0].mxu0
        %v4447 = vadd.f32 %v4245, %v4446
        %v4448 = vpop.f32.mrb[0].mxu0
        %4449 = vmatprep.mubr.f32.mxu0 0.0
        %v4450 = vand.u32 %v4086, 4294901760
        %4451 = vmatmul.mubr.f32.gmra.mrb[0].mxu0 %v4450
        %v4452 = vpop.f32.mrb[0].mxu0
        %v4453 = vadd.f32 %v4255, %v4452
        %v4454 = vpop.f32.mrb[0].mxu0
        %4455 = vmatprep.mubr.f32.mxu0 0.0
        %v4456 = vand.u32 %v4089, 4294901760
        %4457 = vmatmul.mubr.f32.gmra.mrb[0].mxu0 %v4456
        %v4458 = vpop.f32.mrb[0].mxu0
        %v4459 = vadd.f32 %v4265, %v4458
        %v4460 = vpop.f32.mrb[0].mxu0
        %4461 = vmatprep.mubr.f32.mxu0 0.0
        %v4462 = vand.u32 %v4092, 4294901760
        %4463 = vmatmul.mubr.f32.gmra.mrb[0].mxu0 %v4462
        %v4464 = vpop.f32.mrb[0].mxu0
        %v4465 = vadd.f32 %v4275, %v4464
        %v4466 = vpop.f32.mrb[0].mxu0
        %4467 = vmatprep.mubr.f32.mxu0 0.0
        %v4468 = vand.u32 %v4095, 4294901760
        %4469 = vmatmul.mubr.f32.gmra.mrb[0].mxu0 %v4468
        %v4470 = vpop.f32.mrb[0].mxu0
        %v4471 = vadd.f32 %v4285, %v4470
        %v4472 = vpop.f32.mrb[0].mxu0
        %4473 = vmatprep.mubr.f32.mxu0 0.0
        %v4474 = vand.u32 %v4098, 4294901760
        %4475 = vmatmul.mubr.f32.gmra.mrb[0].mxu0 %v4474
        %v4476 = vpop.f32.mrb[0].mxu0
        %v4477 = vadd.f32 %v4295, %v4476
        %v4478 = vpop.f32.mrb[0].mxu0
        %4479 = vmatprep.mubr.f32.mxu0 0.0
        %v4480 = vand.u32 %v4101, 4294901760
        %4481 = vmatmul.mubr.f32.gmra.mrb[0].mxu0 %v4480
        %v4482 = vpop.f32.mrb[0].mxu0
        %v4483 = vadd.f32 %v4305, %v4482
        %v4484 = vpop.f32.mrb[0].mxu0
        %4485 = vmatprep.mubr.f32.mxu0 0.0
        %v4486 = vand.u32 %v4104, 4294901760
        %4487 = vmatmul.mubr.f32.gmra.mrb[0].mxu0 %v4486
        %v4488 = vpop.f32.mrb[0].mxu0
        %v4489 = vadd.f32 %v4315, %v4488
        %v4490 = vpop.f32.mrb[0].mxu0
        %4491 = vmatprep.mubr.f32.mxu0 0.0
        %v4492 = vand.u32 %v4107, 4294901760
        %4493 = vmatmul.mubr.f32.gmra.mrb[0].mxu0 %v4492
        %v4494 = vpop.f32.mrb[0].mxu0
        %v4495 = vadd.f32 %v4325, %v4494
        %v4496 = vpop.f32.mrb[0].mxu0
        %4497 = vmatprep.mubr.f32.mxu0 0.0
        %v4498 = vand.u32 %v4110, 4294901760
        %4499 = vmatmul.mubr.f32.gmra.mrb[0].mxu0 %v4498
        %v4500 = vpop.f32.mrb[0].mxu0
        %v4501 = vadd.f32 %v4335, %v4500
        %v4502 = vpop.f32.mrb[0].mxu0
        %4503 = vdwg.mxu0
        %4504 = vmatprep.subr.mxu0 0.0
        %v4505 = vand.u32 %v1605, 4294901760
        %v4506 = vsub.f32 %v1605, %v4505
        %4507 = vmatpush1.msra.mxu0 %v4506
        %4508 = vmatprep.subr.mxu0 0.0
        %4509 = vmatpush1.msra.mxu0 0.0
        %4510 = vmatprep.subr.mxu0 0.0
        %4511 = vmatpush1.msra.mxu0 0.0
        %4512 = vmatprep.subr.mxu0 0.0
        %4513 = vmatpush1.msra.mxu0 0.0
        %4514 = vmatprep.subr.mxu0 0.0
        %4515 = vmatpush1.msra.mxu0 0.0
        %4516 = vmatprep.subr.mxu0 0.0
        %4517 = vmatpush1.msra.mxu0 0.0
        %4518 = vmatprep.subr.mxu0 0.0
        %4519 = vmatpush1.msra.mxu0 0.0
        %4520 = vmatprep.subr.mxu0 0.0
        %4521 = vmatpush1.msra.mxu0 0.0
        %4522 = vmatprep.subr.mxu0 0.0
        %4523 = vmatpush1.msra.mxu0 0.0
        %4524 = vmatprep.subr.mxu0 0.0
        %4525 = vmatpush1.msra.mxu0 0.0
        %4526 = vmatprep.subr.mxu0 0.0
        %4527 = vmatpush1.msra.mxu0 0.0
        %4528 = vmatprep.subr.mxu0 0.0
        %4529 = vmatpush1.msra.mxu0 0.0
        %4530 = vmatprep.subr.mxu0 0.0
        %4531 = vmatpush1.msra.mxu0 0.0
        %4532 = vmatprep.subr.mxu0 0.0
        %4533 = vmatpush1.msra.mxu0 0.0
        %4534 = vmatprep.subr.mxu0 0.0
        %4535 = vmatpush1.msra.mxu0 0.0
        %4536 = vmatprep.subr.mxu0 0.0
        %4537 = vmatpush1.msra.mxu0 0.0
        %4538 = vmatprep.subr.mxu0 0.0
        %4539 = vmatpush1.msra.mxu0 0.0
        %4540 = vmatprep.subr.mxu0 0.0
        %4541 = vmatpush1.msra.mxu0 0.0
        %4542 = vmatprep.subr.mxu0 0.0
        %4543 = vmatpush1.msra.mxu0 0.0
        %4544 = vmatprep.subr.mxu0 0.0
        %4545 = vmatpush1.msra.mxu0 0.0
        %4546 = vmatprep.subr.mxu0 0.0
        %4547 = vmatpush1.msra.mxu0 0.0
        %4548 = vmatprep.subr.mxu0 0.0
        %4549 = vmatpush1.msra.mxu0 0.0
        %4550 = vmatprep.subr.mxu0 0.0
        %4551 = vmatpush1.msra.mxu0 0.0
        %4552 = vmatprep.subr.mxu0 0.0
        %4553 = vmatpush1.msra.mxu0 0.0
        %4554 = vmatprep.subr.mxu0 0.0
        %4555 = vmatpush1.msra.mxu0 0.0
        %4556 = vmatprep.subr.mxu0 0.0
        %4557 = vmatpush1.msra.mxu0 0.0
        %4558 = vmatprep.subr.mxu0 0.0
        %4559 = vmatpush1.msra.mxu0 0.0
        %4560 = vmatprep.subr.mxu0 0.0
        %4561 = vmatpush1.msra.mxu0 0.0
        %4562 = vmatprep.subr.mxu0 0.0
        %4563 = vmatpush1.msra.mxu0 0.0
        %4564 = vmatprep.subr.mxu0 0.0
        %4565 = vmatpush1.msra.mxu0 0.0
        %4566 = vmatprep.subr.mxu0 0.0
        %4567 = vmatpush1.msra.mxu0 0.0
        %4568 = vmatprep.subr.mxu0 0.0
        %4569 = vmatpush1.msra.mxu0 0.0
        %4570 = vmatprep.mubr.f32.mxu0 0.0
        %v4571 = vand.u32 %v4065, 4294901760
        %v4572 = vsub.f32 %v4065, %v4571
        %4573 = vmatmul.mubr.f32.gmra.mrb[0].mxu0 %v4572
        %v4574 = vpop.f32.mrb[0].mxu0
        %v4575 = vadd.f32 %v4411, %v4574
        %v4576 = vpop.f32.mrb[0].mxu0
        %4577 = vmatprep.mubr.f32.mxu0 0.0
        %v4578 = vand.u32 %v4068, 4294901760
        %v4579 = vsub.f32 %v4068, %v4578
        %4580 = vmatmul.mubr.f32.gmra.mrb[0].mxu0 %v4579
        %v4581 = vpop.f32.mrb[0].mxu0
        %v4582 = vadd.f32 %v4417, %v4581
        %v4583 = vpop.f32.mrb[0].mxu0
        %4584 = vmatprep.mubr.f32.mxu0 0.0
        %v4585 = vand.u32 %v4071, 4294901760
        %v4586 = vsub.f32 %v4071, %v4585
        %4587 = vmatmul.mubr.f32.gmra.mrb[0].mxu0 %v4586
        %v4588 = vpop.f32.mrb[0].mxu0
        %v4589 = vadd.f32 %v4423, %v4588
        %v4590 = vpop.f32.mrb[0].mxu0
        %4591 = vmatprep.mubr.f32.mxu0 0.0
        %v4592 = vand.u32 %v4074, 4294901760
        %v4593 = vsub.f32 %v4074, %v4592
        %4594 = vmatmul.mubr.f32.gmra.mrb[0].mxu0 %v4593
        %v4595 = vpop.f32.mrb[0].mxu0
        %v4596 = vadd.f32 %v4429, %v4595
        %v4597 = vpop.f32.mrb[0].mxu0
        %4598 = vmatprep.mubr.f32.mxu0 0.0
        %v4599 = vand.u32 %v4077, 4294901760
        %v4600 = vsub.f32 %v4077, %v4599
        %4601 = vmatmul.mubr.f32.gmra.mrb[0].mxu0 %v4600
        %v4602 = vpop.f32.mrb[0].mxu0
        %v4603 = vadd.f32 %v4435, %v4602
        %v4604 = vpop.f32.mrb[0].mxu0
        %4605 = vmatprep.mubr.f32.mxu0 0.0
        %v4606 = vand.u32 %v4080, 4294901760
        %v4607 = vsub.f32 %v4080, %v4606
        %4608 = vmatmul.mubr.f32.gmra.mrb[0].mxu0 %v4607
        %v4609 = vpop.f32.mrb[0].mxu0
        %v4610 = vadd.f32 %v4441, %v4609
        %v4611 = vpop.f32.mrb[0].mxu0
        %4612 = vmatprep.mubr.f32.mxu0 0.0
        %v4613 = vand.u32 %v4083, 4294901760
        %v4614 = vsub.f32 %v4083, %v4613
        %4615 = vmatmul.mubr.f32.gmra.mrb[0].mxu0 %v4614
        %v4616 = vpop.f32.mrb[0].mxu0
        %v4617 = vadd.f32 %v4447, %v4616
        %v4618 = vpop.f32.mrb[0].mxu0
        %4619 = vmatprep.mubr.f32.mxu0 0.0
        %v4620 = vand.u32 %v4086, 4294901760
        %v4621 = vsub.f32 %v4086, %v4620
        %4622 = vmatmul.mubr.f32.gmra.mrb[0].mxu0 %v4621
        %v4623 = vpop.f32.mrb[0].mxu0
        %v4624 = vadd.f32 %v4453, %v4623
        %v4625 = vpop.f32.mrb[0].mxu0
        %4626 = vmatprep.mubr.f32.mxu0 0.0
        %v4627 = vand.u32 %v4089, 4294901760
        %v4628 = vsub.f32 %v4089, %v4627
        %4629 = vmatmul.mubr.f32.gmra.mrb[0].mxu0 %v4628
        %v4630 = vpop.f32.mrb[0].mxu0
        %v4631 = vadd.f32 %v4459, %v4630
        %v4632 = vpop.f32.mrb[0].mxu0
        %4633 = vmatprep.mubr.f32.mxu0 0.0
        %v4634 = vand.u32 %v4092, 4294901760
        %v4635 = vsub.f32 %v4092, %v4634
        %4636 = vmatmul.mubr.f32.gmra.mrb[0].mxu0 %v4635
        %v4637 = vpop.f32.mrb[0].mxu0
        %v4638 = vadd.f32 %v4465, %v4637
        %v4639 = vpop.f32.mrb[0].mxu0
        %4640 = vmatprep.mubr.f32.mxu0 0.0
        %v4641 = vand.u32 %v4095, 4294901760
        %v4642 = vsub.f32 %v4095, %v4641
        %4643 = vmatmul.mubr.f32.gmra.mrb[0].mxu0 %v4642
        %v4644 = vpop.f32.mrb[0].mxu0
        %v4645 = vadd.f32 %v4471, %v4644
        %v4646 = vpop.f32.mrb[0].mxu0
        %4647 = vmatprep.mubr.f32.mxu0 0.0
        %v4648 = vand.u32 %v4098, 4294901760
        %v4649 = vsub.f32 %v4098, %v4648
        %4650 = vmatmul.mubr.f32.gmra.mrb[0].mxu0 %v4649
        %v4651 = vpop.f32.mrb[0].mxu0
        %v4652 = vadd.f32 %v4477, %v4651
        %v4653 = vpop.f32.mrb[0].mxu0
        %4654 = vmatprep.mubr.f32.mxu0 0.0
        %v4655 = vand.u32 %v4101, 4294901760
        %v4656 = vsub.f32 %v4101, %v4655
        %4657 = vmatmul.mubr.f32.gmra.mrb[0].mxu0 %v4656
        %v4658 = vpop.f32.mrb[0].mxu0
        %v4659 = vadd.f32 %v4483, %v4658
        %v4660 = vpop.f32.mrb[0].mxu0
        %4661 = vmatprep.mubr.f32.mxu0 0.0
        %v4662 = vand.u32 %v4104, 4294901760
        %v4663 = vsub.f32 %v4104, %v4662
        %4664 = vmatmul.mubr.f32.gmra.mrb[0].mxu0 %v4663
        %v4665 = vpop.f32.mrb[0].mxu0
        %v4666 = vadd.f32 %v4489, %v4665
        %v4667 = vpop.f32.mrb[0].mxu0
        %4668 = vmatprep.mubr.f32.mxu0 0.0
        %v4669 = vand.u32 %v4107, 4294901760
        %v4670 = vsub.f32 %v4107, %v4669
        %4671 = vmatmul.mubr.f32.gmra.mrb[0].mxu0 %v4670
        %v4672 = vpop.f32.mrb[0].mxu0
        %v4673 = vadd.f32 %v4495, %v4672
        %v4674 = vpop.f32.mrb[0].mxu0
        %4675 = vmatprep.mubr.f32.mxu0 0.0
        %v4676 = vand.u32 %v4110, 4294901760
        %v4677 = vsub.f32 %v4110, %v4676
        %4678 = vmatmul.mubr.f32.gmra.mrb[0].mxu0 %v4677
        %v4679 = vpop.f32.mrb[0].mxu0
        %v4680 = vadd.f32 %v4501, %v4679
        %v4681 = vpop.f32.mrb[0].mxu0
        %4682 = vdwg.mxu0
        %4683 = vmatprep.subr.mxu0 0.0
        %v4684 = vand.u32 %v1605, 4294901760
        %4685 = vmatpush1.msra.mxu0 %v4684
        %4686 = vmatprep.subr.mxu0 0.0
        %4687 = vmatpush1.msra.mxu0 0.0
        %4688 = vmatprep.subr.mxu0 0.0
        %4689 = vmatpush1.msra.mxu0 0.0
        %4690 = vmatprep.subr.mxu0 0.0
        %4691 = vmatpush1.msra.mxu0 0.0
        %4692 = vmatprep.subr.mxu0 0.0
        %4693 = vmatpush1.msra.mxu0 0.0
        %4694 = vmatprep.subr.mxu0 0.0
        %4695 = vmatpush1.msra.mxu0 0.0
        %4696 = vmatprep.subr.mxu0 0.0
        %4697 = vmatpush1.msra.mxu0 0.0
        %4698 = vmatprep.subr.mxu0 0.0
        %4699 = vmatpush1.msra.mxu0 0.0
        %4700 = vmatprep.subr.mxu0 0.0
        %4701 = vmatpush1.msra.mxu0 0.0
        %4702 = vmatprep.subr.mxu0 0.0
        %4703 = vmatpush1.msra.mxu0 0.0
        %4704 = vmatprep.subr.mxu0 0.0
        %4705 = vmatpush1.msra.mxu0 0.0
        %4706 = vmatprep.subr.mxu0 0.0
        %4707 = vmatpush1.msra.mxu0 0.0
        %4708 = vmatprep.subr.mxu0 0.0
        %4709 = vmatpush1.msra.mxu0 0.0
        %4710 = vmatprep.subr.mxu0 0.0
        %4711 = vmatpush1.msra.mxu0 0.0
        %4712 = vmatprep.subr.mxu0 0.0
        %4713 = vmatpush1.msra.mxu0 0.0
        %4714 = vmatprep.subr.mxu0 0.0
        %4715 = vmatpush1.msra.mxu0 0.0
        %4716 = vmatprep.subr.mxu0 0.0
        %4717 = vmatpush1.msra.mxu0 0.0
        %4718 = vmatprep.subr.mxu0 0.0
        %4719 = vmatpush1.msra.mxu0 0.0
        %4720 = vmatprep.subr.mxu0 0.0
        %4721 = vmatpush1.msra.mxu0 0.0
        %4722 = vmatprep.subr.mxu0 0.0
        %4723 = vmatpush1.msra.mxu0 0.0
        %4724 = vmatprep.subr.mxu0 0.0
        %4725 = vmatpush1.msra.mxu0 0.0
        %4726 = vmatprep.subr.mxu0 0.0
        %4727 = vmatpush1.msra.mxu0 0.0
        %4728 = vmatprep.subr.mxu0 0.0
        %4729 = vmatpush1.msra.mxu0 0.0
        %4730 = vmatprep.subr.mxu0 0.0
        %4731 = vmatpush1.msra.mxu0 0.0
        %4732 = vmatprep.subr.mxu0 0.0
        %4733 = vmatpush1.msra.mxu0 0.0
        %4734 = vmatprep.subr.mxu0 0.0
        %4735 = vmatpush1.msra.mxu0 0.0
        %4736 = vmatprep.subr.mxu0 0.0
        %4737 = vmatpush1.msra.mxu0 0.0
        %4738 = vmatprep.subr.mxu0 0.0
        %4739 = vmatpush1.msra.mxu0 0.0
        %4740 = vmatprep.subr.mxu0 0.0
        %4741 = vmatpush1.msra.mxu0 0.0
        %4742 = vmatprep.subr.mxu0 0.0
        %4743 = vmatpush1.msra.mxu0 0.0
        %4744 = vmatprep.subr.mxu0 0.0
        %4745 = vmatpush1.msra.mxu0 0.0
        %4746 = vmatprep.subr.mxu0 0.0
        %4747 = vmatpush1.msra.mxu0 0.0
        %4748 = vmatprep.mubr.f32.mxu0 0.0
        %v4749 = vand.u32 %v4065, 4294901760
        %v4750 = vsub.f32 %v4065, %v4749
        %v4751 = vand.u32 %v4750, 4294901760
        %4752 = vmatmul.mubr.f32.gmra.mrb[0].mxu0 %v4751
        %v4753 = vpop.f32.mrb[0].mxu0
        %v4754 = vadd.f32 %v4575, %v4753
        %v4755 = vpop.f32.mrb[0].mxu0
        %4756 = vmatprep.mubr.f32.mxu0 0.0
        %v4757 = vand.u32 %v4068, 4294901760
        %v4758 = vsub.f32 %v4068, %v4757
        %v4759 = vand.u32 %v4758, 4294901760
        %4760 = vmatmul.mubr.f32.gmra.mrb[0].mxu0 %v4759
        %v4761 = vpop.f32.mrb[0].mxu0
        %v4762 = vadd.f32 %v4582, %v4761
        %v4763 = vpop.f32.mrb[0].mxu0
        %4764 = vmatprep.mubr.f32.mxu0 0.0
        %v4765 = vand.u32 %v4071, 4294901760
        %v4766 = vsub.f32 %v4071, %v4765
        %v4767 = vand.u32 %v4766, 4294901760
        %4768 = vmatmul.mubr.f32.gmra.mrb[0].mxu0 %v4767
        %v4769 = vpop.f32.mrb[0].mxu0
        %v4770 = vadd.f32 %v4589, %v4769
        %v4771 = vpop.f32.mrb[0].mxu0
        %4772 = vmatprep.mubr.f32.mxu0 0.0
        %v4773 = vand.u32 %v4074, 4294901760
        %v4774 = vsub.f32 %v4074, %v4773
        %v4775 = vand.u32 %v4774, 4294901760
        %4776 = vmatmul.mubr.f32.gmra.mrb[0].mxu0 %v4775
        %v4777 = vpop.f32.mrb[0].mxu0
        %v4778 = vadd.f32 %v4596, %v4777
        %v4779 = vpop.f32.mrb[0].mxu0
        %4780 = vmatprep.mubr.f32.mxu0 0.0
        %v4781 = vand.u32 %v4077, 4294901760
        %v4782 = vsub.f32 %v4077, %v4781
        %v4783 = vand.u32 %v4782, 4294901760
        %4784 = vmatmul.mubr.f32.gmra.mrb[0].mxu0 %v4783
        %v4785 = vpop.f32.mrb[0].mxu0
        %v4786 = vadd.f32 %v4603, %v4785
        %v4787 = vpop.f32.mrb[0].mxu0
        %4788 = vmatprep.mubr.f32.mxu0 0.0
        %v4789 = vand.u32 %v4080, 4294901760
        %v4790 = vsub.f32 %v4080, %v4789
        %v4791 = vand.u32 %v4790, 4294901760
        %4792 = vmatmul.mubr.f32.gmra.mrb[0].mxu0 %v4791
        %v4793 = vpop.f32.mrb[0].mxu0
        %v4794 = vadd.f32 %v4610, %v4793
        %v4795 = vpop.f32.mrb[0].mxu0
        %4796 = vmatprep.mubr.f32.mxu0 0.0
        %v4797 = vand.u32 %v4083, 4294901760
        %v4798 = vsub.f32 %v4083, %v4797
        %v4799 = vand.u32 %v4798, 4294901760
        %4800 = vmatmul.mubr.f32.gmra.mrb[0].mxu0 %v4799
        %v4801 = vpop.f32.mrb[0].mxu0
        %v4802 = vadd.f32 %v4617, %v4801
        %v4803 = vpop.f32.mrb[0].mxu0
        %4804 = vmatprep.mubr.f32.mxu0 0.0
        %v4805 = vand.u32 %v4086, 4294901760
        %v4806 = vsub.f32 %v4086, %v4805
        %v4807 = vand.u32 %v4806, 4294901760
        %4808 = vmatmul.mubr.f32.gmra.mrb[0].mxu0 %v4807
        %v4809 = vpop.f32.mrb[0].mxu0
        %v4810 = vadd.f32 %v4624, %v4809
        %v4811 = vpop.f32.mrb[0].mxu0
        %4812 = vmatprep.mubr.f32.mxu0 0.0
        %v4813 = vand.u32 %v4089, 4294901760
        %v4814 = vsub.f32 %v4089, %v4813
        %v4815 = vand.u32 %v4814, 4294901760
        %4816 = vmatmul.mubr.f32.gmra.mrb[0].mxu0 %v4815
        %v4817 = vpop.f32.mrb[0].mxu0
        %v4818 = vadd.f32 %v4631, %v4817
        %v4819 = vpop.f32.mrb[0].mxu0
        %4820 = vmatprep.mubr.f32.mxu0 0.0
        %v4821 = vand.u32 %v4092, 4294901760
        %v4822 = vsub.f32 %v4092, %v4821
        %v4823 = vand.u32 %v4822, 4294901760
        %4824 = vmatmul.mubr.f32.gmra.mrb[0].mxu0 %v4823
        %v4825 = vpop.f32.mrb[0].mxu0
        %v4826 = vadd.f32 %v4638, %v4825
        %v4827 = vpop.f32.mrb[0].mxu0
        %4828 = vmatprep.mubr.f32.mxu0 0.0
        %v4829 = vand.u32 %v4095, 4294901760
        %v4830 = vsub.f32 %v4095, %v4829
        %v4831 = vand.u32 %v4830, 4294901760
        %4832 = vmatmul.mubr.f32.gmra.mrb[0].mxu0 %v4831
        %v4833 = vpop.f32.mrb[0].mxu0
        %v4834 = vadd.f32 %v4645, %v4833
        %v4835 = vpop.f32.mrb[0].mxu0
        %4836 = vmatprep.mubr.f32.mxu0 0.0
        %v4837 = vand.u32 %v4098, 4294901760
        %v4838 = vsub.f32 %v4098, %v4837
        %v4839 = vand.u32 %v4838, 4294901760
        %4840 = vmatmul.mubr.f32.gmra.mrb[0].mxu0 %v4839
        %v4841 = vpop.f32.mrb[0].mxu0
        %v4842 = vadd.f32 %v4652, %v4841
        %v4843 = vpop.f32.mrb[0].mxu0
        %4844 = vmatprep.mubr.f32.mxu0 0.0
        %v4845 = vand.u32 %v4101, 4294901760
        %v4846 = vsub.f32 %v4101, %v4845
        %v4847 = vand.u32 %v4846, 4294901760
        %4848 = vmatmul.mubr.f32.gmra.mrb[0].mxu0 %v4847
        %v4849 = vpop.f32.mrb[0].mxu0
        %v4850 = vadd.f32 %v4659, %v4849
        %v4851 = vpop.f32.mrb[0].mxu0
        %4852 = vmatprep.mubr.f32.mxu0 0.0
        %v4853 = vand.u32 %v4104, 4294901760
        %v4854 = vsub.f32 %v4104, %v4853
        %v4855 = vand.u32 %v4854, 4294901760
        %4856 = vmatmul.mubr.f32.gmra.mrb[0].mxu0 %v4855
        %v4857 = vpop.f32.mrb[0].mxu0
        %v4858 = vadd.f32 %v4666, %v4857
        %v4859 = vpop.f32.mrb[0].mxu0
        %4860 = vmatprep.mubr.f32.mxu0 0.0
        %v4861 = vand.u32 %v4107, 4294901760
        %v4862 = vsub.f32 %v4107, %v4861
        %v4863 = vand.u32 %v4862, 4294901760
        %4864 = vmatmul.mubr.f32.gmra.mrb[0].mxu0 %v4863
        %v4865 = vpop.f32.mrb[0].mxu0
        %v4866 = vadd.f32 %v4673, %v4865
        %v4867 = vpop.f32.mrb[0].mxu0
        %4868 = vmatprep.mubr.f32.mxu0 0.0
        %v4869 = vand.u32 %v4110, 4294901760
        %v4870 = vsub.f32 %v4110, %v4869
        %v4871 = vand.u32 %v4870, 4294901760
        %4872 = vmatmul.mubr.f32.gmra.mrb[0].mxu0 %v4871
        %v4873 = vpop.f32.mrb[0].mxu0
        %v4874 = vadd.f32 %v4680, %v4873
        %v4875 = vpop.f32.mrb[0].mxu0
        %4876 = vdwg.mxu0
        %4877 = vmatprep.subr.mxu0 0.0
        %v4878 = vand.u32 %v1605, 4294901760
        %v4879 = vsub.f32 %v1605, %v4878
        %v4880 = vand.u32 %v4879, 4294901760
        %4881 = vmatpush1.msra.mxu0 %v4880
        %4882 = vmatprep.subr.mxu0 0.0
        %4883 = vmatpush1.msra.mxu0 0.0
        %4884 = vmatprep.subr.mxu0 0.0
        %4885 = vmatpush1.msra.mxu0 0.0
        %4886 = vmatprep.subr.mxu0 0.0
        %4887 = vmatpush1.msra.mxu0 0.0
        %4888 = vmatprep.subr.mxu0 0.0
        %4889 = vmatpush1.msra.mxu0 0.0
        %4890 = vmatprep.subr.mxu0 0.0
        %4891 = vmatpush1.msra.mxu0 0.0
        %4892 = vmatprep.subr.mxu0 0.0
        %4893 = vmatpush1.msra.mxu0 0.0
        %4894 = vmatprep.subr.mxu0 0.0
        %4895 = vmatpush1.msra.mxu0 0.0
        %4896 = vmatprep.subr.mxu0 0.0
        %4897 = vmatpush1.msra.mxu0 0.0
        %4898 = vmatprep.subr.mxu0 0.0
        %4899 = vmatpush1.msra.mxu0 0.0
        %4900 = vmatprep.subr.mxu0 0.0
        %4901 = vmatpush1.msra.mxu0 0.0
        %4902 = vmatprep.subr.mxu0 0.0
        %4903 = vmatpush1.msra.mxu0 0.0
        %4904 = vmatprep.subr.mxu0 0.0
        %4905 = vmatpush1.msra.mxu0 0.0
        %4906 = vmatprep.subr.mxu0 0.0
        %4907 = vmatpush1.msra.mxu0 0.0
        %4908 = vmatprep.subr.mxu0 0.0
        %4909 = vmatpush1.msra.mxu0 0.0
        %4910 = vmatprep.subr.mxu0 0.0
        %4911 = vmatpush1.msra.mxu0 0.0
        %4912 = vmatprep.subr.mxu0 0.0
        %4913 = vmatpush1.msra.mxu0 0.0
        %4914 = vmatprep.subr.mxu0 0.0
        %4915 = vmatpush1.msra.mxu0 0.0
        %4916 = vmatprep.subr.mxu0 0.0
        %4917 = vmatpush1.msra.mxu0 0.0
        %4918 = vmatprep.subr.mxu0 0.0
        %4919 = vmatpush1.msra.mxu0 0.0
        %4920 = vmatprep.subr.mxu0 0.0
        %4921 = vmatpush1.msra.mxu0 0.0
        %4922 = vmatprep.subr.mxu0 0.0
        %4923 = vmatpush1.msra.mxu0 0.0
        %4924 = vmatprep.subr.mxu0 0.0
        %4925 = vmatpush1.msra.mxu0 0.0
        %4926 = vmatprep.subr.mxu0 0.0
        %4927 = vmatpush1.msra.mxu0 0.0
        %4928 = vmatprep.subr.mxu0 0.0
        %4929 = vmatpush1.msra.mxu0 0.0
        %4930 = vmatprep.subr.mxu0 0.0
        %4931 = vmatpush1.msra.mxu0 0.0
        %4932 = vmatprep.subr.mxu0 0.0
        %4933 = vmatpush1.msra.mxu0 0.0
        %4934 = vmatprep.subr.mxu0 0.0
        %4935 = vmatpush1.msra.mxu0 0.0
        %4936 = vmatprep.subr.mxu0 0.0
        %4937 = vmatpush1.msra.mxu0 0.0
        %4938 = vmatprep.subr.mxu0 0.0
        %4939 = vmatpush1.msra.mxu0 0.0
        %4940 = vmatprep.subr.mxu0 0.0
        %4941 = vmatpush1.msra.mxu0 0.0
        %4942 = vmatprep.subr.mxu0 0.0
        %4943 = vmatpush1.msra.mxu0 0.0
        %4944 = vmatprep.mubr.f32.mxu0 0.0
        %v4945 = vand.u32 %v4065, 4294901760
        %4946 = vmatmul.mubr.f32.gmra.mrb[0].mxu0 %v4945
        %v4947 = vpop.f32.mrb[0].mxu0
        %v4948 = vadd.f32 %v4754, %v4947
        %v4949 = vpop.f32.mrb[0].mxu0
        %4950 = vmatprep.mubr.f32.mxu0 0.0
        %v4951 = vand.u32 %v4068, 4294901760
        %4952 = vmatmul.mubr.f32.gmra.mrb[0].mxu0 %v4951
        %v4953 = vpop.f32.mrb[0].mxu0
        %v4954 = vadd.f32 %v4762, %v4953
        %v4955 = vpop.f32.mrb[0].mxu0
        %4956 = vmatprep.mubr.f32.mxu0 0.0
        %v4957 = vand.u32 %v4071, 4294901760
        %4958 = vmatmul.mubr.f32.gmra.mrb[0].mxu0 %v4957
        %v4959 = vpop.f32.mrb[0].mxu0
        %v4960 = vadd.f32 %v4770, %v4959
        %v4961 = vpop.f32.mrb[0].mxu0
        %4962 = vmatprep.mubr.f32.mxu0 0.0
        %v4963 = vand.u32 %v4074, 4294901760
        %4964 = vmatmul.mubr.f32.gmra.mrb[0].mxu0 %v4963
        %v4965 = vpop.f32.mrb[0].mxu0
        %v4966 = vadd.f32 %v4778, %v4965
        %v4967 = vpop.f32.mrb[0].mxu0
        %4968 = vmatprep.mubr.f32.mxu0 0.0
        %v4969 = vand.u32 %v4077, 4294901760
        %4970 = vmatmul.mubr.f32.gmra.mrb[0].mxu0 %v4969
        %v4971 = vpop.f32.mrb[0].mxu0
        %v4972 = vadd.f32 %v4786, %v4971
        %v4973 = vpop.f32.mrb[0].mxu0
        %4974 = vmatprep.mubr.f32.mxu0 0.0
        %v4975 = vand.u32 %v4080, 4294901760
        %4976 = vmatmul.mubr.f32.gmra.mrb[0].mxu0 %v4975
        %v4977 = vpop.f32.mrb[0].mxu0
        %v4978 = vadd.f32 %v4794, %v4977
        %v4979 = vpop.f32.mrb[0].mxu0
        %4980 = vmatprep.mubr.f32.mxu0 0.0
        %v4981 = vand.u32 %v4083, 4294901760
        %4982 = vmatmul.mubr.f32.gmra.mrb[0].mxu0 %v4981
        %v4983 = vpop.f32.mrb[0].mxu0
        %v4984 = vadd.f32 %v4802, %v4983
        %v4985 = vpop.f32.mrb[0].mxu0
        %4986 = vmatprep.mubr.f32.mxu0 0.0
        %v4987 = vand.u32 %v4086, 4294901760
        %4988 = vmatmul.mubr.f32.gmra.mrb[0].mxu0 %v4987
        %v4989 = vpop.f32.mrb[0].mxu0
        %v4990 = vadd.f32 %v4810, %v4989
        %v4991 = vpop.f32.mrb[0].mxu0
        %4992 = vmatprep.mubr.f32.mxu0 0.0
        %v4993 = vand.u32 %v4089, 4294901760
        %4994 = vmatmul.mubr.f32.gmra.mrb[0].mxu0 %v4993
        %v4995 = vpop.f32.mrb[0].mxu0
        %v4996 = vadd.f32 %v4818, %v4995
        %v4997 = vpop.f32.mrb[0].mxu0
        %4998 = vmatprep.mubr.f32.mxu0 0.0
        %v4999 = vand.u32 %v4092, 4294901760
        %5000 = vmatmul.mubr.f32.gmra.mrb[0].mxu0 %v4999
        %v5001 = vpop.f32.mrb[0].mxu0
        %v5002 = vadd.f32 %v4826, %v5001
        %v5003 = vpop.f32.mrb[0].mxu0
        %5004 = vmatprep.mubr.f32.mxu0 0.0
        %v5005 = vand.u32 %v4095, 4294901760
        %5006 = vmatmul.mubr.f32.gmra.mrb[0].mxu0 %v5005
        %v5007 = vpop.f32.mrb[0].mxu0
        %v5008 = vadd.f32 %v4834, %v5007
        %v5009 = vpop.f32.mrb[0].mxu0
        %5010 = vmatprep.mubr.f32.mxu0 0.0
        %v5011 = vand.u32 %v4098, 4294901760
        %5012 = vmatmul.mubr.f32.gmra.mrb[0].mxu0 %v5011
        %v5013 = vpop.f32.mrb[0].mxu0
        %v5014 = vadd.f32 %v4842, %v5013
        %v5015 = vpop.f32.mrb[0].mxu0
        %5016 = vmatprep.mubr.f32.mxu0 0.0
        %v5017 = vand.u32 %v4101, 4294901760
        %5018 = vmatmul.mubr.f32.gmra.mrb[0].mxu0 %v5017
        %v5019 = vpop.f32.mrb[0].mxu0
        %v5020 = vadd.f32 %v4850, %v5019
        %v5021 = vpop.f32.mrb[0].mxu0
        %5022 = vmatprep.mubr.f32.mxu0 0.0
        %v5023 = vand.u32 %v4104, 4294901760
        %5024 = vmatmul.mubr.f32.gmra.mrb[0].mxu0 %v5023
        %v5025 = vpop.f32.mrb[0].mxu0
        %v5026 = vadd.f32 %v4858, %v5025
        %v5027 = vpop.f32.mrb[0].mxu0
        %5028 = vmatprep.mubr.f32.mxu0 0.0
        %v5029 = vand.u32 %v4107, 4294901760
        %5030 = vmatmul.mubr.f32.gmra.mrb[0].mxu0 %v5029
        %v5031 = vpop.f32.mrb[0].mxu0
        %v5032 = vadd.f32 %v4866, %v5031
        %v5033 = vpop.f32.mrb[0].mxu0
        %5034 = vmatprep.mubr.f32.mxu0 0.0
        %v5035 = vand.u32 %v4110, 4294901760
        %5036 = vmatmul.mubr.f32.gmra.mrb[0].mxu0 %v5035
        %v5037 = vpop.f32.mrb[0].mxu0
        %v5038 = vadd.f32 %v4874, %v5037
        %v5039 = vpop.f32.mrb[0].mxu0
        %5040 = vdwg.mxu0
        %5041 = vmatprep.subr.mxu0 0.0
        %v5042 = vand.u32 %v1605, 4294901760
        %5043 = vmatpush1.msra.mxu0 %v5042
        %5044 = vmatprep.subr.mxu0 0.0
        %5045 = vmatpush1.msra.mxu0 0.0
        %5046 = vmatprep.subr.mxu0 0.0
        %5047 = vmatpush1.msra.mxu0 0.0
        %5048 = vmatprep.subr.mxu0 0.0
        %5049 = vmatpush1.msra.mxu0 0.0
        %5050 = vmatprep.subr.mxu0 0.0
        %5051 = vmatpush1.msra.mxu0 0.0
        %5052 = vmatprep.subr.mxu0 0.0
        %5053 = vmatpush1.msra.mxu0 0.0
        %5054 = vmatprep.subr.mxu0 0.0
        %5055 = vmatpush1.msra.mxu0 0.0
        %5056 = vmatprep.subr.mxu0 0.0
        %5057 = vmatpush1.msra.mxu0 0.0
        %5058 = vmatprep.subr.mxu0 0.0
        %5059 = vmatpush1.msra.mxu0 0.0
        %5060 = vmatprep.subr.mxu0 0.0
        %5061 = vmatpush1.msra.mxu0 0.0
        %5062 = vmatprep.subr.mxu0 0.0
        %5063 = vmatpush1.msra.mxu0 0.0
        %5064 = vmatprep.subr.mxu0 0.0
        %5065 = vmatpush1.msra.mxu0 0.0
        %5066 = vmatprep.subr.mxu0 0.0
        %5067 = vmatpush1.msra.mxu0 0.0
        %5068 = vmatprep.subr.mxu0 0.0
        %5069 = vmatpush1.msra.mxu0 0.0
        %5070 = vmatprep.subr.mxu0 0.0
        %5071 = vmatpush1.msra.mxu0 0.0
        %5072 = vmatprep.subr.mxu0 0.0
        %5073 = vmatpush1.msra.mxu0 0.0
        %5074 = vmatprep.subr.mxu0 0.0
        %5075 = vmatpush1.msra.mxu0 0.0
        %5076 = vmatprep.subr.mxu0 0.0
        %5077 = vmatpush1.msra.mxu0 0.0
        %5078 = vmatprep.subr.mxu0 0.0
        %5079 = vmatpush1.msra.mxu0 0.0
        %5080 = vmatprep.subr.mxu0 0.0
        %5081 = vmatpush1.msra.mxu0 0.0
        %5082 = vmatprep.subr.mxu0 0.0
        %5083 = vmatpush1.msra.mxu0 0.0
        %5084 = vmatprep.subr.mxu0 0.0
        %5085 = vmatpush1.msra.mxu0 0.0
        %5086 = vmatprep.subr.mxu0 0.0
        %5087 = vmatpush1.msra.mxu0 0.0
        %5088 = vmatprep.subr.mxu0 0.0
        %5089 = vmatpush1.msra.mxu0 0.0
        %5090 = vmatprep.subr.mxu0 0.0
        %5091 = vmatpush1.msra.mxu0 0.0
        %5092 = vmatprep.subr.mxu0 0.0
        %5093 = vmatpush1.msra.mxu0 0.0
        %5094 = vmatprep.subr.mxu0 0.0
        %5095 = vmatpush1.msra.mxu0 0.0
        %5096 = vmatprep.subr.mxu0 0.0
        %5097 = vmatpush1.msra.mxu0 0.0
        %5098 = vmatprep.subr.mxu0 0.0
        %5099 = vmatpush1.msra.mxu0 0.0
        %5100 = vmatprep.subr.mxu0 0.0
        %5101 = vmatpush1.msra.mxu0 0.0
        %5102 = vmatprep.subr.mxu0 0.0
        %5103 = vmatpush1.msra.mxu0 0.0
        %5104 = vmatprep.subr.mxu0 0.0
        %5105 = vmatpush1.msra.mxu0 0.0
        %5106 = vmatprep.mubr.f32.mxu0 0.0
        %v5107 = vand.u32 %v4065, 4294901760
        %5108 = vmatmul.mubr.f32.gmra.mrb[0].mxu0 %v5107
        %v5109 = vpop.f32.mrb[0].mxu0
        %v5110 = vadd.f32 %v4948, %v5109
        %v5111 = vpop.f32.mrb[0].mxu0
        %5112 = vmatprep.mubr.f32.mxu0 0.0
        %v5113 = vand.u32 %v4068, 4294901760
        %5114 = vmatmul.mubr.f32.gmra.mrb[0].mxu0 %v5113
        %v5115 = vpop.f32.mrb[0].mxu0
        %v5116 = vadd.f32 %v4954, %v5115
        %v5117 = vpop.f32.mrb[0].mxu0
        %5118 = vmatprep.mubr.f32.mxu0 0.0
        %v5119 = vand.u32 %v4071, 4294901760
        %5120 = vmatmul.mubr.f32.gmra.mrb[0].mxu0 %v5119
        %v5121 = vpop.f32.mrb[0].mxu0
        %v5122 = vadd.f32 %v4960, %v5121
        %v5123 = vpop.f32.mrb[0].mxu0
        %5124 = vmatprep.mubr.f32.mxu0 0.0
        %v5125 = vand.u32 %v4074, 4294901760
        %5126 = vmatmul.mubr.f32.gmra.mrb[0].mxu0 %v5125
        %v5127 = vpop.f32.mrb[0].mxu0
        %v5128 = vadd.f32 %v4966, %v5127
        %v5129 = vpop.f32.mrb[0].mxu0
        %5130 = vmatprep.mubr.f32.mxu0 0.0
        %v5131 = vand.u32 %v4077, 4294901760
        %5132 = vmatmul.mubr.f32.gmra.mrb[0].mxu0 %v5131
        %v5133 = vpop.f32.mrb[0].mxu0
        %v5134 = vadd.f32 %v4972, %v5133
        %v5135 = vpop.f32.mrb[0].mxu0
        %5136 = vmatprep.mubr.f32.mxu0 0.0
        %v5137 = vand.u32 %v4080, 4294901760
        %5138 = vmatmul.mubr.f32.gmra.mrb[0].mxu0 %v5137
        %v5139 = vpop.f32.mrb[0].mxu0
        %v5140 = vadd.f32 %v4978, %v5139
        %v5141 = vpop.f32.mrb[0].mxu0
        %5142 = vmatprep.mubr.f32.mxu0 0.0
        %v5143 = vand.u32 %v4083, 4294901760
        %5144 = vmatmul.mubr.f32.gmra.mrb[0].mxu0 %v5143
        %v5145 = vpop.f32.mrb[0].mxu0
        %v5146 = vadd.f32 %v4984, %v5145
        %v5147 = vpop.f32.mrb[0].mxu0
        %5148 = vmatprep.mubr.f32.mxu0 0.0
        %v5149 = vand.u32 %v4086, 4294901760
        %5150 = vmatmul.mubr.f32.gmra.mrb[0].mxu0 %v5149
        %v5151 = vpop.f32.mrb[0].mxu0
        %v5152 = vadd.f32 %v4990, %v5151
        %v5153 = vpop.f32.mrb[0].mxu0
        %5154 = vmatprep.mubr.f32.mxu0 0.0
        %v5155 = vand.u32 %v4089, 4294901760
        %5156 = vmatmul.mubr.f32.gmra.mrb[0].mxu0 %v5155
        %v5157 = vpop.f32.mrb[0].mxu0
        %v5158 = vadd.f32 %v4996, %v5157
        %v5159 = vpop.f32.mrb[0].mxu0
        %5160 = vmatprep.mubr.f32.mxu0 0.0
        %v5161 = vand.u32 %v4092, 4294901760
        %5162 = vmatmul.mubr.f32.gmra.mrb[0].mxu0 %v5161
        %v5163 = vpop.f32.mrb[0].mxu0
        %v5164 = vadd.f32 %v5002, %v5163
        %v5165 = vpop.f32.mrb[0].mxu0
        %5166 = vmatprep.mubr.f32.mxu0 0.0
        %v5167 = vand.u32 %v4095, 4294901760
        %5168 = vmatmul.mubr.f32.gmra.mrb[0].mxu0 %v5167
        %v5169 = vpop.f32.mrb[0].mxu0
        %v5170 = vadd.f32 %v5008, %v5169
        %v5171 = vpop.f32.mrb[0].mxu0
        %5172 = vmatprep.mubr.f32.mxu0 0.0
        %v5173 = vand.u32 %v4098, 4294901760
        %5174 = vmatmul.mubr.f32.gmra.mrb[0].mxu0 %v5173
        %v5175 = vpop.f32.mrb[0].mxu0
        %v5176 = vadd.f32 %v5014, %v5175
        %v5177 = vpop.f32.mrb[0].mxu0
        %5178 = vmatprep.mubr.f32.mxu0 0.0
        %v5179 = vand.u32 %v4101, 4294901760
        %5180 = vmatmul.mubr.f32.gmra.mrb[0].mxu0 %v5179
        %v5181 = vpop.f32.mrb[0].mxu0
        %v5182 = vadd.f32 %v5020, %v5181
        %v5183 = vpop.f32.mrb[0].mxu0
        %5184 = vmatprep.mubr.f32.mxu0 0.0
        %v5185 = vand.u32 %v4104, 4294901760
        %5186 = vmatmul.mubr.f32.gmra.mrb[0].mxu0 %v5185
        %v5187 = vpop.f32.mrb[0].mxu0
        %v5188 = vadd.f32 %v5026, %v5187
        %v5189 = vpop.f32.mrb[0].mxu0
        %5190 = vmatprep.mubr.f32.mxu0 0.0
        %v5191 = vand.u32 %v4107, 4294901760
        %5192 = vmatmul.mubr.f32.gmra.mrb[0].mxu0 %v5191
        %v5193 = vpop.f32.mrb[0].mxu0
        %v5194 = vadd.f32 %v5032, %v5193
        %v5195 = vpop.f32.mrb[0].mxu0
        %5196 = vmatprep.mubr.f32.mxu0 0.0
        %v5197 = vand.u32 %v4110, 4294901760
        %5198 = vmatmul.mubr.f32.gmra.mrb[0].mxu0 %v5197
        %v5199 = vpop.f32.mrb[0].mxu0
        %v5200 = vadd.f32 %v5038, %v5199
        %v5201 = vpop.f32.mrb[0].mxu0
        %5202 = vdwg.mxu0
        %v5203 = vmul.f32 %v218, %v5110
        %v5204 = vmul.f32 %v219, %v5116
        %v5205 = vmul.f32 %v220, %v5122
        %v5206 = vmul.f32 %v221, %v5128
        %v5207 = vmul.f32 %v222, %v5134
        %v5208 = vmul.f32 %v223, %v5140
        %v5209 = vmul.f32 %v224, %v5146
        %v5210 = vmul.f32 %v225, %v5152
        %v5211 = vmul.f32 %v226, %v5158
        %v5212 = vmul.f32 %v227, %v5164
        %v5213 = vmul.f32 %v228, %v5170
        %v5214 = vmul.f32 %v229, %v5176
        %v5215 = vmul.f32 %v230, %v5182
        %v5216 = vmul.f32 %v231, %v5188
        %v5217 = vmul.f32 %v232, %v5194
        %v5218 = vmul.f32 %v233, %v5200
        %v5220 = vlaneseq
        %v5221 = vshrl.u32 %v5220, 7
        %v5222 = vsub.s32 0, %v5221
        %v5223 = vrot.slane %v234, %v5222
        %v5225 = vmul.f32 %v5203, %v5223
        %v5226 = vmul.f32 %v5204, %v5223
        %v5227 = vmul.f32 %v5205, %v5223
        %v5228 = vmul.f32 %v5206, %v5223
        %v5229 = vmul.f32 %v5207, %v5223
        %v5230 = vmul.f32 %v5208, %v5223
        %v5231 = vmul.f32 %v5209, %v5223
        %v5232 = vmul.f32 %v5210, %v5223
        %v5233 = vmul.f32 %v5211, %v5223
        %v5234 = vmul.f32 %v5212, %v5223
        %v5235 = vmul.f32 %v5213, %v5223
        %v5236 = vmul.f32 %v5214, %v5223
        %v5237 = vmul.f32 %v5215, %v5223
        %v5238 = vmul.f32 %v5216, %v5223
        %v5239 = vmul.f32 %v5217, %v5223
        %v5240 = vmul.f32 %v5218, %v5223
        %5241 = vst [vmem:[%s215] sm:$0xff] %v5225
        %5242 = vst [vmem:[%s215 + $0x8] sm:$0xff] %v5226
        %5243 = vst [vmem:[%s215 + $0x10] sm:$0xff] %v5227
        %5244 = vst [vmem:[%s215 + $0x18] sm:$0xff] %v5228
        %5245 = vst [vmem:[%s215 + $0x20] sm:$0xff] %v5229
        %5246 = vst [vmem:[%s215 + $0x28] sm:$0xff] %v5230
        %5247 = vst [vmem:[%s215 + $0x30] sm:$0xff] %v5231
        %5248 = vst [vmem:[%s215 + $0x38] sm:$0xff] %v5232
        %5249 = vst [vmem:[%s215 + $0x40] sm:$0xff] %v5233
        %5250 = vst [vmem:[%s215 + $0x48] sm:$0xff] %v5234
        %5251 = vst [vmem:[%s215 + $0x50] sm:$0xff] %v5235
        %5252 = vst [vmem:[%s215 + $0x58] sm:$0xff] %v5236
        %5253 = vst [vmem:[%s215 + $0x60] sm:$0xff] %v5237
        %5254 = vst [vmem:[%s215 + $0x68] sm:$0xff] %v5238
        %5255 = vst [vmem:[%s215 + $0x70] sm:$0xff] %v5239
        %5256 = vst [vmem:[%s215 + $0x78] sm:$0xff] %v5240
        %s5257 = sand.u32 %s118, 1
        %s5258 = scalar_lea.sflag [#allocation4], %s5257
        %s5259 = sand.u32 %s118, 1
        %s5260 = smul.addr %s5259, 128
        %s5261 = scalar_lea.vmem [#allocation5], %s5260
        // Predicated region
        $region41: #{tpu_custom_call.1} parent=35 // pred_check
          %p5262 = pneg %p128
        $region42: #{tpu_custom_call.1} parent=35 // pred_check_branch
          %5264 = sbr.rel (%p5262) target = $region44
        $region43: #{tpu_custom_call.1} parent=35 // pred_region
          %s5265 = smul.u32 16, %s21
          %s5267 = ssub.s32 2048, 2048
          %5268 = vsyncadd %s5258, %s5267
          %s5269 = smul.addr %s5265, 128
          %s5270 = scalar_lea.hbm %s4, %s5269
          %s5271 = sshll.u32 %s5261, 4
          %s5272 = int_to_ptr.vmem [resolvable:$true] %s5271
          %5277 = dma.vmem_to_hbm [thread:$0]  %s5272, 2048, %s5270, %s5258, 128, 128, 8
        $region44: #{tpu_custom_call.1} parent=35 // pred_fallthru
          _
      $region36: #{tpu_custom_call.1} parent=5 // pred_fallthru
        _
      %p5278 = scmp.le.s32.totalorder 2, %s16
      // Predicated region
      $region45: #{tpu_custom_call.1} parent=5 // pred_check
        %p5279 = pneg %p5278
      $region46: #{tpu_custom_call.1} parent=5 // pred_check_branch
        %5281 = sbr.rel (%p5279) target = $region48
      $region47: #{tpu_custom_call.1} parent=5 // pred_region
        %s5282 = ssub.s32 %s16, 2
        // Predicated region
        $region49: #{tpu_custom_call.1} parent=47 // pred_check
          %p5283 = pneg %p134
        $region50: #{tpu_custom_call.1} parent=47 // pred_check_branch
          %5285 = sbr.rel (%p5283) target = $region52
        $region51: #{tpu_custom_call.1} parent=47 // pred_region
          %s5286 = sand.u32 %s119, 1
          %s5287 = scalar_lea.sflag [#allocation4], %s5286
          %s5288 = sand.u32 %s119, 1
          %s5289 = smul.addr %s5288, 128
          %s5290 = scalar_lea.vmem [#allocation5], %s5289
          %5291 = dma.done %s5287, 2048
        $region52: #{tpu_custom_call.1} parent=47 // pred_fallthru
          _
      $region48: #{tpu_custom_call.1} parent=5 // pred_fallthru
        _
    $region6: #{tpu_custom_call.1} parent=1 // loop_footer
      %s20 = sadd.s32 1, %s16
    $region7: #{tpu_custom_call.1} parent=1 // loop_footer_branch
      %15 = sbr.rel target = $region3
    $region8: #{tpu_custom_call.1} parent=1 // loop_exit
      _
    %5292 = vsyncpa [#allocation3], 1
    %s5293 = scalar_lea.sflag [#allocation3], 1
    %5294 = vsyncpa %s5293, 1
    %5295 = vsyncpa [#allocation4], 1
    %s5296 = scalar_lea.sflag [#allocation4], 1
    %5297 = vsyncpa %s5296, 1

</llo_original>
